<compile_context>
chip_gen: v5e
topology: v5e:2x2
jax: 0.10.0
libtpu: 0.0.40
codegen_flags: <defaults>
</compile_context>

<pallas_src>
import functools
import numpy as np
import jax
import jax.numpy as jnp
from jax.experimental import pallas as pl
from jax.experimental.pallas import tpu as pltpu

ACT_DTYPE = jnp.bfloat16          # activations + conv/head weights (fp32 accumulation)
MEL_NP = 128                      # lane-dense mel-matmul output width (sliced to n_mels)
# 32 MiB is safe on every generation (v7x physical VMEM is 64 MiB); actual
# per-step footprint here is ~1-2 MiB.  On v5e/v6e this could be raised toward
# 64-100 MiB to take larger time tiles.
VMEM_LIMIT = 32 * 1024 * 1024


def _round_up(x, m):
    return (x + m - 1) // m * m


# ---------------------------------------------------------------------------
# Pallas kernel 1: tiled fused matmul  (X @ W) * scale + bias [+ log] [+ ReLU]
# Used for: mel filterbank (+log), conv1-as-matmul (+BN+ReLU), linear head.
# ---------------------------------------------------------------------------
def _matmul_kernel(x_ref, w_ref, s_ref, b_ref, o_ref, *, relu, log):
    acc = jnp.dot(x_ref[...], w_ref[...], preferred_element_type=jnp.float32)
    acc = acc * s_ref[...] + b_ref[...]
    if log:
        acc = jnp.log(acc + 1e-10)
    if relu:
        acc = jnp.maximum(acc, 0.0)
    o_ref[...] = acc.astype(o_ref.dtype)


def fused_matmul(x, w, scale, bias, *, relu=False, log=False,
                 out_dtype=jnp.float32, tm=512):
    """(M,K) @ (K,N) with per-column affine (+ optional log / ReLU), tiled over M."""
    M, K = x.shape
    K2, N = w.shape
    assert K == K2 and K % 128 == 0 and N % 128 == 0, (K, N)
    TM = min(tm, _round_up(M, 8))
    Mp = _round_up(M, TM)
    if Mp != M:
        x = jnp.pad(x, ((0, Mp - M), (0, 0)))
    kernel = functools.partial(_matmul_kernel, relu=relu, log=log)
    out = pl.pallas_call(
        kernel,
        out_shape=jax.ShapeDtypeStruct((Mp, N), out_dtype),
        grid=(Mp // TM,),
        in_specs=[
            pl.BlockSpec((TM, K), lambda i: (i, 0)),
            pl.BlockSpec((K, N), lambda i: (0, 0)),
            pl.BlockSpec((1, N), lambda i: (0, 0)),
            pl.BlockSpec((1, N), lambda i: (0, 0)),
        ],
        out_specs=pl.BlockSpec((TM, N), lambda i: (i, 0)),
        compiler_params=pltpu.CompilerParams(
            dimension_semantics=("parallel",),
            vmem_limit_bytes=VMEM_LIMIT),
        cost_estimate=pl.CostEstimate(
            flops=2 * Mp * K * N + 2 * Mp * N,
            transcendentals=Mp * N if log else 0,
            bytes_accessed=int(Mp * K * x.dtype.itemsize
                               + K * N * w.dtype.itemsize
                               + Mp * N * jnp.dtype(out_dtype).itemsize)),
    )(x, w, scale, bias)
    return out[:M] if Mp != M else out


# ---------------------------------------------------------------------------
# Pallas kernel 2: fully fused residual block on the (time, H*C) packed layout.
#   y   = ReLU(BN_a(conv3x3_a(x)))      (kept in VMEM, never written to HBM)
#   out = BN_b(conv3x3_b(y)) + x
# Each conv = 3 time-tap matmuls against a banded (F,F) matrix (freq taps and
# channel mixing folded into the contraction).  Grid = (batch, time tiles); a
# 2-row halo per tile comes in as tiny side inputs so blocks stay independent.
# ---------------------------------------------------------------------------
def _resblock_kernel(xm_ref, hf_ref, hb_ref, wa_ref, sa_ref, ba_ref,
                     wb_ref, sb_ref, bb_ref, o_ref, xt_ref, *, tw, w_real):
    f = o_ref.shape[-1]
    t = pl.program_id(1)

    # Assemble the haloed working tile in VMEM scratch (main block store aligned):
    #   rows 6..7        : front halo (global rows t*tw-2, t*tw-1; zeros at edges)
    #   rows 8..8+tw-1   : the tw output rows of this tile
    #   rows 8+tw..9+tw  : back halo
    xm = xm_ref[0]                                        # (tw, F) bf16
    xt_ref[6:8, :] = hf_ref[0, 0]
    xt_ref[8:8 + tw, :] = xm
    xt_ref[8 + tw:10 + tw, :] = hb_ref[0, 0]
    xt = xt_ref[...]                                      # single load; taps slice the value

    # conv_a + BN + ReLU, computed with a 1-row halo so conv_b needs no HBM re-read.
    acc = jnp.zeros((tw + 2, f), jnp.float32)
    for dw in range(3):                                   # static unroll: 3 MXU passes, K=F
        acc = acc + jnp.dot(xt[6 + dw:8 + dw + tw, :], wa_ref[dw],
                            preferred_element_type=jnp.float32)
    y = jnp.maximum(acc * sa_ref[...] + ba_ref[...], 0.0)
    # rows outside the real image must be exactly zero ('same' zero padding of conv_b)
    g = t * tw - 1 + jax.lax.broadcasted_iota(jnp.int32, (tw + 2, 1), 0)
    y = jnp.where((g >= 0) & (g < w_real), y, 0.0).astype(xm.dtype)

    # conv_b + BN + residual add (no post-residual ReLU, matching the reference).
    acc = jnp.zeros((tw, f), jnp.float32)
    for dw in range(3):
        acc = acc + jnp.dot(y[dw:dw + tw, :], wb_ref[dw],
                            preferred_element_type=jnp.float32)
    out = acc * sb_ref[...] + bb_ref[...] + xm.astype(jnp.float32)
    # keep time-padding rows zero so stacked blocks stay consistent
    go = t * tw + jax.lax.broadcasted_iota(jnp.int32, (tw, 1), 0)
    out = jnp.where(go < w_real, out, 0.0)
    o_ref[0] = out.astype(o_ref.dtype)


def _resblock_call(x, blk, *, tw, w_real):
    B, Wp, F = x.shape
    n_t = Wp // tw
    # halo slivers: rows [t*tw-2, t*tw-1] and [(t+1)*tw, (t+1)*tw+1] per tile
    xf = jnp.pad(x, ((0, 0), (2, 0), (0, 0)))[:, :Wp, :]
    front = xf.reshape(B, n_t, tw, F)[:, :, :2, :]
    xb = jnp.pad(x[:, tw:, :], ((0, 0), (0, tw), (0, 0)))
    back = xb.reshape(B, n_t, tw, F)[:, :, :2, :]

    sa, ba = blk["sa_ba"]
    sb, bb = blk["sb_bb"]
    kernel = functools.partial(_resblock_kernel, tw=tw, w_real=w_real)
    flops = 2 * B * n_t * ((tw + 2) + tw) * F * F * 3
    bytes_acc = int(2 * x.size * x.dtype.itemsize + 2 * 3 * F * F * 2)
    out = pl.pallas_call(
        kernel,
        out_shape=jax.ShapeDtypeStruct((B, Wp, F), ACT_DTYPE),
        grid=(B, n_t),
        in_specs=[
            pl.BlockSpec((1, tw, F), lambda b, t: (b, t, 0)),
            pl.BlockSpec((1, 1, 2, F), lambda b, t: (b, t, 0, 0)),
            pl.BlockSpec((1, 1, 2, F), lambda b, t: (b, t, 0, 0)),
            pl.BlockSpec((3, F, F), lambda b, t: (0, 0, 0)),
            pl.BlockSpec((1, F), lambda b, t: (0, 0)),
            pl.BlockSpec((1, F), lambda b, t: (0, 0)),
            pl.BlockSpec((3, F, F), lambda b, t: (0, 0, 0)),
            pl.BlockSpec((1, F), lambda b, t: (0, 0)),
            pl.BlockSpec((1, F), lambda b, t: (0, 0)),
        ],
        out_specs=pl.BlockSpec((1, tw, F), lambda b, t: (b, t, 0)),
        scratch_shapes=[pltpu.VMEM((tw + 16, F), ACT_DTYPE)],
        compiler_params=pltpu.CompilerParams(
            dimension_semantics=("parallel", "parallel"),
            vmem_limit_bytes=VMEM_LIMIT),
        cost_estimate=pl.CostEstimate(flops=flops, transcendentals=0,
                                      bytes_accessed=bytes_acc),
    )(x, front, back, blk["wa"], sa, ba, blk["wb"], sb, bb)
    return out


def resblock_stack(x, blocks, *, w_real, tw_max=128):
    """Apply a stack of fused residual blocks, tiled over time."""
    B, W, F = x.shape
    assert F % 128 == 0, F
    TW = min(tw_max, _round_up(W, 8))
    Wp = _round_up(W, TW)
    x = jnp.pad(x, ((0, 0), (0, Wp - W), (0, 0)))
    for blk in blocks:
        x = _resblock_call(x, blk, tw=TW, w_real=w_real)
    return x[:, :W, :]


# ---------------------------------------------------------------------------
# Mel spectrogram front-end (torchaudio MelSpectrogram semantics: periodic hann,
# center=True reflect pad, power=2, HTK mels, norm=None); log fused in kernel.
# ---------------------------------------------------------------------------
def _hz_to_mel(f):
    return 2595.0 * np.log10(1.0 + f / 700.0)


def _mel_to_hz(m):
    return 700.0 * (10.0 ** (m / 2595.0) - 1.0)


def mel_filterbank(n_freqs, f_min, f_max, n_mels, sr):
    all_freqs = np.linspace(0.0, sr / 2.0, n_freqs)
    m_pts = np.linspace(_hz_to_mel(f_min), _hz_to_mel(f_max), n_mels + 2)
    f_pts = _mel_to_hz(m_pts)
    f_diff = f_pts[1:] - f_pts[:-1]
    slopes = f_pts[None, :] - all_freqs[:, None]
    down = -slopes[:, :-2] / f_diff[:-1]
    up = slopes[:, 2:] / f_diff[1:]
    return np.maximum(0.0, np.minimum(down, up)).astype(np.float32)   # (n_freqs, n_mels)


def mel_spectrogram_log(audio, *, n_fft, hop, fb_padded, n_mels):
    """Returns log(mel + 1e-10), shape (B, n_frames, n_mels), bf16."""
    B, T = audio.shape
    pad = n_fft // 2
    xp = jnp.pad(audio, ((0, 0), (pad, pad)), mode="reflect")
    n_frames = 1 + T // hop
    idx = jnp.arange(n_frames)[:, None] * hop + jnp.arange(n_fft)[None, :]
    frames = xp[:, idx]                                                # (B, n_frames, n_fft)
    n = np.arange(n_fft)
    window = jnp.asarray(0.5 - 0.5 * np.cos(2.0 * np.pi * n / n_fft), jnp.float32)
    frames = frames * window
    spec = jnp.fft.rfft(frames, n=n_fft, axis=-1)
    power = (spec.real ** 2 + spec.imag ** 2).astype(jnp.float32)
    n_freq = n_fft // 2 + 1
    kp, npad = fb_padded.shape
    power = jnp.pad(power, ((0, 0), (0, 0), (0, kp - n_freq)))
    logmel = fused_matmul(power.reshape(B * n_frames, kp), fb_padded,
                          jnp.ones((1, npad), jnp.float32),
                          jnp.zeros((1, npad), jnp.float32),
                          log=True, out_dtype=ACT_DTYPE)
    return logmel.reshape(B, n_frames, npad)[:, :, :n_mels]


# ---------------------------------------------------------------------------
# conv1 (Cin=1, 7x7, 'same') + BN + ReLU as a single fused matmul.
# ---------------------------------------------------------------------------
def conv1_bn_relu(logmel, conv1_w, scale, bias, *, n_mels, hidden):
    B, W, nm = logmel.shape
    xp = jnp.pad(logmel, ((0, 0), (3, 3), (0, 0)))
    # 7 time taps folded into the contraction dim (K = 7*n_mels); freq taps are
    # folded into the banded weight matrix built at init.
    patches = jnp.concatenate([xp[:, j:j + W, :] for j in range(7)], axis=-1)
    kp = conv1_w.shape[0]
    patches = jnp.pad(patches, ((0, 0), (0, 0), (0, kp - 7 * nm)))
    out = fused_matmul(patches.reshape(B * W, kp), conv1_w, scale, bias,
                       relu=True, out_dtype=ACT_DTYPE)
    return out.reshape(B, W, n_mels * hidden)


# ---------------------------------------------------------------------------
# Pooling glue (plain JAX).
# ---------------------------------------------------------------------------
def pool_freq(x, hidden):
    """AdaptiveAvgPool2d((H//2, None)) on the packed (time, H*C) layout (divisible case)."""
    B, W, F = x.shape
    H = F // hidden
    x = x.reshape(B, W, H // 2, 2, hidden).astype(jnp.float32).mean(axis=3)
    return x.astype(ACT_DTYPE).reshape(B, W, (H // 2) * hidden)


def time_pool_matrix(W, t_out):
    """Exact F.adaptive_avg_pool1d bin semantics as a (W, t_out) averaging matrix."""
    P = np.zeros((W, t_out), np.float32)
    for i in range(t_out):
        s = (i * W) // t_out
        e = -((-(i + 1) * W) // t_out)
        P[s:e, i] = 1.0 / (e - s)
    return jnp.asarray(P)


# ---------------------------------------------------------------------------
# Parameters (deterministic, synthetic), converted once to the packed layouts.
# ---------------------------------------------------------------------------
def _bn_params(key, c):
    k1, k2, k3, k4 = jax.random.split(key, 4)
    gamma = 1.0 + 0.1 * jax.random.normal(k1, (c,), jnp.float32)
    beta = 0.1 * jax.random.normal(k2, (c,), jnp.float32)
    mean = 0.05 * jax.random.normal(k3, (c,), jnp.float32)
    var = 1.0 + 0.1 * jnp.abs(jax.random.normal(k4, (c,), jnp.float32))
    return gamma, beta, mean, var


def _bn_affine_packed(bn, H, eps=1e-5):
    """Per-channel eval-mode BN affine, replicated over the packed freq positions."""
    gamma, beta, mean, var = bn
    scale = gamma / jnp.sqrt(var + eps)
    bias = beta - mean * scale
    return (jnp.tile(scale, H)[None, :].astype(jnp.float32),
            jnp.tile(bias, H)[None, :].astype(jnp.float32))


def _banded_conv_matrix(w, H):
    """PyTorch (O, I, 3, 3) 'same' conv -> (3 time taps, H*I, H*O) banded matrices."""
    O, I, kh, kw = w.shape
    m = np.zeros((kw, H * I, H * O), np.float32)
    for dw in range(kw):
        for h in range(H):
            for dh in range(kh):
                hp = h + dh - (kh // 2)
                if 0 <= hp < H:
                    m[dw, hp * I:(hp + 1) * I, h * O:(h + 1) * O] = w[:, :, dh, dw].T
    return m


def init_params(key, args):
    n_mels = args["n_mels"]
    hidden = args["hidden_size"]
    n_blocks = args["n_blocks"]
    sr = args["sr"]
    n_fft = n_mels * 8
    n_freq = n_fft // 2 + 1
    keys = iter(jax.random.split(key, 256))
    p = {}

    # mel filterbank, K padded to 128, N padded to 128 (lane-dense output)
    fb = mel_filterbank(n_freq, 10.0, sr / 2.0, n_mels, sr)
    fbp = np.zeros((_round_up(n_freq, 128), MEL_NP), np.float32)
    fbp[:n_freq, :n_mels] = fb
    p["mel_fb"] = jnp.asarray(fbp)

    # conv1 as one banded matmul: rows = 7 time taps x n_mels freq bins (pad to 128),
    # cols = n_mels output freq positions x hidden channels (feature order h*C + c).
    w1 = np.asarray(0.05 * jax.random.normal(next(keys), (hidden, 1, 7, 7), jnp.float32))
    k1 = _round_up(7 * n_mels, 128)
    m1 = np.zeros((k1, n_mels * hidden), np.float32)
    for j in range(7):
        for hp in range(n_mels):
            for h in range(n_mels):
                i = hp - h + 3
                if 0 <= i < 7:
                    m1[j * n_mels + hp, h * hidden:(h + 1) * hidden] = w1[:, 0, i, j]
    p["conv1_w"] = jnp.asarray(m1, ACT_DTYPE)
    p["conv1_sb"] = _bn_affine_packed(_bn_params(next(keys), hidden), n_mels)

    def make_stage(H):
        blocks = []
        for _ in range(n_blocks):
            wa = np.asarray(0.05 * jax.random.normal(next(keys), (hidden, hidden, 3, 3),
                                                     jnp.float32))
            wb = np.asarray(0.05 * jax.random.normal(next(keys), (hidden, hidden, 3, 3),
                                                     jnp.float32))
            blocks.append({
                "wa": jnp.asarray(_banded_conv_matrix(wa, H), ACT_DTYPE),
                "sa_ba": _bn_affine_packed(_bn_params(next(keys), hidden), H),
                "wb": jnp.asarray(_banded_conv_matrix(wb, H), ACT_DTYPE),
                "sb_bb": _bn_affine_packed(_bn_params(next(keys), hidden), H),
            })
        return blocks

    p["resblock1"] = make_stage(n_mels // 2)
    p["resblock2"] = make_stage(n_mels // 4)

    # head: logical feature order is (c * H3 + h) (PyTorch reshape), permute to (h*C + c)
    h3 = n_mels // 8
    hw = 0.02 * jax.random.normal(next(keys), (hidden * h3, 768), jnp.float32)
    hw = hw.reshape(hidden, h3, 768).transpose(1, 0, 2).reshape(h3 * hidden, 768)
    kh_ = _round_up(h3 * hidden, 128)
    p["head_w"] = jnp.pad(hw, ((0, kh_ - h3 * hidden), (0, 0))).astype(ACT_DTYPE)
    p["head_b"] = (0.01 * jax.random.normal(next(keys), (768,), jnp.float32))[None, :]
    return p


# ---------------------------------------------------------------------------
# ConvEncoder forward
# ---------------------------------------------------------------------------
def conv_encoder_forward(params, audio, args):
    n_mels = args["n_mels"]
    hidden = args["hidden_size"]
    dsf = args["downsample_factor"]
    B, T = audio.shape
    t_out = T // dsf

    # log-mel front end (log fused into the Pallas matmul epilogue)
    x = mel_spectrogram_log(audio, n_fft=n_mels * 8, hop=dsf // 2,
                            fb_padded=params["mel_fb"], n_mels=n_mels)   # (B, W, n_mels)
    W = x.shape[1]

    # conv1 -> bn1 -> relu, fused into one matmul; output packed as (time, H*C)
    s1, b1 = params["conv1_sb"]
    x = conv1_bn_relu(x, params["conv1_w"], s1, b1, n_mels=n_mels, hidden=hidden)

    x = pool_freq(x, hidden)                                             # pool1: H 16->8
    x = resblock_stack(x, params["resblock1"], w_real=W)
    x = pool_freq(x, hidden)                                             # pool2: H 8->4
    x = resblock_stack(x, params["resblock2"], w_real=W)
    x = pool_freq(x, hidden)                                             # pool3: H 4->2

    # adaptive time pooling folded into one (W, t_out) averaging matmul, then head
    P = time_pool_matrix(W, t_out)
    pooled = jnp.einsum("bwf,wt->btf", x.astype(jnp.float32), P)         # (B, t_out, H3*C)
    F3 = pooled.shape[-1]
    kp = params["head_w"].shape[0]
    feats = jnp.pad(pooled.reshape(B * t_out, F3),
                    ((0, 0), (0, kp - F3))).astype(ACT_DTYPE)
    y = fused_matmul(feats, params["head_w"],
                     jnp.ones((1, 768), jnp.float32), params["head_b"])
    return y.reshape(B, t_out, 768)


# ---------------------------------------------------------------------------
if __name__ == "__main__":
    args = {
        "n_mels": 16,
        "sr": 4000,
        "hidden_size": 32,
        "n_blocks": 1,
        "downsample_factor": 32,
    }
    key = jax.random.PRNGKey(0)
    pkey, akey = jax.random.split(key)
    params = init_params(pkey, args)

    batch, samples = 2, 512
    audio = jax.random.normal(akey, (batch, samples), jnp.float32)

    fwd = jax.jit(functools.partial(conv_encoder_forward, args=args))
    out = jax.block_until_ready(fwd(params, audio))

    expected = (batch, samples // args["downsample_factor"], 768)
    assert out.shape == expected, (out.shape, expected)
    assert bool(jnp.all(jnp.isfinite(out.astype(jnp.float32))))
    print("KERNEL_OK")
</pallas_src>

<mosaic_0001>
module attributes {stable_mosaic.version = 11 : i64} {
  func.func @_matmul_kernel(%arg0: i32, %arg1: memref<72x128xf32, #tpu.memory_space<vmem>>, %arg2: memref<128x128xf32, #tpu.memory_space<vmem>>, %arg3: memref<1x128xf32, #tpu.memory_space<vmem>>, %arg4: memref<1x128xf32, #tpu.memory_space<vmem>>, %arg5: memref<72x128xbf16, #tpu.memory_space<vmem>>) attributes {dimension_semantics = [#tpu.dimension_semantics<parallel>], iteration_bounds = array<i64: 1>, scalar_prefetch = 0 : i64, scratch_operands = 0 : i64, tpu.core_type = #tpu.core_type<tc>, window_params = [{transform_indices = @transform_0, window_bounds = array<i64: 72, 128>}, {pipeline_mode = #tpu.pipeline_mode<synchronous>, transform_indices = @transform_1, window_bounds = array<i64: 128, 128>}, {pipeline_mode = #tpu.pipeline_mode<synchronous>, transform_indices = @transform_2, window_bounds = array<i64: 1, 128>}, {pipeline_mode = #tpu.pipeline_mode<synchronous>, transform_indices = @transform_3, window_bounds = array<i64: 1, 128>}, {transform_indices = @transform_4, window_bounds = array<i64: 72, 128>}]} {
    %c0 = arith.constant 0 : index
    %c0_0 = arith.constant 0 : index
    %0 = vector.load %arg1[%c0, %c0_0] : memref<72x128xf32, #tpu.memory_space<vmem>>, vector<72x128xf32>
    %c0_1 = arith.constant 0 : index
    %c0_2 = arith.constant 0 : index
    %1 = vector.load %arg2[%c0_1, %c0_2] : memref<128x128xf32, #tpu.memory_space<vmem>>, vector<128x128xf32>
    %cst = arith.constant dense<0.000000e+00> : vector<72x128xf32>
    %2 = tpu.matmul %0, %1, %cst {dimension_numbers = #tpu.dot_dimension_numbers<[1], [0], [0], [1], [0, 0, 1, 1], [], []>} : vector<72x128xf32>, vector<128x128xf32>, vector<72x128xf32> -> vector<72x128xf32>
    %c0_3 = arith.constant 0 : index
    %c0_4 = arith.constant 0 : index
    %3 = vector.load %arg3[%c0_3, %c0_4] : memref<1x128xf32, #tpu.memory_space<vmem>>, vector<1x128xf32>
    %4 = vector.broadcast %3 : vector<1x128xf32> to vector<72x128xf32>
    %5 = arith.mulf %2, %4 : vector<72x128xf32>
    %c0_5 = arith.constant 0 : index
    %c0_6 = arith.constant 0 : index
    %6 = vector.load %arg4[%c0_5, %c0_6] : memref<1x128xf32, #tpu.memory_space<vmem>>, vector<1x128xf32>
    %7 = vector.broadcast %6 : vector<1x128xf32> to vector<72x128xf32>
    %8 = arith.addf %5, %7 : vector<72x128xf32>
    %cst_7 = arith.constant 1.000000e-10 : f32
    %9 = vector.broadcast %cst_7 : f32 to vector<72x128xf32>
    %10 = arith.addf %8, %9 : vector<72x128xf32>
    %11 = math.log %10 : vector<72x128xf32>
    %12 = arith.truncf %11 : vector<72x128xf32> to vector<72x128xbf16>
    %c0_8 = arith.constant 0 : index
    %c0_9 = arith.constant 0 : index
    %13 = vector.load %arg5[%c0_8, %c0_9] : memref<72x128xbf16, #tpu.memory_space<vmem>>, vector<72x128xbf16>
    tpu.vector_store %arg5[%c0_8, %c0_9], %12 {strides = array<i32>} : memref<72x128xbf16, #tpu.memory_space<vmem>>, vector<72x128xbf16>,
    return
  }
  func.func @transform_0(%arg0: i32) -> (i32, i32) {
    %c0_i32 = arith.constant 0 : i32
    %c0_i32_0 = arith.constant 0 : i32
    return %arg0, %c0_i32 : i32, i32
  }
  func.func @transform_1(%arg0: i32) -> (i32, i32) {
    %c0_i32 = arith.constant 0 : i32
    %c0_i32_0 = arith.constant 0 : i32
    %c0_i32_1 = arith.constant 0 : i32
    return %c0_i32, %c0_i32_0 : i32, i32
  }
  func.func @transform_2(%arg0: i32) -> (i32, i32) {
    %c0_i32 = arith.constant 0 : i32
    %c0_i32_0 = arith.constant 0 : i32
    %c0_i32_1 = arith.constant 0 : i32
    return %c0_i32, %c0_i32_0 : i32, i32
  }
  func.func @transform_3(%arg0: i32) -> (i32, i32) {
    %c0_i32 = arith.constant 0 : i32
    %c0_i32_0 = arith.constant 0 : i32
    %c0_i32_1 = arith.constant 0 : i32
    return %c0_i32, %c0_i32_0 : i32, i32
  }
  func.func @transform_4(%arg0: i32) -> (i32, i32) {
    %c0_i32 = arith.constant 0 : i32
    %c0_i32_0 = arith.constant 0 : i32
    return %arg0, %c0_i32 : i32, i32
  }
}

module attributes {stable_mosaic.version = 11 : i64} {
  func.func @_matmul_kernel(%arg0: i32, %arg1: memref<72x128xbf16, #tpu.memory_space<vmem>>, %arg2: memref<128x512xbf16, #tpu.memory_space<vmem>>, %arg3: memref<1x512xf32, #tpu.memory_space<vmem>>, %arg4: memref<1x512xf32, #tpu.memory_space<vmem>>, %arg5: memref<72x512xbf16, #tpu.memory_space<vmem>>) attributes {dimension_semantics = [#tpu.dimension_semantics<parallel>], iteration_bounds = array<i64: 1>, scalar_prefetch = 0 : i64, scratch_operands = 0 : i64, tpu.core_type = #tpu.core_type<tc>, window_params = [{transform_indices = @transform_0, window_bounds = array<i64: 72, 128>}, {pipeline_mode = #tpu.pipeline_mode<synchronous>, transform_indices = @transform_1, window_bounds = array<i64: 128, 512>}, {pipeline_mode = #tpu.pipeline_mode<synchronous>, transform_indices = @transform_2, window_bounds = array<i64: 1, 512>}, {pipeline_mode = #tpu.pipeline_mode<synchronous>, transform_indices = @transform_3, window_bounds = array<i64: 1, 512>}, {transform_indices = @transform_4, window_bounds = array<i64: 72, 512>}]} {
    %c0 = arith.constant 0 : index
    %c0_0 = arith.constant 0 : index
    %0 = vector.load %arg1[%c0, %c0_0] : memref<72x128xbf16, #tpu.memory_space<vmem>>, vector<72x128xbf16>
    %c0_1 = arith.constant 0 : index
    %c0_2 = arith.constant 0 : index
    %1 = vector.load %arg2[%c0_1, %c0_2] : memref<128x512xbf16, #tpu.memory_space<vmem>>, vector<128x512xbf16>
    %cst = arith.constant dense<0.000000e+00> : vector<72x512xf32>
    %2 = tpu.matmul %0, %1, %cst {dimension_numbers = #tpu.dot_dimension_numbers<[1], [0], [0], [1], [0, 0, 1, 1], [], []>} : vector<72x128xbf16>, vector<128x512xbf16>, vector<72x512xf32> -> vector<72x512xf32>
    %c0_3 = arith.constant 0 : index
    %c0_4 = arith.constant 0 : index
    %3 = vector.load %arg3[%c0_3, %c0_4] : memref<1x512xf32, #tpu.memory_space<vmem>>, vector<1x512xf32>
    %4 = vector.broadcast %3 : vector<1x512xf32> to vector<72x512xf32>
    %5 = arith.mulf %2, %4 : vector<72x512xf32>
    %c0_5 = arith.constant 0 : index
    %c0_6 = arith.constant 0 : index
    %6 = vector.load %arg4[%c0_5, %c0_6] : memref<1x512xf32, #tpu.memory_space<vmem>>, vector<1x512xf32>
    %7 = vector.broadcast %6 : vector<1x512xf32> to vector<72x512xf32>
    %8 = arith.addf %5, %7 : vector<72x512xf32>
    %cst_7 = arith.constant 0.000000e+00 : f32
    %9 = vector.broadcast %cst_7 : f32 to vector<72x512xf32>
    %10 = arith.maximumf %8, %9 : vector<72x512xf32>
    %11 = arith.truncf %10 : vector<72x512xf32> to vector<72x512xbf16>
    %c0_8 = arith.constant 0 : index
    %c0_9 = arith.constant 0 : index
    %12 = vector.load %arg5[%c0_8, %c0_9] : memref<72x512xbf16, #tpu.memory_space<vmem>>, vector<72x512xbf16>
    tpu.vector_store %arg5[%c0_8, %c0_9], %11 {strides = array<i32>} : memref<72x512xbf16, #tpu.memory_space<vmem>>, vector<72x512xbf16>,
    return
  }
  func.func @transform_0(%arg0: i32) -> (i32, i32) {
    %c0_i32 = arith.constant 0 : i32
    %c0_i32_0 = arith.constant 0 : i32
    return %arg0, %c0_i32 : i32, i32
  }
  func.func @transform_1(%arg0: i32) -> (i32, i32) {
    %c0_i32 = arith.constant 0 : i32
    %c0_i32_0 = arith.constant 0 : i32
    %c0_i32_1 = arith.constant 0 : i32
    return %c0_i32, %c0_i32_0 : i32, i32
  }
  func.func @transform_2(%arg0: i32) -> (i32, i32) {
    %c0_i32 = arith.constant 0 : i32
    %c0_i32_0 = arith.constant 0 : i32
    %c0_i32_1 = arith.constant 0 : i32
    return %c0_i32, %c0_i32_0 : i32, i32
  }
  func.func @transform_3(%arg0: i32) -> (i32, i32) {
    %c0_i32 = arith.constant 0 : i32
    %c0_i32_0 = arith.constant 0 : i32
    %c0_i32_1 = arith.constant 0 : i32
    return %c0_i32, %c0_i32_0 : i32, i32
  }
  func.func @transform_4(%arg0: i32) -> (i32, i32) {
    %c0_i32 = arith.constant 0 : i32
    %c0_i32_0 = arith.constant 0 : i32
    return %arg0, %c0_i32 : i32, i32
  }
}

module attributes {stable_mosaic.version = 11 : i64} {
  func.func @_resblock_kernel(%arg0: i32, %arg1: i32, %arg2: memref<1x40x256xbf16, #tpu.memory_space<vmem>>, %arg3: memref<1x1x2x256xbf16, #tpu.memory_space<vmem>>, %arg4: memref<1x1x2x256xbf16, #tpu.memory_space<vmem>>, %arg5: memref<3x256x256xbf16, #tpu.memory_space<vmem>>, %arg6: memref<1x256xf32, #tpu.memory_space<vmem>>, %arg7: memref<1x256xf32, #tpu.memory_space<vmem>>, %arg8: memref<3x256x256xbf16, #tpu.memory_space<vmem>>, %arg9: memref<1x256xf32, #tpu.memory_space<vmem>>, %arg10: memref<1x256xf32, #tpu.memory_space<vmem>>, %arg11: memref<1x40x256xbf16, #tpu.memory_space<vmem>>, %arg12: memref<56x256xbf16, #tpu.memory_space<vmem>>) attributes {dimension_semantics = [#tpu.dimension_semantics<parallel>, #tpu.dimension_semantics<parallel>], iteration_bounds = array<i64: 2, 1>, scalar_prefetch = 0 : i64, scratch_operands = 1 : i64, tpu.core_type = #tpu.core_type<tc>, window_params = [{transform_indices = @transform_0, window_bounds = array<i64: 1, 40, 256>}, {transform_indices = @transform_1, window_bounds = array<i64: 1, 1, 2, 256>}, {transform_indices = @transform_2, window_bounds = array<i64: 1, 1, 2, 256>}, {pipeline_mode = #tpu.pipeline_mode<synchronous>, transform_indices = @transform_3, window_bounds = array<i64: 3, 256, 256>}, {pipeline_mode = #tpu.pipeline_mode<synchronous>, transform_indices = @transform_4, window_bounds = array<i64: 1, 256>}, {pipeline_mode = #tpu.pipeline_mode<synchronous>, transform_indices = @transform_5, window_bounds = array<i64: 1, 256>}, {pipeline_mode = #tpu.pipeline_mode<synchronous>, transform_indices = @transform_6, window_bounds = array<i64: 3, 256, 256>}, {pipeline_mode = #tpu.pipeline_mode<synchronous>, transform_indices = @transform_7, window_bounds = array<i64: 1, 256>}, {pipeline_mode = #tpu.pipeline_mode<synchronous>, transform_indices = @transform_8, window_bounds = array<i64: 1, 256>}, {transform_indices = @transform_9, window_bounds = array<i64: 1, 40, 256>}]} {
    %c0 = arith.constant 0 : index
    %c0_0 = arith.constant 0 : index
    %c0_1 = arith.constant 0 : index
    %0 = vector.load %arg2[%c0, %c0_0, %c0_1] : memref<1x40x256xbf16, #tpu.memory_space<vmem>>, vector<1x40x256xbf16>
    %1 = vector.shape_cast %0 : vector<1x40x256xbf16> to vector<40x256xbf16>
    %c0_2 = arith.constant 0 : index
    %c0_3 = arith.constant 0 : index
    %c0_4 = arith.constant 0 : index
    %c0_5 = arith.constant 0 : index
    %2 = vector.load %arg3[%c0_2, %c0_3, %c0_4, %c0_5] : memref<1x1x2x256xbf16, #tpu.memory_space<vmem>>, vector<1x1x2x256xbf16>
    %3 = vector.shape_cast %2 : vector<1x1x2x256xbf16> to vector<2x256xbf16>
    %c6 = arith.constant 6 : index
    %c0_6 = arith.constant 0 : index
    %4 = vector.load %arg12[%c6, %c0_6] : memref<56x256xbf16, #tpu.memory_space<vmem>>, vector<2x256xbf16>
    tpu.vector_store %arg12[%c6, %c0_6], %3 {strides = array<i32>} : memref<56x256xbf16, #tpu.memory_space<vmem>>, vector<2x256xbf16>,
    %c8 = arith.constant 8 : index
    %c0_7 = arith.constant 0 : index
    %5 = vector.load %arg12[%c8, %c0_7] : memref<56x256xbf16, #tpu.memory_space<vmem>>, vector<40x256xbf16>
    tpu.vector_store %arg12[%c8, %c0_7], %1 {strides = array<i32>} : memref<56x256xbf16, #tpu.memory_space<vmem>>, vector<40x256xbf16>,
    %c0_8 = arith.constant 0 : index
    %c0_9 = arith.constant 0 : index
    %c0_10 = arith.constant 0 : index
    %c0_11 = arith.constant 0 : index
    %6 = vector.load %arg4[%c0_8, %c0_9, %c0_10, %c0_11] : memref<1x1x2x256xbf16, #tpu.memory_space<vmem>>, vector<1x1x2x256xbf16>
    %7 = vector.shape_cast %6 : vector<1x1x2x256xbf16> to vector<2x256xbf16>
    %c48 = arith.constant 48 : index
    %c0_12 = arith.constant 0 : index
    %8 = vector.load %arg12[%c48, %c0_12] : memref<56x256xbf16, #tpu.memory_space<vmem>>, vector<2x256xbf16>
    tpu.vector_store %arg12[%c48, %c0_12], %7 {strides = array<i32>} : memref<56x256xbf16, #tpu.memory_space<vmem>>, vector<2x256xbf16>,
    %c0_13 = arith.constant 0 : index
    %c0_14 = arith.constant 0 : index
    %9 = vector.load %arg12[%c0_13, %c0_14] : memref<56x256xbf16, #tpu.memory_space<vmem>>, vector<56x256xbf16>
    %cst = arith.constant 0.000000e+00 : f32
    %10 = vector.broadcast %cst : f32 to vector<42x256xf32>
    %11 = vector.extract_strided_slice %9 {offsets = [6, 0], sizes = [42, 256], strides = [1, 1]} : vector<56x256xbf16> to vector<42x256xbf16>
    %c0_15 = arith.constant 0 : index
    %c0_16 = arith.constant 0 : index
    %c0_17 = arith.constant 0 : index
    %12 = vector.load %arg5[%c0_15, %c0_16, %c0_17] : memref<3x256x256xbf16, #tpu.memory_space<vmem>>, vector<1x256x256xbf16>
    %13 = vector.shape_cast %12 : vector<1x256x256xbf16> to vector<256x256xbf16>
    %cst_18 = arith.constant dense<0.000000e+00> : vector<42x256xf32>
    %14 = tpu.matmul %11, %13, %cst_18 {dimension_numbers = #tpu.dot_dimension_numbers<[1], [0], [0], [1], [0, 0, 1, 1], [], []>} : vector<42x256xbf16>, vector<256x256xbf16>, vector<42x256xf32> -> vector<42x256xf32>
    %15 = arith.addf %10, %14 : vector<42x256xf32>
    %16 = vector.extract_strided_slice %9 {offsets = [7, 0], sizes = [42, 256], strides = [1, 1]} : vector<56x256xbf16> to vector<42x256xbf16>
    %c1 = arith.constant 1 : index
    %c0_19 = arith.constant 0 : index
    %c0_20 = arith.constant 0 : index
    %17 = vector.load %arg5[%c1, %c0_19, %c0_20] : memref<3x256x256xbf16, #tpu.memory_space<vmem>>, vector<1x256x256xbf16>
    %18 = vector.shape_cast %17 : vector<1x256x256xbf16> to vector<256x256xbf16>
    %cst_21 = arith.constant dense<0.000000e+00> : vector<42x256xf32>
    %19 = tpu.matmul %16, %18, %cst_21 {dimension_numbers = #tpu.dot_dimension_numbers<[1], [0], [0], [1], [0, 0, 1, 1], [], []>} : vector<42x256xbf16>, vector<256x256xbf16>, vector<42x256xf32> -> vector<42x256xf32>
    %20 = arith.addf %15, %19 : vector<42x256xf32>
    %21 = vector.extract_strided_slice %9 {offsets = [8, 0], sizes = [42, 256], strides = [1, 1]} : vector<56x256xbf16> to vector<42x256xbf16>
    %c2 = arith.constant 2 : index
    %c0_22 = arith.constant 0 : index
    %c0_23 = arith.constant 0 : index
    %22 = vector.load %arg5[%c2, %c0_22, %c0_23] : memref<3x256x256xbf16, #tpu.memory_space<vmem>>, vector<1x256x256xbf16>
    %23 = vector.shape_cast %22 : vector<1x256x256xbf16> to vector<256x256xbf16>
    %cst_24 = arith.constant dense<0.000000e+00> : vector<42x256xf32>
    %24 = tpu.matmul %21, %23, %cst_24 {dimension_numbers = #tpu.dot_dimension_numbers<[1], [0], [0], [1], [0, 0, 1, 1], [], []>} : vector<42x256xbf16>, vector<256x256xbf16>, vector<42x256xf32> -> vector<42x256xf32>
    %25 = arith.addf %20, %24 : vector<42x256xf32>
    %c0_25 = arith.constant 0 : index
    %c0_26 = arith.constant 0 : index
    %26 = vector.load %arg6[%c0_25, %c0_26] : memref<1x256xf32, #tpu.memory_space<vmem>>, vector<1x256xf32>
    %27 = vector.broadcast %26 : vector<1x256xf32> to vector<42x256xf32>
    %28 = arith.mulf %25, %27 : vector<42x256xf32>
    %c0_27 = arith.constant 0 : index
    %c0_28 = arith.constant 0 : index
    %29 = vector.load %arg7[%c0_27, %c0_28] : memref<1x256xf32, #tpu.memory_space<vmem>>, vector<1x256xf32>
    %30 = vector.broadcast %29 : vector<1x256xf32> to vector<42x256xf32>
    %31 = arith.addf %28, %30 : vector<42x256xf32>
    %cst_29 = arith.constant 0.000000e+00 : f32
    %32 = vector.broadcast %cst_29 : f32 to vector<42x256xf32>
    %33 = arith.maximumf %31, %32 : vector<42x256xf32>
    %c40_i32 = arith.constant 40 : i32
    %34 = arith.muli %arg1, %c40_i32 : i32
    %c1_i32 = arith.constant 1 : i32
    %35 = arith.subi %34, %c1_i32 : i32
    %36 = tpu.iota {dimensions = array<i32: 0>} : vector<42x1xi32>
    %37 = vector.broadcast %35 : i32 to vector<42x1xi32>
    %38 = arith.addi %37, %36 : vector<42x1xi32>
    %c0_i32 = arith.constant 0 : i32
    %39 = vector.broadcast %c0_i32 : i32 to vector<42x1xi32>
    %40 = arith.cmpi sge, %38, %39 : vector<42x1xi32>
    %c33_i32 = arith.constant 33 : i32
    %41 = vector.broadcast %c33_i32 : i32 to vector<42x1xi32>
    %42 = arith.cmpi slt, %38, %41 : vector<42x1xi32>
    %43 = arith.andi %40, %42 : vector<42x1xi1>
    %cst_30 = arith.constant 0.000000e+00 : f32
    %44 = vector.shape_cast %43 : vector<42x1xi1> to vector<42x1xi1>
    %45 = vector.broadcast %44 : vector<42x1xi1> to vector<42x256xi1>
    %46 = vector.broadcast %cst_30 : f32 to vector<42x256xf32>
    %47 = arith.select %45, %33, %46 : vector<42x256xi1>, vector<42x256xf32>
    %48 = arith.truncf %47 : vector<42x256xf32> to vector<42x256xbf16>
    %cst_31 = arith.constant 0.000000e+00 : f32
    %49 = vector.broadcast %cst_31 : f32 to vector<40x256xf32>
    %50 = vector.extract_strided_slice %48 {offsets = [0, 0], sizes = [40, 256], strides = [1, 1]} : vector<42x256xbf16> to vector<40x256xbf16>
    %c0_32 = arith.constant 0 : index
    %c0_33 = arith.constant 0 : index
    %c0_34 = arith.constant 0 : index
    %51 = vector.load %arg8[%c0_32, %c0_33, %c0_34] : memref<3x256x256xbf16, #tpu.memory_space<vmem>>, vector<1x256x256xbf16>
    %52 = vector.shape_cast %51 : vector<1x256x256xbf16> to vector<256x256xbf16>
    %cst_35 = arith.constant dense<0.000000e+00> : vector<40x256xf32>
    %53 = tpu.matmul %50, %52, %cst_35 {dimension_numbers = #tpu.dot_dimension_numbers<[1], [0], [0], [1], [0, 0, 1, 1], [], []>} : vector<40x256xbf16>, vector<256x256xbf16>, vector<40x256xf32> -> vector<40x256xf32>
    %54 = arith.addf %49, %53 : vector<40x256xf32>
    %55 = vector.extract_strided_slice %48 {offsets = [1, 0], sizes = [40, 256], strides = [1, 1]} : vector<42x256xbf16> to vector<40x256xbf16>
    %c1_36 = arith.constant 1 : index
    %c0_37 = arith.constant 0 : index
    %c0_38 = arith.constant 0 : index
    %56 = vector.load %arg8[%c1_36, %c0_37, %c0_38] : memref<3x256x256xbf16, #tpu.memory_space<vmem>>, vector<1x256x256xbf16>
    %57 = vector.shape_cast %56 : vector<1x256x256xbf16> to vector<256x256xbf16>
    %cst_39 = arith.constant dense<0.000000e+00> : vector<40x256xf32>
    %58 = tpu.matmul %55, %57, %cst_39 {dimension_numbers = #tpu.dot_dimension_numbers<[1], [0], [0], [1], [0, 0, 1, 1], [], []>} : vector<40x256xbf16>, vector<256x256xbf16>, vector<40x256xf32> -> vector<40x256xf32>
    %59 = arith.addf %54, %58 : vector<40x256xf32>
    %60 = vector.extract_strided_slice %48 {offsets = [2, 0], sizes = [40, 256], strides = [1, 1]} : vector<42x256xbf16> to vector<40x256xbf16>
    %c2_40 = arith.constant 2 : index
    %c0_41 = arith.constant 0 : index
    %c0_42 = arith.constant 0 : index
    %61 = vector.load %arg8[%c2_40, %c0_41, %c0_42] : memref<3x256x256xbf16, #tpu.memory_space<vmem>>, vector<1x256x256xbf16>
    %62 = vector.shape_cast %61 : vector<1x256x256xbf16> to vector<256x256xbf16>
    %cst_43 = arith.constant dense<0.000000e+00> : vector<40x256xf32>
    %63 = tpu.matmul %60, %62, %cst_43 {dimension_numbers = #tpu.dot_dimension_numbers<[1], [0], [0], [1], [0, 0, 1, 1], [], []>} : vector<40x256xbf16>, vector<256x256xbf16>, vector<40x256xf32> -> vector<40x256xf32>
    %64 = arith.addf %59, %63 : vector<40x256xf32>
    %c0_44 = arith.constant 0 : index
    %c0_45 = arith.constant 0 : index
    %65 = vector.load %arg9[%c0_44, %c0_45] : memref<1x256xf32, #tpu.memory_space<vmem>>, vector<1x256xf32>
    %66 = vector.broadcast %65 : vector<1x256xf32> to vector<40x256xf32>
    %67 = arith.mulf %64, %66 : vector<40x256xf32>
    %c0_46 = arith.constant 0 : index
    %c0_47 = arith.constant 0 : index
    %68 = vector.load %arg10[%c0_46, %c0_47] : memref<1x256xf32, #tpu.memory_space<vmem>>, vector<1x256xf32>
    %69 = vector.broadcast %68 : vector<1x256xf32> to vector<40x256xf32>
    %70 = arith.addf %67, %69 : vector<40x256xf32>
    %71 = arith.extf %1 : vector<40x256xbf16> to vector<40x256xf32>
    %72 = arith.addf %70, %71 : vector<40x256xf32>
    %c40_i32_48 = arith.constant 40 : i32
    %73 = arith.muli %arg1, %c40_i32_48 : i32
    %74 = tpu.iota {dimensions = array<i32: 0>} : vector<40x1xi32>
    %75 = vector.broadcast %73 : i32 to vector<40x1xi32>
    %76 = arith.addi %75, %74 : vector<40x1xi32>
    %c33_i32_49 = arith.constant 33 : i32
    %77 = vector.broadcast %c33_i32_49 : i32 to vector<40x1xi32>
    %78 = arith.cmpi slt, %76, %77 : vector<40x1xi32>
    %cst_50 = arith.constant 0.000000e+00 : f32
    %79 = vector.shape_cast %78 : vector<40x1xi1> to vector<40x1xi1>
    %80 = vector.broadcast %79 : vector<40x1xi1> to vector<40x256xi1>
    %81 = vector.broadcast %cst_50 : f32 to vector<40x256xf32>
    %82 = arith.select %80, %72, %81 : vector<40x256xi1>, vector<40x256xf32>
    %83 = arith.truncf %82 : vector<40x256xf32> to vector<40x256xbf16>
    %c0_51 = arith.constant 0 : index
    %c0_52 = arith.constant 0 : index
    %c0_53 = arith.constant 0 : index
    %84 = vector.load %arg11[%c0_51, %c0_52, %c0_53] : memref<1x40x256xbf16, #tpu.memory_space<vmem>>, vector<1x40x256xbf16>
    %85 = vector.shape_cast %84 : vector<1x40x256xbf16> to vector<40x256xbf16>
    %86 = vector.shape_cast %83 : vector<40x256xbf16> to vector<1x40x256xbf16>
    tpu.vector_store %arg11[%c0_51, %c0_52, %c0_53], %86 {strides = array<i32>} : memref<1x40x256xbf16, #tpu.memory_space<vmem>>, vector<1x40x256xbf16>,
    return
  }
  func.func @transform_0(%arg0: i32, %arg1: i32) -> (i32, i32, i32) {
    %c0_i32 = arith.constant 0 : i32
    %c0_i32_0 = arith.constant 0 : i32
    return %arg0, %arg1, %c0_i32 : i32, i32, i32
  }
  func.func @transform_1(%arg0: i32, %arg1: i32) -> (i32, i32, i32, i32) {
    %c0_i32 = arith.constant 0 : i32
    %c0_i32_0 = arith.constant 0 : i32
    %c0_i32_1 = arith.constant 0 : i32
    return %arg0, %arg1, %c0_i32, %c0_i32_0 : i32, i32, i32, i32
  }
  func.func @transform_2(%arg0: i32, %arg1: i32) -> (i32, i32, i32, i32) {
    %c0_i32 = arith.constant 0 : i32
    %c0_i32_0 = arith.constant 0 : i32
    %c0_i32_1 = arith.constant 0 : i32
    return %arg0, %arg1, %c0_i32, %c0_i32_0 : i32, i32, i32, i32
  }
  func.func @transform_3(%arg0: i32, %arg1: i32) -> (i32, i32, i32) {
    %c0_i32 = arith.constant 0 : i32
    %c0_i32_0 = arith.constant 0 : i32
    %c0_i32_1 = arith.constant 0 : i32
    %c0_i32_2 = arith.constant 0 : i32
    return %c0_i32, %c0_i32_0, %c0_i32_1 : i32, i32, i32
  }
  func.func @transform_4(%arg0: i32, %arg1: i32) -> (i32, i32) {
    %c0_i32 = arith.constant 0 : i32
    %c0_i32_0 = arith.constant 0 : i32
    %c0_i32_1 = arith.constant 0 : i32
    return %c0_i32, %c0_i32_0 : i32, i32
  }
  func.func @transform_5(%arg0: i32, %arg1: i32) -> (i32, i32) {
    %c0_i32 = arith.constant 0 : i32
    %c0_i32_0 = arith.constant 0 : i32
    %c0_i32_1 = arith.constant 0 : i32
    return %c0_i32, %c0_i32_0 : i32, i32
  }
  func.func @transform_6(%arg0: i32, %arg1: i32) -> (i32, i32, i32) {
    %c0_i32 = arith.constant 0 : i32
    %c0_i32_0 = arith.constant 0 : i32
    %c0_i32_1 = arith.constant 0 : i32
    %c0_i32_2 = arith.constant 0 : i32
    return %c0_i32, %c0_i32_0, %c0_i32_1 : i32, i32, i32
  }
  func.func @transform_7(%arg0: i32, %arg1: i32) -> (i32, i32) {
    %c0_i32 = arith.constant 0 : i32
    %c0_i32_0 = arith.constant 0 : i32
    %c0_i32_1 = arith.constant 0 : i32
    return %c0_i32, %c0_i32_0 : i32, i32
  }
  func.func @transform_8(%arg0: i32, %arg1: i32) -> (i32, i32) {
    %c0_i32 = arith.constant 0 : i32
    %c0_i32_0 = arith.constant 0 : i32
    %c0_i32_1 = arith.constant 0 : i32
    return %c0_i32, %c0_i32_0 : i32, i32
  }
  func.func @transform_9(%arg0: i32, %arg1: i32) -> (i32, i32, i32) {
    %c0_i32 = arith.constant 0 : i32
    %c0_i32_0 = arith.constant 0 : i32
    return %arg0, %arg1, %c0_i32 : i32, i32, i32
  }
}

module attributes {stable_mosaic.version = 11 : i64} {
  func.func @_resblock_kernel(%arg0: i32, %arg1: i32, %arg2: memref<1x40x128xbf16, #tpu.memory_space<vmem>>, %arg3: memref<1x1x2x128xbf16, #tpu.memory_space<vmem>>, %arg4: memref<1x1x2x128xbf16, #tpu.memory_space<vmem>>, %arg5: memref<3x128x128xbf16, #tpu.memory_space<vmem>>, %arg6: memref<1x128xf32, #tpu.memory_space<vmem>>, %arg7: memref<1x128xf32, #tpu.memory_space<vmem>>, %arg8: memref<3x128x128xbf16, #tpu.memory_space<vmem>>, %arg9: memref<1x128xf32, #tpu.memory_space<vmem>>, %arg10: memref<1x128xf32, #tpu.memory_space<vmem>>, %arg11: memref<1x40x128xbf16, #tpu.memory_space<vmem>>, %arg12: memref<56x128xbf16, #tpu.memory_space<vmem>>) attributes {dimension_semantics = [#tpu.dimension_semantics<parallel>, #tpu.dimension_semantics<parallel>], iteration_bounds = array<i64: 2, 1>, scalar_prefetch = 0 : i64, scratch_operands = 1 : i64, tpu.core_type = #tpu.core_type<tc>, window_params = [{transform_indices = @transform_0, window_bounds = array<i64: 1, 40, 128>}, {transform_indices = @transform_1, window_bounds = array<i64: 1, 1, 2, 128>}, {transform_indices = @transform_2, window_bounds = array<i64: 1, 1, 2, 128>}, {pipeline_mode = #tpu.pipeline_mode<synchronous>, transform_indices = @transform_3, window_bounds = array<i64: 3, 128, 128>}, {pipeline_mode = #tpu.pipeline_mode<synchronous>, transform_indices = @transform_4, window_bounds = array<i64: 1, 128>}, {pipeline_mode = #tpu.pipeline_mode<synchronous>, transform_indices = @transform_5, window_bounds = array<i64: 1, 128>}, {pipeline_mode = #tpu.pipeline_mode<synchronous>, transform_indices = @transform_6, window_bounds = array<i64: 3, 128, 128>}, {pipeline_mode = #tpu.pipeline_mode<synchronous>, transform_indices = @transform_7, window_bounds = array<i64: 1, 128>}, {pipeline_mode = #tpu.pipeline_mode<synchronous>, transform_indices = @transform_8, window_bounds = array<i64: 1, 128>}, {transform_indices = @transform_9, window_bounds = array<i64: 1, 40, 128>}]} {
    %c0 = arith.constant 0 : index
    %c0_0 = arith.constant 0 : index
    %c0_1 = arith.constant 0 : index
    %0 = vector.load %arg2[%c0, %c0_0, %c0_1] : memref<1x40x128xbf16, #tpu.memory_space<vmem>>, vector<1x40x128xbf16>
    %1 = vector.shape_cast %0 : vector<1x40x128xbf16> to vector<40x128xbf16>
    %c0_2 = arith.constant 0 : index
    %c0_3 = arith.constant 0 : index
    %c0_4 = arith.constant 0 : index
    %c0_5 = arith.constant 0 : index
    %2 = vector.load %arg3[%c0_2, %c0_3, %c0_4, %c0_5] : memref<1x1x2x128xbf16, #tpu.memory_space<vmem>>, vector<1x1x2x128xbf16>
    %3 = vector.shape_cast %2 : vector<1x1x2x128xbf16> to vector<2x128xbf16>
    %c6 = arith.constant 6 : index
    %c0_6 = arith.constant 0 : index
    %4 = vector.load %arg12[%c6, %c0_6] : memref<56x128xbf16, #tpu.memory_space<vmem>>, vector<2x128xbf16>
    tpu.vector_store %arg12[%c6, %c0_6], %3 {strides = array<i32>} : memref<56x128xbf16, #tpu.memory_space<vmem>>, vector<2x128xbf16>,
    %c8 = arith.constant 8 : index
    %c0_7 = arith.constant 0 : index
    %5 = vector.load %arg12[%c8, %c0_7] : memref<56x128xbf16, #tpu.memory_space<vmem>>, vector<40x128xbf16>
    tpu.vector_store %arg12[%c8, %c0_7], %1 {strides = array<i32>} : memref<56x128xbf16, #tpu.memory_space<vmem>>, vector<40x128xbf16>,
    %c0_8 = arith.constant 0 : index
    %c0_9 = arith.constant 0 : index
    %c0_10 = arith.constant 0 : index
    %c0_11 = arith.constant 0 : index
    %6 = vector.load %arg4[%c0_8, %c0_9, %c0_10, %c0_11] : memref<1x1x2x128xbf16, #tpu.memory_space<vmem>>, vector<1x1x2x128xbf16>
    %7 = vector.shape_cast %6 : vector<1x1x2x128xbf16> to vector<2x128xbf16>
    %c48 = arith.constant 48 : index
    %c0_12 = arith.constant 0 : index
    %8 = vector.load %arg12[%c48, %c0_12] : memref<56x128xbf16, #tpu.memory_space<vmem>>, vector<2x128xbf16>
    tpu.vector_store %arg12[%c48, %c0_12], %7 {strides = array<i32>} : memref<56x128xbf16, #tpu.memory_space<vmem>>, vector<2x128xbf16>,
    %c0_13 = arith.constant 0 : index
    %c0_14 = arith.constant 0 : index
    %9 = vector.load %arg12[%c0_13, %c0_14] : memref<56x128xbf16, #tpu.memory_space<vmem>>, vector<56x128xbf16>
    %cst = arith.constant 0.000000e+00 : f32
    %10 = vector.broadcast %cst : f32 to vector<42x128xf32>
    %11 = vector.extract_strided_slice %9 {offsets = [6, 0], sizes = [42, 128], strides = [1, 1]} : vector<56x128xbf16> to vector<42x128xbf16>
    %c0_15 = arith.constant 0 : index
    %c0_16 = arith.constant 0 : index
    %c0_17 = arith.constant 0 : index
    %12 = vector.load %arg5[%c0_15, %c0_16, %c0_17] : memref<3x128x128xbf16, #tpu.memory_space<vmem>>, vector<1x128x128xbf16>
    %13 = vector.shape_cast %12 : vector<1x128x128xbf16> to vector<128x128xbf16>
    %cst_18 = arith.constant dense<0.000000e+00> : vector<42x128xf32>
    %14 = tpu.matmul %11, %13, %cst_18 {dimension_numbers = #tpu.dot_dimension_numbers<[1], [0], [0], [1], [0, 0, 1, 1], [], []>} : vector<42x128xbf16>, vector<128x128xbf16>, vector<42x128xf32> -> vector<42x128xf32>
    %15 = arith.addf %10, %14 : vector<42x128xf32>
    %16 = vector.extract_strided_slice %9 {offsets = [7, 0], sizes = [42, 128], strides = [1, 1]} : vector<56x128xbf16> to vector<42x128xbf16>
    %c1 = arith.constant 1 : index
    %c0_19 = arith.constant 0 : index
    %c0_20 = arith.constant 0 : index
    %17 = vector.load %arg5[%c1, %c0_19, %c0_20] : memref<3x128x128xbf16, #tpu.memory_space<vmem>>, vector<1x128x128xbf16>
    %18 = vector.shape_cast %17 : vector<1x128x128xbf16> to vector<128x128xbf16>
    %cst_21 = arith.constant dense<0.000000e+00> : vector<42x128xf32>
    %19 = tpu.matmul %16, %18, %cst_21 {dimension_numbers = #tpu.dot_dimension_numbers<[1], [0], [0], [1], [0, 0, 1, 1], [], []>} : vector<42x128xbf16>, vector<128x128xbf16>, vector<42x128xf32> -> vector<42x128xf32>
    %20 = arith.addf %15, %19 : vector<42x128xf32>
    %21 = vector.extract_strided_slice %9 {offsets = [8, 0], sizes = [42, 128], strides = [1, 1]} : vector<56x128xbf16> to vector<42x128xbf16>
    %c2 = arith.constant 2 : index
    %c0_22 = arith.constant 0 : index
    %c0_23 = arith.constant 0 : index
    %22 = vector.load %arg5[%c2, %c0_22, %c0_23] : memref<3x128x128xbf16, #tpu.memory_space<vmem>>, vector<1x128x128xbf16>
    %23 = vector.shape_cast %22 : vector<1x128x128xbf16> to vector<128x128xbf16>
    %cst_24 = arith.constant dense<0.000000e+00> : vector<42x128xf32>
    %24 = tpu.matmul %21, %23, %cst_24 {dimension_numbers = #tpu.dot_dimension_numbers<[1], [0], [0], [1], [0, 0, 1, 1], [], []>} : vector<42x128xbf16>, vector<128x128xbf16>, vector<42x128xf32> -> vector<42x128xf32>
    %25 = arith.addf %20, %24 : vector<42x128xf32>
    %c0_25 = arith.constant 0 : index
    %c0_26 = arith.constant 0 : index
    %26 = vector.load %arg6[%c0_25, %c0_26] : memref<1x128xf32, #tpu.memory_space<vmem>>, vector<1x128xf32>
    %27 = vector.broadcast %26 : vector<1x128xf32> to vector<42x128xf32>
    %28 = arith.mulf %25, %27 : vector<42x128xf32>
    %c0_27 = arith.constant 0 : index
    %c0_28 = arith.constant 0 : index
    %29 = vector.load %arg7[%c0_27, %c0_28] : memref<1x128xf32, #tpu.memory_space<vmem>>, vector<1x128xf32>
    %30 = vector.broadcast %29 : vector<1x128xf32> to vector<42x128xf32>
    %31 = arith.addf %28, %30 : vector<42x128xf32>
    %cst_29 = arith.constant 0.000000e+00 : f32
    %32 = vector.broadcast %cst_29 : f32 to vector<42x128xf32>
    %33 = arith.maximumf %31, %32 : vector<42x128xf32>
    %c40_i32 = arith.constant 40 : i32
    %34 = arith.muli %arg1, %c40_i32 : i32
    %c1_i32 = arith.constant 1 : i32
    %35 = arith.subi %34, %c1_i32 : i32
    %36 = tpu.iota {dimensions = array<i32: 0>} : vector<42x1xi32>
    %37 = vector.broadcast %35 : i32 to vector<42x1xi32>
    %38 = arith.addi %37, %36 : vector<42x1xi32>
    %c0_i32 = arith.constant 0 : i32
    %39 = vector.broadcast %c0_i32 : i32 to vector<42x1xi32>
    %40 = arith.cmpi sge, %38, %39 : vector<42x1xi32>
    %c33_i32 = arith.constant 33 : i32
    %41 = vector.broadcast %c33_i32 : i32 to vector<42x1xi32>
    %42 = arith.cmpi slt, %38, %41 : vector<42x1xi32>
    %43 = arith.andi %40, %42 : vector<42x1xi1>
    %cst_30 = arith.constant 0.000000e+00 : f32
    %44 = vector.shape_cast %43 : vector<42x1xi1> to vector<42x1xi1>
    %45 = vector.broadcast %44 : vector<42x1xi1> to vector<42x128xi1>
    %46 = vector.broadcast %cst_30 : f32 to vector<42x128xf32>
    %47 = arith.select %45, %33, %46 : vector<42x128xi1>, vector<42x128xf32>
    %48 = arith.truncf %47 : vector<42x128xf32> to vector<42x128xbf16>
    %cst_31 = arith.constant 0.000000e+00 : f32
    %49 = vector.broadcast %cst_31 : f32 to vector<40x128xf32>
    %50 = vector.extract_strided_slice %48 {offsets = [0, 0], sizes = [40, 128], strides = [1, 1]} : vector<42x128xbf16> to vector<40x128xbf16>
    %c0_32 = arith.constant 0 : index
    %c0_33 = arith.constant 0 : index
    %c0_34 = arith.constant 0 : index
    %51 = vector.load %arg8[%c0_32, %c0_33, %c0_34] : memref<3x128x128xbf16, #tpu.memory_space<vmem>>, vector<1x128x128xbf16>
    %52 = vector.shape_cast %51 : vector<1x128x128xbf16> to vector<128x128xbf16>
    %cst_35 = arith.constant dense<0.000000e+00> : vector<40x128xf32>
    %53 = tpu.matmul %50, %52, %cst_35 {dimension_numbers = #tpu.dot_dimension_numbers<[1], [0], [0], [1], [0, 0, 1, 1], [], []>} : vector<40x128xbf16>, vector<128x128xbf16>, vector<40x128xf32> -> vector<40x128xf32>
    %54 = arith.addf %49, %53 : vector<40x128xf32>
    %55 = vector.extract_strided_slice %48 {offsets = [1, 0], sizes = [40, 128], strides = [1, 1]} : vector<42x128xbf16> to vector<40x128xbf16>
    %c1_36 = arith.constant 1 : index
    %c0_37 = arith.constant 0 : index
    %c0_38 = arith.constant 0 : index
    %56 = vector.load %arg8[%c1_36, %c0_37, %c0_38] : memref<3x128x128xbf16, #tpu.memory_space<vmem>>, vector<1x128x128xbf16>
    %57 = vector.shape_cast %56 : vector<1x128x128xbf16> to vector<128x128xbf16>
    %cst_39 = arith.constant dense<0.000000e+00> : vector<40x128xf32>
    %58 = tpu.matmul %55, %57, %cst_39 {dimension_numbers = #tpu.dot_dimension_numbers<[1], [0], [0], [1], [0, 0, 1, 1], [], []>} : vector<40x128xbf16>, vector<128x128xbf16>, vector<40x128xf32> -> vector<40x128xf32>
    %59 = arith.addf %54, %58 : vector<40x128xf32>
    %60 = vector.extract_strided_slice %48 {offsets = [2, 0], sizes = [40, 128], strides = [1, 1]} : vector<42x128xbf16> to vector<40x128xbf16>
    %c2_40 = arith.constant 2 : index
    %c0_41 = arith.constant 0 : index
    %c0_42 = arith.constant 0 : index
    %61 = vector.load %arg8[%c2_40, %c0_41, %c0_42] : memref<3x128x128xbf16, #tpu.memory_space<vmem>>, vector<1x128x128xbf16>
    %62 = vector.shape_cast %61 : vector<1x128x128xbf16> to vector<128x128xbf16>
    %cst_43 = arith.constant dense<0.000000e+00> : vector<40x128xf32>
    %63 = tpu.matmul %60, %62, %cst_43 {dimension_numbers = #tpu.dot_dimension_numbers<[1], [0], [0], [1], [0, 0, 1, 1], [], []>} : vector<40x128xbf16>, vector<128x128xbf16>, vector<40x128xf32> -> vector<40x128xf32>
    %64 = arith.addf %59, %63 : vector<40x128xf32>
    %c0_44 = arith.constant 0 : index
    %c0_45 = arith.constant 0 : index
    %65 = vector.load %arg9[%c0_44, %c0_45] : memref<1x128xf32, #tpu.memory_space<vmem>>, vector<1x128xf32>
    %66 = vector.broadcast %65 : vector<1x128xf32> to vector<40x128xf32>
    %67 = arith.mulf %64, %66 : vector<40x128xf32>
    %c0_46 = arith.constant 0 : index
    %c0_47 = arith.constant 0 : index
    %68 = vector.load %arg10[%c0_46, %c0_47] : memref<1x128xf32, #tpu.memory_space<vmem>>, vector<1x128xf32>
    %69 = vector.broadcast %68 : vector<1x128xf32> to vector<40x128xf32>
    %70 = arith.addf %67, %69 : vector<40x128xf32>
    %71 = arith.extf %1 : vector<40x128xbf16> to vector<40x128xf32>
    %72 = arith.addf %70, %71 : vector<40x128xf32>
    %c40_i32_48 = arith.constant 40 : i32
    %73 = arith.muli %arg1, %c40_i32_48 : i32
    %74 = tpu.iota {dimensions = array<i32: 0>} : vector<40x1xi32>
    %75 = vector.broadcast %73 : i32 to vector<40x1xi32>
    %76 = arith.addi %75, %74 : vector<40x1xi32>
    %c33_i32_49 = arith.constant 33 : i32
    %77 = vector.broadcast %c33_i32_49 : i32 to vector<40x1xi32>
    %78 = arith.cmpi slt, %76, %77 : vector<40x1xi32>
    %cst_50 = arith.constant 0.000000e+00 : f32
    %79 = vector.shape_cast %78 : vector<40x1xi1> to vector<40x1xi1>
    %80 = vector.broadcast %79 : vector<40x1xi1> to vector<40x128xi1>
    %81 = vector.broadcast %cst_50 : f32 to vector<40x128xf32>
    %82 = arith.select %80, %72, %81 : vector<40x128xi1>, vector<40x128xf32>
    %83 = arith.truncf %82 : vector<40x128xf32> to vector<40x128xbf16>
    %c0_51 = arith.constant 0 : index
    %c0_52 = arith.constant 0 : index
    %c0_53 = arith.constant 0 : index
    %84 = vector.load %arg11[%c0_51, %c0_52, %c0_53] : memref<1x40x128xbf16, #tpu.memory_space<vmem>>, vector<1x40x128xbf16>
    %85 = vector.shape_cast %84 : vector<1x40x128xbf16> to vector<40x128xbf16>
    %86 = vector.shape_cast %83 : vector<40x128xbf16> to vector<1x40x128xbf16>
    tpu.vector_store %arg11[%c0_51, %c0_52, %c0_53], %86 {strides = array<i32>} : memref<1x40x128xbf16, #tpu.memory_space<vmem>>, vector<1x40x128xbf16>,
    return
  }
  func.func @transform_0(%arg0: i32, %arg1: i32) -> (i32, i32, i32) {
    %c0_i32 = arith.constant 0 : i32
    %c0_i32_0 = arith.constant 0 : i32
    return %arg0, %arg1, %c0_i32 : i32, i32, i32
  }
  func.func @transform_1(%arg0: i32, %arg1: i32) -> (i32, i32, i32, i32) {
    %c0_i32 = arith.constant 0 : i32
    %c0_i32_0 = arith.constant 0 : i32
    %c0_i32_1 = arith.constant 0 : i32
    return %arg0, %arg1, %c0_i32, %c0_i32_0 : i32, i32, i32, i32
  }
  func.func @transform_2(%arg0: i32, %arg1: i32) -> (i32, i32, i32, i32) {
    %c0_i32 = arith.constant 0 : i32
    %c0_i32_0 = arith.constant 0 : i32
    %c0_i32_1 = arith.constant 0 : i32
    return %arg0, %arg1, %c0_i32, %c0_i32_0 : i32, i32, i32, i32
  }
  func.func @transform_3(%arg0: i32, %arg1: i32) -> (i32, i32, i32) {
    %c0_i32 = arith.constant 0 : i32
    %c0_i32_0 = arith.constant 0 : i32
    %c0_i32_1 = arith.constant 0 : i32
    %c0_i32_2 = arith.constant 0 : i32
    return %c0_i32, %c0_i32_0, %c0_i32_1 : i32, i32, i32
  }
  func.func @transform_4(%arg0: i32, %arg1: i32) -> (i32, i32) {
    %c0_i32 = arith.constant 0 : i32
    %c0_i32_0 = arith.constant 0 : i32
    %c0_i32_1 = arith.constant 0 : i32
    return %c0_i32, %c0_i32_0 : i32, i32
  }
  func.func @transform_5(%arg0: i32, %arg1: i32) -> (i32, i32) {
    %c0_i32 = arith.constant 0 : i32
    %c0_i32_0 = arith.constant 0 : i32
    %c0_i32_1 = arith.constant 0 : i32
    return %c0_i32, %c0_i32_0 : i32, i32
  }
  func.func @transform_6(%arg0: i32, %arg1: i32) -> (i32, i32, i32) {
    %c0_i32 = arith.constant 0 : i32
    %c0_i32_0 = arith.constant 0 : i32
    %c0_i32_1 = arith.constant 0 : i32
    %c0_i32_2 = arith.constant 0 : i32
    return %c0_i32, %c0_i32_0, %c0_i32_1 : i32, i32, i32
  }
  func.func @transform_7(%arg0: i32, %arg1: i32) -> (i32, i32) {
    %c0_i32 = arith.constant 0 : i32
    %c0_i32_0 = arith.constant 0 : i32
    %c0_i32_1 = arith.constant 0 : i32
    return %c0_i32, %c0_i32_0 : i32, i32
  }
  func.func @transform_8(%arg0: i32, %arg1: i32) -> (i32, i32) {
    %c0_i32 = arith.constant 0 : i32
    %c0_i32_0 = arith.constant 0 : i32
    %c0_i32_1 = arith.constant 0 : i32
    return %c0_i32, %c0_i32_0 : i32, i32
  }
  func.func @transform_9(%arg0: i32, %arg1: i32) -> (i32, i32, i32) {
    %c0_i32 = arith.constant 0 : i32
    %c0_i32_0 = arith.constant 0 : i32
    return %arg0, %arg1, %c0_i32 : i32, i32, i32
  }
}

module attributes {stable_mosaic.version = 11 : i64} {
  func.func @_matmul_kernel(%arg0: i32, %arg1: memref<32x128xbf16, #tpu.memory_space<vmem>>, %arg2: memref<128x768xbf16, #tpu.memory_space<vmem>>, %arg3: memref<1x768xf32, #tpu.memory_space<vmem>>, %arg4: memref<1x768xf32, #tpu.memory_space<vmem>>, %arg5: memref<32x768xf32, #tpu.memory_space<vmem>>) attributes {dimension_semantics = [#tpu.dimension_semantics<parallel>], iteration_bounds = array<i64: 1>, scalar_prefetch = 0 : i64, scratch_operands = 0 : i64, tpu.core_type = #tpu.core_type<tc>, window_params = [{transform_indices = @transform_0, window_bounds = array<i64: 32, 128>}, {pipeline_mode = #tpu.pipeline_mode<synchronous>, transform_indices = @transform_1, window_bounds = array<i64: 128, 768>}, {pipeline_mode = #tpu.pipeline_mode<synchronous>, transform_indices = @transform_2, window_bounds = array<i64: 1, 768>}, {pipeline_mode = #tpu.pipeline_mode<synchronous>, transform_indices = @transform_3, window_bounds = array<i64: 1, 768>}, {transform_indices = @transform_4, window_bounds = array<i64: 32, 768>}]} {
    %c0 = arith.constant 0 : index
    %c0_0 = arith.constant 0 : index
    %0 = vector.load %arg1[%c0, %c0_0] : memref<32x128xbf16, #tpu.memory_space<vmem>>, vector<32x128xbf16>
    %c0_1 = arith.constant 0 : index
    %c0_2 = arith.constant 0 : index
    %1 = vector.load %arg2[%c0_1, %c0_2] : memref<128x768xbf16, #tpu.memory_space<vmem>>, vector<128x768xbf16>
    %cst = arith.constant dense<0.000000e+00> : vector<32x768xf32>
    %2 = tpu.matmul %0, %1, %cst {dimension_numbers = #tpu.dot_dimension_numbers<[1], [0], [0], [1], [0, 0, 1, 1], [], []>} : vector<32x128xbf16>, vector<128x768xbf16>, vector<32x768xf32> -> vector<32x768xf32>
    %c0_3 = arith.constant 0 : index
    %c0_4 = arith.constant 0 : index
    %3 = vector.load %arg3[%c0_3, %c0_4] : memref<1x768xf32, #tpu.memory_space<vmem>>, vector<1x768xf32>
    %4 = vector.broadcast %3 : vector<1x768xf32> to vector<32x768xf32>
    %5 = arith.mulf %2, %4 : vector<32x768xf32>
    %c0_5 = arith.constant 0 : index
    %c0_6 = arith.constant 0 : index
    %6 = vector.load %arg4[%c0_5, %c0_6] : memref<1x768xf32, #tpu.memory_space<vmem>>, vector<1x768xf32>
    %7 = vector.broadcast %6 : vector<1x768xf32> to vector<32x768xf32>
    %8 = arith.addf %5, %7 : vector<32x768xf32>
    %c0_7 = arith.constant 0 : index
    %c0_8 = arith.constant 0 : index
    %9 = vector.load %arg5[%c0_7, %c0_8] : memref<32x768xf32, #tpu.memory_space<vmem>>, vector<32x768xf32>
    tpu.vector_store %arg5[%c0_7, %c0_8], %8 {strides = array<i32>} : memref<32x768xf32, #tpu.memory_space<vmem>>, vector<32x768xf32>,
    return
  }
  func.func @transform_0(%arg0: i32) -> (i32, i32) {
    %c0_i32 = arith.constant 0 : i32
    %c0_i32_0 = arith.constant 0 : i32
    return %arg0, %c0_i32 : i32, i32
  }
  func.func @transform_1(%arg0: i32) -> (i32, i32) {
    %c0_i32 = arith.constant 0 : i32
    %c0_i32_0 = arith.constant 0 : i32
    %c0_i32_1 = arith.constant 0 : i32
    return %c0_i32, %c0_i32_0 : i32, i32
  }
  func.func @transform_2(%arg0: i32) -> (i32, i32) {
    %c0_i32 = arith.constant 0 : i32
    %c0_i32_0 = arith.constant 0 : i32
    %c0_i32_1 = arith.constant 0 : i32
    return %c0_i32, %c0_i32_0 : i32, i32
  }
  func.func @transform_3(%arg0: i32) -> (i32, i32) {
    %c0_i32 = arith.constant 0 : i32
    %c0_i32_0 = arith.constant 0 : i32
    %c0_i32_1 = arith.constant 0 : i32
    return %c0_i32, %c0_i32_0 : i32, i32
  }
  func.func @transform_4(%arg0: i32) -> (i32, i32) {
    %c0_i32 = arith.constant 0 : i32
    %c0_i32_0 = arith.constant 0 : i32
    return %arg0, %c0_i32 : i32, i32
  }
}

</mosaic_0001>

<llo_original>
// kernel: conv_encoder_forward.5
$region0: #{conv_encoder_forward.5}
  #allocation0 [shape = 'u32[]', space=smem, size = 0x4, offset = 0x4, fixed_abs, tag = 'smem constant byte address 0x4 - core index']
  #allocation1 [shape = 'u32[72,128]{1,0:T(1,128)}', space=vmem, size = 0x9000, scoped, tag = 'internal scratch']
  %s0 = inlined_call_operand.vmem [shape: f32[72,128], index: 0, kind: input, shape index: {}]
  %s1 = inlined_call_operand.vmem [shape: f32[128,128], index: 1, kind: input, shape index: {}]
  %s2 = inlined_call_operand.vmem [shape: f32[1,128], index: 2, kind: input, shape index: {}]
  %s3 = inlined_call_operand.vmem [shape: f32[1,128], index: 3, kind: input, shape index: {}]
  %s4 = inlined_call_operand.vmem [shape: bf16[72,128], index: 4, kind: output, shape index: {}]
  %s5 = sld [smem:[#allocation0]]
  $region26: #{conv_encoder_forward.5} parent=0
    _
  %s7 = ssub.s32 1, %s5
  %s8 = scalar_select 0, %s7, %s5
  // Predicated region
  $region2: #{conv_encoder_forward.5} parent=0 // pred_check
    _
  $region3: #{conv_encoder_forward.5} parent=0 // pred_check_branch
    %10 = sbr.rel (0) target = $region5
  $region4: #{conv_encoder_forward.5} parent=0 // pred_region
    _
  $region5: #{conv_encoder_forward.5} parent=0 // pred_fallthru
    _
  // Predicated region
  $region6: #{conv_encoder_forward.5} parent=0 // pred_check
    _
  $region7: #{conv_encoder_forward.5} parent=0 // pred_check_branch
    %12 = sbr.rel (0) target = $region9
  $region8: #{conv_encoder_forward.5} parent=0 // pred_region
    _
  $region9: #{conv_encoder_forward.5} parent=0 // pred_fallthru
    _
  // Predicated region
  $region10: #{conv_encoder_forward.5} parent=0 // pred_check
    _
  $region11: #{conv_encoder_forward.5} parent=0 // pred_check_branch
    %14 = sbr.rel (0) target = $region13
  $region12: #{conv_encoder_forward.5} parent=0 // pred_region
    _
  $region13: #{conv_encoder_forward.5} parent=0 // pred_fallthru
    _
  // Predicated region
  $region14: #{conv_encoder_forward.5} parent=0 // pred_check
    _
  $region15: #{conv_encoder_forward.5} parent=0 // pred_check_branch
    %16 = sbr.rel (0) target = $region17
  $region16: #{conv_encoder_forward.5} parent=0 // pred_region
    _
  $region17: #{conv_encoder_forward.5} parent=0 // pred_fallthru
    _
  %v17 = vld [vmem:[%s0] sm:$0xff]
  %v18 = vld [vmem:[%s0 + $0x8] sm:$0xff]
  %v19 = vld [vmem:[%s0 + $0x10] sm:$0xff]
  %v20 = vld [vmem:[%s0 + $0x18] sm:$0xff]
  %v21 = vld [vmem:[%s0 + $0x20] sm:$0xff]
  %v22 = vld [vmem:[%s0 + $0x28] sm:$0xff]
  %v23 = vld [vmem:[%s0 + $0x30] sm:$0xff]
  %v24 = vld [vmem:[%s0 + $0x38] sm:$0xff]
  %v25 = vld [vmem:[%s0 + $0x40] sm:$0xff]
  %v26 = vld [vmem:[%s1] sm:$0xff]
  %v27 = vld [vmem:[%s1 + $0x8] sm:$0xff]
  %v28 = vld [vmem:[%s1 + $0x10] sm:$0xff]
  %v29 = vld [vmem:[%s1 + $0x18] sm:$0xff]
  %v30 = vld [vmem:[%s1 + $0x20] sm:$0xff]
  %v31 = vld [vmem:[%s1 + $0x28] sm:$0xff]
  %v32 = vld [vmem:[%s1 + $0x30] sm:$0xff]
  %v33 = vld [vmem:[%s1 + $0x38] sm:$0xff]
  %v34 = vld [vmem:[%s1 + $0x40] sm:$0xff]
  %v35 = vld [vmem:[%s1 + $0x48] sm:$0xff]
  %v36 = vld [vmem:[%s1 + $0x50] sm:$0xff]
  %v37 = vld [vmem:[%s1 + $0x58] sm:$0xff]
  %v38 = vld [vmem:[%s1 + $0x60] sm:$0xff]
  %v39 = vld [vmem:[%s1 + $0x68] sm:$0xff]
  %v40 = vld [vmem:[%s1 + $0x70] sm:$0xff]
  %v41 = vld [vmem:[%s1 + $0x78] sm:$0xff]
  %42 = vmatpush.msra.mxu0 %v41
  %43 = vmatpush.msra.mxu0 %v40
  %44 = vmatpush.msra.mxu0 %v39
  %45 = vmatpush.msra.mxu0 %v38
  %46 = vmatpush.msra.mxu0 %v37
  %47 = vmatpush.msra.mxu0 %v36
  %48 = vmatpush.msra.mxu0 %v35
  %49 = vmatpush.msra.mxu0 %v34
  %50 = vmatpush.msra.mxu0 %v33
  %51 = vmatpush.msra.mxu0 %v32
  %52 = vmatpush.msra.mxu0 %v31
  %53 = vmatpush.msra.mxu0 %v30
  %54 = vmatpush.msra.mxu0 %v29
  %55 = vmatpush.msra.mxu0 %v28
  %56 = vmatpush.msra.mxu0 %v27
  %57 = vmatpush.msra.mxu0 %v26
  %58 = vmatmul.f32.gmra.mxu0 %v17
  %v59 = vpop.f32.mrf.mxu0
  %v60 = vadd.f32 0.0, %v59
  %61 = vmatmul.f32.gmra.mxu0 %v18
  %v62 = vpop.f32.mrf.mxu0
  %v63 = vadd.f32 0.0, %v62
  %64 = vmatmul.f32.gmra.mxu0 %v19
  %v65 = vpop.f32.mrf.mxu0
  %v66 = vadd.f32 0.0, %v65
  %67 = vmatmul.f32.gmra.mxu0 %v20
  %v68 = vpop.f32.mrf.mxu0
  %v69 = vadd.f32 0.0, %v68
  %70 = vmatmul.f32.gmra.mxu0 %v21
  %v71 = vpop.f32.mrf.mxu0
  %v72 = vadd.f32 0.0, %v71
  %73 = vmatmul.f32.gmra.mxu0 %v22
  %v74 = vpop.f32.mrf.mxu0
  %v75 = vadd.f32 0.0, %v74
  %76 = vmatmul.f32.gmra.mxu0 %v23
  %v77 = vpop.f32.mrf.mxu0
  %v78 = vadd.f32 0.0, %v77
  %79 = vmatmul.f32.gmra.mxu0 %v24
  %v80 = vpop.f32.mrf.mxu0
  %v81 = vadd.f32 0.0, %v80
  %82 = vmatmul.f32.gmra.mxu0 %v25
  %v83 = vpop.f32.mrf.mxu0
  %v84 = vadd.f32 0.0, %v83
  %85 = vdwg.mxu0
  %v86 = vld [vmem:[%s2] sm:$0x1]
  %v88 = vperm.slane %v86, 0
  %v90 = vmul.f32 %v60, %v88
  %v91 = vmul.f32 %v63, %v88
  %v92 = vmul.f32 %v66, %v88
  %v93 = vmul.f32 %v69, %v88
  %v94 = vmul.f32 %v72, %v88
  %v95 = vmul.f32 %v75, %v88
  %v96 = vmul.f32 %v78, %v88
  %v97 = vmul.f32 %v81, %v88
  %v98 = vmul.f32 %v84, %v88
  %v99 = vld [vmem:[%s3] sm:$0x1]
  %v101 = vperm.slane %v99, 0
  %v103 = vadd.f32 %v90, %v101
  %v104 = vadd.f32 %v91, %v101
  %v105 = vadd.f32 %v92, %v101
  %v106 = vadd.f32 %v93, %v101
  %v107 = vadd.f32 %v94, %v101
  %v108 = vadd.f32 %v95, %v101
  %v109 = vadd.f32 %v96, %v101
  %v110 = vadd.f32 %v97, %v101
  %v111 = vadd.f32 %v98, %v101
  %v112 = vadd.f32 %v103, 1e-10
  %v113 = vadd.f32 %v104, 1e-10
  %v114 = vadd.f32 %v105, 1e-10
  %v115 = vadd.f32 %v106, 1e-10
  %v116 = vadd.f32 %v107, 1e-10
  %v117 = vadd.f32 %v108, 1e-10
  %v118 = vadd.f32 %v109, 1e-10
  %v119 = vadd.f32 %v110, 1e-10
  %v120 = vadd.f32 %v111, 1e-10
  %v121 = vlog2.pop %v112
  %v122 = vmul.f32 %v121, 0.6931472
  %v123 = vlog2.pop %v113
  %v124 = vmul.f32 %v123, 0.6931472
  %v125 = vlog2.pop %v114
  %v126 = vmul.f32 %v125, 0.6931472
  %v127 = vlog2.pop %v115
  %v128 = vmul.f32 %v127, 0.6931472
  %v129 = vlog2.pop %v116
  %v130 = vmul.f32 %v129, 0.6931472
  %v131 = vlog2.pop %v117
  %v132 = vmul.f32 %v131, 0.6931472
  %v133 = vlog2.pop %v118
  %v134 = vmul.f32 %v133, 0.6931472
  %v135 = vlog2.pop %v119
  %v136 = vmul.f32 %v135, 0.6931472
  %v137 = vlog2.pop %v120
  %v138 = vmul.f32 %v137, 0.6931472
  %v139 = vpack.c.bf16 %v122, %v122
  %v140 = vpack.c.bf16 %v124, %v124
  %v141 = vpack.c.bf16 %v126, %v126
  %v142 = vpack.c.bf16 %v128, %v128
  %v143 = vpack.c.bf16 %v130, %v130
  %v144 = vpack.c.bf16 %v132, %v132
  %v145 = vpack.c.bf16 %v134, %v134
  %v146 = vpack.c.bf16 %v136, %v136
  %v147 = vpack.c.bf16 %v138, %v138
  %148 = vst [vmem:[%s4] sm:$0xf] %v139
  %149 = vst [vmem:[%s4 + $0x4] sm:$0xf] %v140
  %150 = vst [vmem:[%s4 + $0x8] sm:$0xf] %v141
  %151 = vst [vmem:[%s4 + $0xc] sm:$0xf] %v142
  %152 = vst [vmem:[%s4 + $0x10] sm:$0xf] %v143
  %153 = vst [vmem:[%s4 + $0x14] sm:$0xf] %v144
  %154 = vst [vmem:[%s4 + $0x18] sm:$0xf] %v145
  %155 = vst [vmem:[%s4 + $0x1c] sm:$0xf] %v146
  %156 = vst [vmem:[%s4 + $0x20] sm:$0xf] %v147
  // Predicated region
  $region18: #{conv_encoder_forward.5} parent=0 // pred_check
    _
  $region19: #{conv_encoder_forward.5} parent=0 // pred_check_branch
    %158 = sbr.rel (0) target = $region21
  $region20: #{conv_encoder_forward.5} parent=0 // pred_region
    _
  $region21: #{conv_encoder_forward.5} parent=0 // pred_fallthru
    _
  // Predicated region
  $region22: #{conv_encoder_forward.5} parent=0 // pred_check
    _
  $region23: #{conv_encoder_forward.5} parent=0 // pred_check_branch
    %160 = sbr.rel (0) target = $region25
  $region24: #{conv_encoder_forward.5} parent=0 // pred_region
    _
  $region25: #{conv_encoder_forward.5} parent=0 // pred_fallthru
    _

// kernel: conv_encoder_forward.6
$region0: #{conv_encoder_forward.6}
  #allocation0 [shape = 'u32[]', space=smem, size = 0x4, offset = 0x4, fixed_abs, tag = 'smem constant byte address 0x4 - core index']
  #allocation1 [shape = 'u32[72,128]{1,0:T(1,128)}', space=vmem, size = 0x9000, scoped, tag = 'internal scratch']
  %s0 = inlined_call_operand.vmem [shape: bf16[72,128], index: 0, kind: input, shape index: {}]
  %s1 = inlined_call_operand.vmem [shape: bf16[128,512], index: 1, kind: input, shape index: {}]
  %s2 = inlined_call_operand.vmem [shape: f32[1,512], index: 2, kind: input, shape index: {}]
  %s3 = inlined_call_operand.vmem [shape: f32[1,512], index: 3, kind: input, shape index: {}]
  %s4 = inlined_call_operand.vmem [shape: bf16[72,512], index: 4, kind: output, shape index: {}]
  %s5 = sld [smem:[#allocation0]]
  $region26: #{conv_encoder_forward.6} parent=0
    _
  %s7 = ssub.s32 1, %s5
  %s8 = scalar_select 0, %s7, %s5
  // Predicated region
  $region2: #{conv_encoder_forward.6} parent=0 // pred_check
    _
  $region3: #{conv_encoder_forward.6} parent=0 // pred_check_branch
    %10 = sbr.rel (0) target = $region5
  $region4: #{conv_encoder_forward.6} parent=0 // pred_region
    _
  $region5: #{conv_encoder_forward.6} parent=0 // pred_fallthru
    _
  // Predicated region
  $region6: #{conv_encoder_forward.6} parent=0 // pred_check
    _
  $region7: #{conv_encoder_forward.6} parent=0 // pred_check_branch
    %12 = sbr.rel (0) target = $region9
  $region8: #{conv_encoder_forward.6} parent=0 // pred_region
    _
  $region9: #{conv_encoder_forward.6} parent=0 // pred_fallthru
    _
  // Predicated region
  $region10: #{conv_encoder_forward.6} parent=0 // pred_check
    _
  $region11: #{conv_encoder_forward.6} parent=0 // pred_check_branch
    %14 = sbr.rel (0) target = $region13
  $region12: #{conv_encoder_forward.6} parent=0 // pred_region
    _
  $region13: #{conv_encoder_forward.6} parent=0 // pred_fallthru
    _
  // Predicated region
  $region14: #{conv_encoder_forward.6} parent=0 // pred_check
    _
  $region15: #{conv_encoder_forward.6} parent=0 // pred_check_branch
    %16 = sbr.rel (0) target = $region17
  $region16: #{conv_encoder_forward.6} parent=0 // pred_region
    _
  $region17: #{conv_encoder_forward.6} parent=0 // pred_fallthru
    _
  %v17 = vld [vmem:[%s0] sm:$0xf]
  %v18 = vld [vmem:[%s0 + $0x4] sm:$0xf]
  %v19 = vld [vmem:[%s0 + $0x8] sm:$0xf]
  %v20 = vld [vmem:[%s0 + $0xc] sm:$0xf]
  %v21 = vld [vmem:[%s0 + $0x10] sm:$0xf]
  %v22 = vld [vmem:[%s0 + $0x14] sm:$0xf]
  %v23 = vld [vmem:[%s0 + $0x18] sm:$0xf]
  %v24 = vld [vmem:[%s0 + $0x1c] sm:$0xf]
  %v25 = vld [vmem:[%s0 + $0x20] sm:$0xf]
  %v26 = vld [vmem:[%s1] sm:$0xff]
  %v27 = vld [vmem:[%s1 + $0x8] sm:$0xff]
  %v28 = vld [vmem:[%s1 + $0x10] sm:$0xff]
  %v29 = vld [vmem:[%s1 + $0x18] sm:$0xff]
  %v30 = vld [vmem:[%s1 + $0x20] sm:$0xff]
  %v31 = vld [vmem:[%s1 + $0x28] sm:$0xff]
  %v32 = vld [vmem:[%s1 + $0x30] sm:$0xff]
  %v33 = vld [vmem:[%s1 + $0x38] sm:$0xff]
  %v34 = vld [vmem:[%s1 + $0x40] sm:$0xff]
  %v35 = vld [vmem:[%s1 + $0x48] sm:$0xff]
  %v36 = vld [vmem:[%s1 + $0x50] sm:$0xff]
  %v37 = vld [vmem:[%s1 + $0x58] sm:$0xff]
  %v38 = vld [vmem:[%s1 + $0x60] sm:$0xff]
  %v39 = vld [vmem:[%s1 + $0x68] sm:$0xff]
  %v40 = vld [vmem:[%s1 + $0x70] sm:$0xff]
  %v41 = vld [vmem:[%s1 + $0x78] sm:$0xff]
  %v42 = vld [vmem:[%s1 + $0x80] sm:$0xff]
  %v43 = vld [vmem:[%s1 + $0x88] sm:$0xff]
  %v44 = vld [vmem:[%s1 + $0x90] sm:$0xff]
  %v45 = vld [vmem:[%s1 + $0x98] sm:$0xff]
  %v46 = vld [vmem:[%s1 + $0xa0] sm:$0xff]
  %v47 = vld [vmem:[%s1 + $0xa8] sm:$0xff]
  %v48 = vld [vmem:[%s1 + $0xb0] sm:$0xff]
  %v49 = vld [vmem:[%s1 + $0xb8] sm:$0xff]
  %v50 = vld [vmem:[%s1 + $0xc0] sm:$0xff]
  %v51 = vld [vmem:[%s1 + $0xc8] sm:$0xff]
  %v52 = vld [vmem:[%s1 + $0xd0] sm:$0xff]
  %v53 = vld [vmem:[%s1 + $0xd8] sm:$0xff]
  %v54 = vld [vmem:[%s1 + $0xe0] sm:$0xff]
  %v55 = vld [vmem:[%s1 + $0xe8] sm:$0xff]
  %v56 = vld [vmem:[%s1 + $0xf0] sm:$0xff]
  %v57 = vld [vmem:[%s1 + $0xf8] sm:$0xff]
  %v67 = vunpack.c.l.b16 %v17
  %v68 = vunpack.c.l.b16 %v18
  %v69 = vunpack.c.l.b16 %v19
  %v70 = vunpack.c.l.b16 %v20
  %v71 = vunpack.c.l.b16 %v21
  %v72 = vunpack.c.l.b16 %v22
  %v73 = vunpack.c.l.b16 %v23
  %v74 = vunpack.c.l.b16 %v24
  %v75 = vunpack.c.l.b16 %v25
  %v76 = vpack.c.b16 %v68, %v67
  %v77 = vpack.c.b16 %v70, %v69
  %v78 = vpack.c.b16 %v72, %v71
  %v79 = vpack.c.b16 %v74, %v73
  %v80 = vpack.c.b16 %v75, %v75
  %v118 = vunpack.c.l.b16 %v26
  %v119 = vunpack.c.h.b16 %v26
  %v120 = vunpack.c.l.b16 %v27
  %v121 = vunpack.c.h.b16 %v27
  %v122 = vunpack.c.l.b16 %v28
  %v123 = vunpack.c.h.b16 %v28
  %v124 = vunpack.c.l.b16 %v29
  %v125 = vunpack.c.h.b16 %v29
  %v126 = vunpack.c.l.b16 %v30
  %v127 = vunpack.c.h.b16 %v30
  %v128 = vunpack.c.l.b16 %v31
  %v129 = vunpack.c.h.b16 %v31
  %v130 = vunpack.c.l.b16 %v32
  %v131 = vunpack.c.h.b16 %v32
  %v132 = vunpack.c.l.b16 %v33
  %v133 = vunpack.c.h.b16 %v33
  %v134 = vunpack.c.l.b16 %v34
  %v135 = vunpack.c.h.b16 %v34
  %v136 = vunpack.c.l.b16 %v35
  %v137 = vunpack.c.h.b16 %v35
  %v138 = vunpack.c.l.b16 %v36
  %v139 = vunpack.c.h.b16 %v36
  %v140 = vunpack.c.l.b16 %v37
  %v141 = vunpack.c.h.b16 %v37
  %v142 = vunpack.c.l.b16 %v38
  %v143 = vunpack.c.h.b16 %v38
  %v144 = vunpack.c.l.b16 %v39
  %v145 = vunpack.c.h.b16 %v39
  %v146 = vunpack.c.l.b16 %v40
  %v147 = vunpack.c.h.b16 %v40
  %v148 = vunpack.c.l.b16 %v41
  %v149 = vunpack.c.h.b16 %v41
  %v150 = vunpack.c.l.b16 %v42
  %v151 = vunpack.c.h.b16 %v42
  %v152 = vunpack.c.l.b16 %v43
  %v153 = vunpack.c.h.b16 %v43
  %v154 = vunpack.c.l.b16 %v44
  %v155 = vunpack.c.h.b16 %v44
  %v156 = vunpack.c.l.b16 %v45
  %v157 = vunpack.c.h.b16 %v45
  %v158 = vunpack.c.l.b16 %v46
  %v159 = vunpack.c.h.b16 %v46
  %v160 = vunpack.c.l.b16 %v47
  %v161 = vunpack.c.h.b16 %v47
  %v162 = vunpack.c.l.b16 %v48
  %v163 = vunpack.c.h.b16 %v48
  %v164 = vunpack.c.l.b16 %v49
  %v165 = vunpack.c.h.b16 %v49
  %v166 = vunpack.c.l.b16 %v50
  %v167 = vunpack.c.h.b16 %v50
  %v168 = vunpack.c.l.b16 %v51
  %v169 = vunpack.c.h.b16 %v51
  %v170 = vunpack.c.l.b16 %v52
  %v171 = vunpack.c.h.b16 %v52
  %v172 = vunpack.c.l.b16 %v53
  %v173 = vunpack.c.h.b16 %v53
  %v174 = vunpack.c.l.b16 %v54
  %v175 = vunpack.c.h.b16 %v54
  %v176 = vunpack.c.l.b16 %v55
  %v177 = vunpack.c.h.b16 %v55
  %v178 = vunpack.c.l.b16 %v56
  %v179 = vunpack.c.h.b16 %v56
  %v180 = vunpack.c.l.b16 %v57
  %v181 = vunpack.c.h.b16 %v57
  %v182 = vpack.c.b16 %v122, %v118
  %v183 = vpack.c.b16 %v123, %v119
  %v184 = vpack.c.b16 %v124, %v120
  %v185 = vpack.c.b16 %v125, %v121
  %v186 = vpack.c.b16 %v130, %v126
  %v187 = vpack.c.b16 %v131, %v127
  %v188 = vpack.c.b16 %v132, %v128
  %v189 = vpack.c.b16 %v133, %v129
  %v190 = vpack.c.b16 %v138, %v134
  %v191 = vpack.c.b16 %v139, %v135
  %v192 = vpack.c.b16 %v140, %v136
  %v193 = vpack.c.b16 %v141, %v137
  %v194 = vpack.c.b16 %v146, %v142
  %v195 = vpack.c.b16 %v147, %v143
  %v196 = vpack.c.b16 %v148, %v144
  %v197 = vpack.c.b16 %v149, %v145
  %v198 = vpack.c.b16 %v154, %v150
  %v199 = vpack.c.b16 %v155, %v151
  %v200 = vpack.c.b16 %v156, %v152
  %v201 = vpack.c.b16 %v157, %v153
  %v202 = vpack.c.b16 %v162, %v158
  %v203 = vpack.c.b16 %v163, %v159
  %v204 = vpack.c.b16 %v164, %v160
  %v205 = vpack.c.b16 %v165, %v161
  %v206 = vpack.c.b16 %v170, %v166
  %v207 = vpack.c.b16 %v171, %v167
  %v208 = vpack.c.b16 %v172, %v168
  %v209 = vpack.c.b16 %v173, %v169
  %v210 = vpack.c.b16 %v178, %v174
  %v211 = vpack.c.b16 %v179, %v175
  %v212 = vpack.c.b16 %v180, %v176
  %v213 = vpack.c.b16 %v181, %v177
  %246 = vmatpush.bf16.msra.mxu0 %v210
  %247 = vmatpush.bf16.msra.mxu0 %v206
  %248 = vmatpush.bf16.msra.mxu0 %v202
  %249 = vmatpush.bf16.msra.mxu0 %v198
  %250 = vmatpush.bf16.msra.mxu0 %v194
  %251 = vmatpush.bf16.msra.mxu0 %v190
  %252 = vmatpush.bf16.msra.mxu0 %v186
  %253 = vmatpush.bf16.msra.mxu0 %v182
  %254 = vmatmul.bf16.gmra.mxu0 %v76
  %v255 = vpop.f32.mrf.mxu0
  %v256 = vadd.f32 0.0, %v255
  %v257 = vpop.f32.mrf.mxu0
  %v258 = vadd.f32 0.0, %v257
  %259 = vmatmul.bf16.gmra.mxu0 %v77
  %v260 = vpop.f32.mrf.mxu0
  %v261 = vadd.f32 0.0, %v260
  %v262 = vpop.f32.mrf.mxu0
  %v263 = vadd.f32 0.0, %v262
  %264 = vmatmul.bf16.gmra.mxu0 %v78
  %v265 = vpop.f32.mrf.mxu0
  %v266 = vadd.f32 0.0, %v265
  %v267 = vpop.f32.mrf.mxu0
  %v268 = vadd.f32 0.0, %v267
  %269 = vmatmul.bf16.gmra.mxu0 %v79
  %v270 = vpop.f32.mrf.mxu0
  %v271 = vadd.f32 0.0, %v270
  %v272 = vpop.f32.mrf.mxu0
  %v273 = vadd.f32 0.0, %v272
  %274 = vmatmul.bf16.gmra.mxu0 %v80
  %v275 = vpop.f32.mrf.mxu0
  %v276 = vadd.f32 0.0, %v275
  %v277 = vpop.f32.mrf.mxu0
  %278 = vdwg.mxu0
  %279 = vmatpush.bf16.msra.mxu0 %v211
  %280 = vmatpush.bf16.msra.mxu0 %v207
  %281 = vmatpush.bf16.msra.mxu0 %v203
  %282 = vmatpush.bf16.msra.mxu0 %v199
  %283 = vmatpush.bf16.msra.mxu0 %v195
  %284 = vmatpush.bf16.msra.mxu0 %v191
  %285 = vmatpush.bf16.msra.mxu0 %v187
  %286 = vmatpush.bf16.msra.mxu0 %v183
  %287 = vmatmul.bf16.gmra.mxu0 %v76
  %v288 = vpop.f32.mrf.mxu0
  %v289 = vadd.f32 0.0, %v288
  %v290 = vpop.f32.mrf.mxu0
  %v291 = vadd.f32 0.0, %v290
  %292 = vmatmul.bf16.gmra.mxu0 %v77
  %v293 = vpop.f32.mrf.mxu0
  %v294 = vadd.f32 0.0, %v293
  %v295 = vpop.f32.mrf.mxu0
  %v296 = vadd.f32 0.0, %v295
  %297 = vmatmul.bf16.gmra.mxu0 %v78
  %v298 = vpop.f32.mrf.mxu0
  %v299 = vadd.f32 0.0, %v298
  %v300 = vpop.f32.mrf.mxu0
  %v301 = vadd.f32 0.0, %v300
  %302 = vmatmul.bf16.gmra.mxu0 %v79
  %v303 = vpop.f32.mrf.mxu0
  %v304 = vadd.f32 0.0, %v303
  %v305 = vpop.f32.mrf.mxu0
  %v306 = vadd.f32 0.0, %v305
  %307 = vmatmul.bf16.gmra.mxu0 %v80
  %v308 = vpop.f32.mrf.mxu0
  %v309 = vadd.f32 0.0, %v308
  %v310 = vpop.f32.mrf.mxu0
  %311 = vdwg.mxu0
  %312 = vmatpush.bf16.msra.mxu0 %v212
  %313 = vmatpush.bf16.msra.mxu0 %v208
  %314 = vmatpush.bf16.msra.mxu0 %v204
  %315 = vmatpush.bf16.msra.mxu0 %v200
  %316 = vmatpush.bf16.msra.mxu0 %v196
  %317 = vmatpush.bf16.msra.mxu0 %v192
  %318 = vmatpush.bf16.msra.mxu0 %v188
  %319 = vmatpush.bf16.msra.mxu0 %v184
  %320 = vmatmul.bf16.gmra.mxu0 %v76
  %v321 = vpop.f32.mrf.mxu0
  %v322 = vadd.f32 0.0, %v321
  %v323 = vpop.f32.mrf.mxu0
  %v324 = vadd.f32 0.0, %v323
  %325 = vmatmul.bf16.gmra.mxu0 %v77
  %v326 = vpop.f32.mrf.mxu0
  %v327 = vadd.f32 0.0, %v326
  %v328 = vpop.f32.mrf.mxu0
  %v329 = vadd.f32 0.0, %v328
  %330 = vmatmul.bf16.gmra.mxu0 %v78
  %v331 = vpop.f32.mrf.mxu0
  %v332 = vadd.f32 0.0, %v331
  %v333 = vpop.f32.mrf.mxu0
  %v334 = vadd.f32 0.0, %v333
  %335 = vmatmul.bf16.gmra.mxu0 %v79
  %v336 = vpop.f32.mrf.mxu0
  %v337 = vadd.f32 0.0, %v336
  %v338 = vpop.f32.mrf.mxu0
  %v339 = vadd.f32 0.0, %v338
  %340 = vmatmul.bf16.gmra.mxu0 %v80
  %v341 = vpop.f32.mrf.mxu0
  %v342 = vadd.f32 0.0, %v341
  %v343 = vpop.f32.mrf.mxu0
  %344 = vdwg.mxu0
  %345 = vmatpush.bf16.msra.mxu0 %v213
  %346 = vmatpush.bf16.msra.mxu0 %v209
  %347 = vmatpush.bf16.msra.mxu0 %v205
  %348 = vmatpush.bf16.msra.mxu0 %v201
  %349 = vmatpush.bf16.msra.mxu0 %v197
  %350 = vmatpush.bf16.msra.mxu0 %v193
  %351 = vmatpush.bf16.msra.mxu0 %v189
  %352 = vmatpush.bf16.msra.mxu0 %v185
  %353 = vmatmul.bf16.gmra.mxu0 %v76
  %v354 = vpop.f32.mrf.mxu0
  %v355 = vadd.f32 0.0, %v354
  %v356 = vpop.f32.mrf.mxu0
  %v357 = vadd.f32 0.0, %v356
  %358 = vmatmul.bf16.gmra.mxu0 %v77
  %v359 = vpop.f32.mrf.mxu0
  %v360 = vadd.f32 0.0, %v359
  %v361 = vpop.f32.mrf.mxu0
  %v362 = vadd.f32 0.0, %v361
  %363 = vmatmul.bf16.gmra.mxu0 %v78
  %v364 = vpop.f32.mrf.mxu0
  %v365 = vadd.f32 0.0, %v364
  %v366 = vpop.f32.mrf.mxu0
  %v367 = vadd.f32 0.0, %v366
  %368 = vmatmul.bf16.gmra.mxu0 %v79
  %v369 = vpop.f32.mrf.mxu0
  %v370 = vadd.f32 0.0, %v369
  %v371 = vpop.f32.mrf.mxu0
  %v372 = vadd.f32 0.0, %v371
  %373 = vmatmul.bf16.gmra.mxu0 %v80
  %v374 = vpop.f32.mrf.mxu0
  %v375 = vadd.f32 0.0, %v374
  %v376 = vpop.f32.mrf.mxu0
  %377 = vdwg.mxu0
  %v378 = vld [vmem:[%s2] sm:$0xf]
  %v380 = vperm.slane %v378, 0
  %v381 = vperm.slane %v378, 1
  %v382 = vperm.slane %v378, 2
  %v383 = vperm.slane %v378, 3
  %v388 = vmul.f32 %v256, %v380
  %v389 = vmul.f32 %v289, %v381
  %v390 = vmul.f32 %v322, %v382
  %v391 = vmul.f32 %v355, %v383
  %v392 = vmul.f32 %v258, %v380
  %v393 = vmul.f32 %v291, %v381
  %v394 = vmul.f32 %v324, %v382
  %v395 = vmul.f32 %v357, %v383
  %v396 = vmul.f32 %v261, %v380
  %v397 = vmul.f32 %v294, %v381
  %v398 = vmul.f32 %v327, %v382
  %v399 = vmul.f32 %v360, %v383
  %v400 = vmul.f32 %v263, %v380
  %v401 = vmul.f32 %v296, %v381
  %v402 = vmul.f32 %v329, %v382
  %v403 = vmul.f32 %v362, %v383
  %v404 = vmul.f32 %v266, %v380
  %v405 = vmul.f32 %v299, %v381
  %v406 = vmul.f32 %v332, %v382
  %v407 = vmul.f32 %v365, %v383
  %v408 = vmul.f32 %v268, %v380
  %v409 = vmul.f32 %v301, %v381
  %v410 = vmul.f32 %v334, %v382
  %v411 = vmul.f32 %v367, %v383
  %v412 = vmul.f32 %v271, %v380
  %v413 = vmul.f32 %v304, %v381
  %v414 = vmul.f32 %v337, %v382
  %v415 = vmul.f32 %v370, %v383
  %v416 = vmul.f32 %v273, %v380
  %v417 = vmul.f32 %v306, %v381
  %v418 = vmul.f32 %v339, %v382
  %v419 = vmul.f32 %v372, %v383
  %v420 = vmul.f32 %v276, %v380
  %v421 = vmul.f32 %v309, %v381
  %v422 = vmul.f32 %v342, %v382
  %v423 = vmul.f32 %v375, %v383
  %v424 = vld [vmem:[%s3] sm:$0xf]
  %v426 = vperm.slane %v424, 0
  %v427 = vperm.slane %v424, 1
  %v428 = vperm.slane %v424, 2
  %v429 = vperm.slane %v424, 3
  %v434 = vadd.f32 %v388, %v426
  %v435 = vadd.f32 %v389, %v427
  %v436 = vadd.f32 %v390, %v428
  %v437 = vadd.f32 %v391, %v429
  %v438 = vadd.f32 %v392, %v426
  %v439 = vadd.f32 %v393, %v427
  %v440 = vadd.f32 %v394, %v428
  %v441 = vadd.f32 %v395, %v429
  %v442 = vadd.f32 %v396, %v426
  %v443 = vadd.f32 %v397, %v427
  %v444 = vadd.f32 %v398, %v428
  %v445 = vadd.f32 %v399, %v429
  %v446 = vadd.f32 %v400, %v426
  %v447 = vadd.f32 %v401, %v427
  %v448 = vadd.f32 %v402, %v428
  %v449 = vadd.f32 %v403, %v429
  %v450 = vadd.f32 %v404, %v426
  %v451 = vadd.f32 %v405, %v427
  %v452 = vadd.f32 %v406, %v428
  %v453 = vadd.f32 %v407, %v429
  %v454 = vadd.f32 %v408, %v426
  %v455 = vadd.f32 %v409, %v427
  %v456 = vadd.f32 %v410, %v428
  %v457 = vadd.f32 %v411, %v429
  %v458 = vadd.f32 %v412, %v426
  %v459 = vadd.f32 %v413, %v427
  %v460 = vadd.f32 %v414, %v428
  %v461 = vadd.f32 %v415, %v429
  %v462 = vadd.f32 %v416, %v426
  %v463 = vadd.f32 %v417, %v427
  %v464 = vadd.f32 %v418, %v428
  %v465 = vadd.f32 %v419, %v429
  %v466 = vadd.f32 %v420, %v426
  %v467 = vadd.f32 %v421, %v427
  %v468 = vadd.f32 %v422, %v428
  %v469 = vadd.f32 %v423, %v429
  %v470 = vmax.f32 %v434, 0.0
  %v471 = vmax.f32 %v435, 0.0
  %v472 = vmax.f32 %v436, 0.0
  %v473 = vmax.f32 %v437, 0.0
  %v474 = vmax.f32 %v438, 0.0
  %v475 = vmax.f32 %v439, 0.0
  %v476 = vmax.f32 %v440, 0.0
  %v477 = vmax.f32 %v441, 0.0
  %v478 = vmax.f32 %v442, 0.0
  %v479 = vmax.f32 %v443, 0.0
  %v480 = vmax.f32 %v444, 0.0
  %v481 = vmax.f32 %v445, 0.0
  %v482 = vmax.f32 %v446, 0.0
  %v483 = vmax.f32 %v447, 0.0
  %v484 = vmax.f32 %v448, 0.0
  %v485 = vmax.f32 %v449, 0.0
  %v486 = vmax.f32 %v450, 0.0
  %v487 = vmax.f32 %v451, 0.0
  %v488 = vmax.f32 %v452, 0.0
  %v489 = vmax.f32 %v453, 0.0
  %v490 = vmax.f32 %v454, 0.0
  %v491 = vmax.f32 %v455, 0.0
  %v492 = vmax.f32 %v456, 0.0
  %v493 = vmax.f32 %v457, 0.0
  %v494 = vmax.f32 %v458, 0.0
  %v495 = vmax.f32 %v459, 0.0
  %v496 = vmax.f32 %v460, 0.0
  %v497 = vmax.f32 %v461, 0.0
  %v498 = vmax.f32 %v462, 0.0
  %v499 = vmax.f32 %v463, 0.0
  %v500 = vmax.f32 %v464, 0.0
  %v501 = vmax.f32 %v465, 0.0
  %v502 = vmax.f32 %v466, 0.0
  %v503 = vmax.f32 %v467, 0.0
  %v504 = vmax.f32 %v468, 0.0
  %v505 = vmax.f32 %v469, 0.0
  %v506 = vpack.c.bf16 %v471, %v470
  %v507 = vpack.c.bf16 %v473, %v472
  %v508 = vpack.c.bf16 %v475, %v474
  %v509 = vpack.c.bf16 %v477, %v476
  %v510 = vpack.c.bf16 %v479, %v478
  %v511 = vpack.c.bf16 %v481, %v480
  %v512 = vpack.c.bf16 %v483, %v482
  %v513 = vpack.c.bf16 %v485, %v484
  %v514 = vpack.c.bf16 %v487, %v486
  %v515 = vpack.c.bf16 %v489, %v488
  %v516 = vpack.c.bf16 %v491, %v490
  %v517 = vpack.c.bf16 %v493, %v492
  %v518 = vpack.c.bf16 %v495, %v494
  %v519 = vpack.c.bf16 %v497, %v496
  %v520 = vpack.c.bf16 %v499, %v498
  %v521 = vpack.c.bf16 %v501, %v500
  %v522 = vpack.c.bf16 %v503, %v502
  %v523 = vpack.c.bf16 %v505, %v504
  %524 = vst [vmem:[%s4] sm:$0xff] %v506
  %525 = vst [vmem:[%s4 + $0x8] sm:$0xff] %v507
  %526 = vst [vmem:[%s4 + $0x10] sm:$0xff] %v508
  %527 = vst [vmem:[%s4 + $0x18] sm:$0xff] %v509
  %528 = vst [vmem:[%s4 + $0x20] sm:$0xff] %v510
  %529 = vst [vmem:[%s4 + $0x28] sm:$0xff] %v511
  %530 = vst [vmem:[%s4 + $0x30] sm:$0xff] %v512
  %531 = vst [vmem:[%s4 + $0x38] sm:$0xff] %v513
  %532 = vst [vmem:[%s4 + $0x40] sm:$0xff] %v514
  %533 = vst [vmem:[%s4 + $0x48] sm:$0xff] %v515
  %534 = vst [vmem:[%s4 + $0x50] sm:$0xff] %v516
  %535 = vst [vmem:[%s4 + $0x58] sm:$0xff] %v517
  %536 = vst [vmem:[%s4 + $0x60] sm:$0xff] %v518
  %537 = vst [vmem:[%s4 + $0x68] sm:$0xff] %v519
  %538 = vst [vmem:[%s4 + $0x70] sm:$0xff] %v520
  %539 = vst [vmem:[%s4 + $0x78] sm:$0xff] %v521
  %540 = vst [vmem:[%s4 + $0x80] sm:$0xff] %v522
  %541 = vst [vmem:[%s4 + $0x88] sm:$0xff] %v523
  // Predicated region
  $region18: #{conv_encoder_forward.6} parent=0 // pred_check
    _
  $region19: #{conv_encoder_forward.6} parent=0 // pred_check_branch
    %543 = sbr.rel (0) target = $region21
  $region20: #{conv_encoder_forward.6} parent=0 // pred_region
    _
  $region21: #{conv_encoder_forward.6} parent=0 // pred_fallthru
    _
  // Predicated region
  $region22: #{conv_encoder_forward.6} parent=0 // pred_check
    _
  $region23: #{conv_encoder_forward.6} parent=0 // pred_check_branch
    %545 = sbr.rel (0) target = $region25
  $region24: #{conv_encoder_forward.6} parent=0 // pred_region
    _
  $region25: #{conv_encoder_forward.6} parent=0 // pred_fallthru
    _

// kernel: conv_encoder_forward.7
$region0: #{conv_encoder_forward.7}
  #allocation0 [shape = 'u32[]', space=smem, size = 0x4, offset = 0x4, fixed_abs, tag = 'smem constant byte address 0x4 - core index']
  #allocation1 [shape = 'u32[72,128]{1,0:T(1,128)}', space=vmem, size = 0x9000, scoped, tag = 'internal scratch']
  #allocation2 [shape = 'bf16[56,256]{1,0:T(8,128)(2,1)}', space=vmem, size = 0x7000, scoped, tag = 'scratch operand']
  %s0 = inlined_call_operand.vmem [shape: bf16[2,40,256], index: 0, kind: input, shape index: {}]
  %s1 = inlined_call_operand.vmem [shape: bf16[2,1,2,256], index: 1, kind: input, shape index: {}]
  %s2 = inlined_call_operand.vmem [shape: bf16[2,1,2,256], index: 2, kind: input, shape index: {}]
  %s3 = inlined_call_operand.vmem [shape: bf16[3,256,256], index: 3, kind: input, shape index: {}]
  %s4 = inlined_call_operand.vmem [shape: f32[1,256], index: 4, kind: input, shape index: {}]
  %s5 = inlined_call_operand.vmem [shape: f32[1,256], index: 5, kind: input, shape index: {}]
  %s6 = inlined_call_operand.vmem [shape: bf16[3,256,256], index: 6, kind: input, shape index: {}]
  %s7 = inlined_call_operand.vmem [shape: f32[1,256], index: 7, kind: input, shape index: {}]
  %s8 = inlined_call_operand.vmem [shape: f32[1,256], index: 8, kind: input, shape index: {}]
  %s9 = inlined_call_operand.vmem [shape: bf16[2,40,256], index: 9, kind: output, shape index: {}]
  %s10 = sld [smem:[#allocation0]]
  $region69: #{conv_encoder_forward.7} parent=0
    _
  %s12 = ssub.s32 1, %s10
  %s13 = scalar_select 0, %s12, %s10
  loop: start=0, step=1, limit=4
  $region2: #{conv_encoder_forward.7} parent=0 // loop_pre_header
    _
  $region3: #{conv_encoder_forward.7} parent=0 // loop_header
    %s15 = sphi 0, %s19
    %p16 = scmp.ge.s32.totalorder %s15, 4
    %s22 = sphi 0, %s34
    %s23 = sphi 0, %s30
    %s24 = sphi 0, %s22
    %s25 = sphi 0, %s23
    %s26 = sphi 0, %s24
    %s27 = sphi 0, %s25
    %s39 = sphi 0, %s41
    %s42 = sphi 0, %s39
    %s43 = sphi 0, %s42
    %s59 = sphi 0, %s43
    %s67 = sphi 0, %s69
    %s70 = sphi 0, %s67
    %s71 = sphi 0, %s70
    %s87 = sphi 0, %s71
    %s95 = sphi 0, %s97
    %s98 = sphi 0, %s95
    %s99 = sphi 0, %s98
    %s115 = sphi 0, %s99
    %s119 = sphi 0, %s119
    %s121 = sphi 0, %s119
    %s122 = sphi 0, %s121
    %s136 = sphi 0, %s122
    %s140 = sphi 0, %s140
    %s142 = sphi 0, %s140
    %s143 = sphi 0, %s142
    %s157 = sphi 0, %s143
    %s161 = sphi 0, %s161
    %s163 = sphi 0, %s161
    %s164 = sphi 0, %s163
    %s178 = sphi 0, %s164
    %s182 = sphi 0, %s182
    %s184 = sphi 0, %s182
    %s185 = sphi 0, %s184
    %s199 = sphi 0, %s185
    %s203 = sphi 0, %s203
    %s205 = sphi 0, %s203
    %s206 = sphi 0, %s205
    %s220 = sphi 0, %s206
    %s224 = sphi 0, %s224
    %s226 = sphi 0, %s224
    %s227 = sphi 0, %s226
    %s241 = sphi 0, %s227
    %s249 = sphi 0, %s251
    %s252 = sphi 0, %s249
    %s253 = sphi 0, %s252
    %s269 = sphi 0, %s253
  $region4: #{conv_encoder_forward.7} parent=0 // loop_header_branch
    %18 = sbr.rel (%p16) target = $region8
  $region5: #{conv_encoder_forward.7} parent=0 // loop_body
    %s20 = ssub.s32 %s15, 1
    %s21 = ssub.s32 %s15, 2
    %s28 = sadd.s32 1, %s23
    %p29 = scmp.ge.s32.totalorder %s28, 1
    %s30 = scalar_select %p29, 0, %s28
    %s31 = sadd.s32 1, %s22
    %s32 = scalar_select %p29, %s31, %s22
    %p33 = scmp.ge.s32.totalorder %s32, 2
    %s34 = scalar_select %p33, 0, %s32
    %s35 = ssub.s32 %s22, %s34
    %s36 = ssub.s32 %s23, %s30
    %s37 = sor.u32 %s35, %s36
    %p38 = scmp.eq.s32.totalorder %s37, 0
    %s40 = sadd.s32 %s39, 1
    %s41 = scalar_select %p38, %s39, %s40
    %p44 = pneg %p38
    %p45 = scmp.eq.s32.totalorder %s15, 1
    %p46 = por %p44, %p45
    %p47 = scmp.ne.s32.totalorder %s39, %s42
    %p48 = scmp.eq.s32.totalorder %s15, 0
    %p49 = por %p47, %p48
    %p50 = scmp.ne.s32.totalorder %s39, %s42
    %p51 = scmp.eq.s32.totalorder %s20, 1
    %p52 = por %p50, %p51
    %p53 = scmp.ne.s32.totalorder %s42, %s43
    %p54 = scmp.eq.s32.totalorder %s20, 0
    %p55 = por %p53, %p54
    %p56 = scmp.ne.s32.totalorder %s42, %s43
    %p57 = scmp.eq.s32.totalorder %s21, 1
    %p58 = por %p56, %p57
    %p60 = scmp.ne.s32.totalorder %s43, %s59
    %p61 = scmp.eq.s32.totalorder %s21, 0
    %p62 = por %p60, %p61
    %s63 = ssub.s32 %s22, %s34
    %s64 = ssub.s32 %s23, %s30
    %s65 = sor.u32 %s63, %s64
    %p66 = scmp.eq.s32.totalorder %s65, 0
    %s68 = sadd.s32 %s67, 1
    %s69 = scalar_select %p66, %s67, %s68
    %p72 = pneg %p66
    %p73 = scmp.eq.s32.totalorder %s15, 1
    %p74 = por %p72, %p73
    %p75 = scmp.ne.s32.totalorder %s67, %s70
    %p76 = scmp.eq.s32.totalorder %s15, 0
    %p77 = por %p75, %p76
    %p78 = scmp.ne.s32.totalorder %s67, %s70
    %p79 = scmp.eq.s32.totalorder %s20, 1
    %p80 = por %p78, %p79
    %p81 = scmp.ne.s32.totalorder %s70, %s71
    %p82 = scmp.eq.s32.totalorder %s20, 0
    %p83 = por %p81, %p82
    %p84 = scmp.ne.s32.totalorder %s70, %s71
    %p85 = scmp.eq.s32.totalorder %s21, 1
    %p86 = por %p84, %p85
    %p88 = scmp.ne.s32.totalorder %s71, %s87
    %p89 = scmp.eq.s32.totalorder %s21, 0
    %p90 = por %p88, %p89
    %s91 = ssub.s32 %s22, %s34
    %s92 = ssub.s32 %s23, %s30
    %s93 = sor.u32 %s91, %s92
    %p94 = scmp.eq.s32.totalorder %s93, 0
    %s96 = sadd.s32 %s95, 1
    %s97 = scalar_select %p94, %s95, %s96
    %p100 = pneg %p94
    %p101 = scmp.eq.s32.totalorder %s15, 1
    %p102 = por %p100, %p101
    %p103 = scmp.ne.s32.totalorder %s95, %s98
    %p104 = scmp.eq.s32.totalorder %s15, 0
    %p105 = por %p103, %p104
    %p106 = scmp.ne.s32.totalorder %s95, %s98
    %p107 = scmp.eq.s32.totalorder %s20, 1
    %p108 = por %p106, %p107
    %p109 = scmp.ne.s32.totalorder %s98, %s99
    %p110 = scmp.eq.s32.totalorder %s20, 0
    %p111 = por %p109, %p110
    %p112 = scmp.ne.s32.totalorder %s98, %s99
    %p113 = scmp.eq.s32.totalorder %s21, 1
    %p114 = por %p112, %p113
    %p116 = scmp.ne.s32.totalorder %s99, %s115
    %p117 = scmp.eq.s32.totalorder %s21, 0
    %p118 = por %p116, %p117
    %s120 = sadd.s32 %s119, 1
    %p123 = scmp.eq.s32.totalorder %s15, 1
    %p124 = scmp.ne.s32.totalorder %s119, %s121
    %p125 = scmp.eq.s32.totalorder %s15, 0
    %p126 = por %p124, %p125
    %p127 = scmp.ne.s32.totalorder %s119, %s121
    %p128 = scmp.eq.s32.totalorder %s20, 1
    %p129 = por %p127, %p128
    %p130 = scmp.ne.s32.totalorder %s121, %s122
    %p131 = scmp.eq.s32.totalorder %s20, 0
    %p132 = por %p130, %p131
    %p133 = scmp.ne.s32.totalorder %s121, %s122
    %p134 = scmp.eq.s32.totalorder %s21, 1
    %p135 = por %p133, %p134
    %p137 = scmp.ne.s32.totalorder %s122, %s136
    %p138 = scmp.eq.s32.totalorder %s21, 0
    %p139 = por %p137, %p138
    %s141 = sadd.s32 %s140, 1
    %p144 = scmp.eq.s32.totalorder %s15, 1
    %p145 = scmp.ne.s32.totalorder %s140, %s142
    %p146 = scmp.eq.s32.totalorder %s15, 0
    %p147 = por %p145, %p146
    %p148 = scmp.ne.s32.totalorder %s140, %s142
    %p149 = scmp.eq.s32.totalorder %s20, 1
    %p150 = por %p148, %p149
    %p151 = scmp.ne.s32.totalorder %s142, %s143
    %p152 = scmp.eq.s32.totalorder %s20, 0
    %p153 = por %p151, %p152
    %p154 = scmp.ne.s32.totalorder %s142, %s143
    %p155 = scmp.eq.s32.totalorder %s21, 1
    %p156 = por %p154, %p155
    %p158 = scmp.ne.s32.totalorder %s143, %s157
    %p159 = scmp.eq.s32.totalorder %s21, 0
    %p160 = por %p158, %p159
    %s162 = sadd.s32 %s161, 1
    %p165 = scmp.eq.s32.totalorder %s15, 1
    %p166 = scmp.ne.s32.totalorder %s161, %s163
    %p167 = scmp.eq.s32.totalorder %s15, 0
    %p168 = por %p166, %p167
    %p169 = scmp.ne.s32.totalorder %s161, %s163
    %p170 = scmp.eq.s32.totalorder %s20, 1
    %p171 = por %p169, %p170
    %p172 = scmp.ne.s32.totalorder %s163, %s164
    %p173 = scmp.eq.s32.totalorder %s20, 0
    %p174 = por %p172, %p173
    %p175 = scmp.ne.s32.totalorder %s163, %s164
    %p176 = scmp.eq.s32.totalorder %s21, 1
    %p177 = por %p175, %p176
    %p179 = scmp.ne.s32.totalorder %s164, %s178
    %p180 = scmp.eq.s32.totalorder %s21, 0
    %p181 = por %p179, %p180
    %s183 = sadd.s32 %s182, 1
    %p186 = scmp.eq.s32.totalorder %s15, 1
    %p187 = scmp.ne.s32.totalorder %s182, %s184
    %p188 = scmp.eq.s32.totalorder %s15, 0
    %p189 = por %p187, %p188
    %p190 = scmp.ne.s32.totalorder %s182, %s184
    %p191 = scmp.eq.s32.totalorder %s20, 1
    %p192 = por %p190, %p191
    %p193 = scmp.ne.s32.totalorder %s184, %s185
    %p194 = scmp.eq.s32.totalorder %s20, 0
    %p195 = por %p193, %p194
    %p196 = scmp.ne.s32.totalorder %s184, %s185
    %p197 = scmp.eq.s32.totalorder %s21, 1
    %p198 = por %p196, %p197
    %p200 = scmp.ne.s32.totalorder %s185, %s199
    %p201 = scmp.eq.s32.totalorder %s21, 0
    %p202 = por %p200, %p201
    %s204 = sadd.s32 %s203, 1
    %p207 = scmp.eq.s32.totalorder %s15, 1
    %p208 = scmp.ne.s32.totalorder %s203, %s205
    %p209 = scmp.eq.s32.totalorder %s15, 0
    %p210 = por %p208, %p209
    %p211 = scmp.ne.s32.totalorder %s203, %s205
    %p212 = scmp.eq.s32.totalorder %s20, 1
    %p213 = por %p211, %p212
    %p214 = scmp.ne.s32.totalorder %s205, %s206
    %p215 = scmp.eq.s32.totalorder %s20, 0
    %p216 = por %p214, %p215
    %p217 = scmp.ne.s32.totalorder %s205, %s206
    %p218 = scmp.eq.s32.totalorder %s21, 1
    %p219 = por %p217, %p218
    %p221 = scmp.ne.s32.totalorder %s206, %s220
    %p222 = scmp.eq.s32.totalorder %s21, 0
    %p223 = por %p221, %p222
    %s225 = sadd.s32 %s224, 1
    %p228 = scmp.eq.s32.totalorder %s15, 1
    %p229 = scmp.ne.s32.totalorder %s224, %s226
    %p230 = scmp.eq.s32.totalorder %s15, 0
    %p231 = por %p229, %p230
    %p232 = scmp.ne.s32.totalorder %s224, %s226
    %p233 = scmp.eq.s32.totalorder %s20, 1
    %p234 = por %p232, %p233
    %p235 = scmp.ne.s32.totalorder %s226, %s227
    %p236 = scmp.eq.s32.totalorder %s20, 0
    %p237 = por %p235, %p236
    %p238 = scmp.ne.s32.totalorder %s226, %s227
    %p239 = scmp.eq.s32.totalorder %s21, 1
    %p240 = por %p238, %p239
    %p242 = scmp.ne.s32.totalorder %s227, %s241
    %p243 = scmp.eq.s32.totalorder %s21, 0
    %p244 = por %p242, %p243
    %s245 = ssub.s32 %s22, %s34
    %s246 = ssub.s32 %s23, %s30
    %s247 = sor.u32 %s245, %s246
    %p248 = scmp.eq.s32.totalorder %s247, 0
    %s250 = sadd.s32 %s249, 1
    %s251 = scalar_select %p248, %s249, %s250
    %p254 = pneg %p248
    %p255 = scmp.eq.s32.totalorder %s15, 1
    %p256 = por %p254, %p255
    %p257 = scmp.ne.s32.totalorder %s249, %s252
    %p258 = scmp.eq.s32.totalorder %s15, 0
    %p259 = por %p257, %p258
    %p260 = scmp.ne.s32.totalorder %s249, %s252
    %p261 = scmp.eq.s32.totalorder %s20, 1
    %p262 = por %p260, %p261
    %p263 = scmp.ne.s32.totalorder %s252, %s253
    %p264 = scmp.eq.s32.totalorder %s20, 0
    %p265 = por %p263, %p264
    %p266 = scmp.ne.s32.totalorder %s252, %s253
    %p267 = scmp.eq.s32.totalorder %s21, 1
    %p268 = por %p266, %p267
    %p270 = scmp.ne.s32.totalorder %s253, %s269
    %p271 = scmp.eq.s32.totalorder %s21, 0
    %p272 = por %p270, %p271
    %p273 = scmp.le.s32.totalorder 1, %s15
    %p274 = scmp.lt.s32.totalorder %s15, 3
    %p275 = pnand %p273, %p274
    %p276 = pneg %p275
    // Predicated region
    $region9: #{conv_encoder_forward.7} parent=5 // pred_check
      _
    $region10: #{conv_encoder_forward.7} parent=5 // pred_check_branch
      %278 = sbr.rel (%p275) target = $region12
    $region11: #{conv_encoder_forward.7} parent=5 // pred_region
      %s279 = ssub.s32 %s15, 1
      // Predicated region
      $region13: #{conv_encoder_forward.7} parent=11 // pred_check
        %p280 = pneg %p132
      $region14: #{conv_encoder_forward.7} parent=11 // pred_check_branch
        %282 = sbr.rel (%p280) target = $region16
      $region15: #{conv_encoder_forward.7} parent=11 // pred_region
        _
      $region16: #{conv_encoder_forward.7} parent=11 // pred_fallthru
        _
      // Predicated region
      $region17: #{conv_encoder_forward.7} parent=11 // pred_check
        %p283 = pneg %p153
      $region18: #{conv_encoder_forward.7} parent=11 // pred_check_branch
        %285 = sbr.rel (%p283) target = $region20
      $region19: #{conv_encoder_forward.7} parent=11 // pred_region
        _
      $region20: #{conv_encoder_forward.7} parent=11 // pred_fallthru
        _
      // Predicated region
      $region21: #{conv_encoder_forward.7} parent=11 // pred_check
        %p286 = pneg %p174
      $region22: #{conv_encoder_forward.7} parent=11 // pred_check_branch
        %288 = sbr.rel (%p286) target = $region24
      $region23: #{conv_encoder_forward.7} parent=11 // pred_region
        _
      $region24: #{conv_encoder_forward.7} parent=11 // pred_fallthru
        _
      // Predicated region
      $region25: #{conv_encoder_forward.7} parent=11 // pred_check
        %p289 = pneg %p195
      $region26: #{conv_encoder_forward.7} parent=11 // pred_check_branch
        %291 = sbr.rel (%p289) target = $region28
      $region27: #{conv_encoder_forward.7} parent=11 // pred_region
        _
      $region28: #{conv_encoder_forward.7} parent=11 // pred_fallthru
        _
      // Predicated region
      $region29: #{conv_encoder_forward.7} parent=11 // pred_check
        %p292 = pneg %p216
      $region30: #{conv_encoder_forward.7} parent=11 // pred_check_branch
        %294 = sbr.rel (%p292) target = $region32
      $region31: #{conv_encoder_forward.7} parent=11 // pred_region
        _
      $region32: #{conv_encoder_forward.7} parent=11 // pred_fallthru
        _
      // Predicated region
      $region33: #{conv_encoder_forward.7} parent=11 // pred_check
        %p295 = pneg %p237
      $region34: #{conv_encoder_forward.7} parent=11 // pred_check_branch
        %297 = sbr.rel (%p295) target = $region36
      $region35: #{conv_encoder_forward.7} parent=11 // pred_region
        _
      $region36: #{conv_encoder_forward.7} parent=11 // pred_fallthru
        _
    $region12: #{conv_encoder_forward.7} parent=5 // pred_fallthru
      _
    %p298 = scmp.lt.s32.totalorder %s15, 2
    // Predicated region
    $region37: #{conv_encoder_forward.7} parent=5 // pred_check
      %p299 = pneg %p298
    $region38: #{conv_encoder_forward.7} parent=5 // pred_check_branch
      %301 = sbr.rel (%p299) target = $region40
    $region39: #{conv_encoder_forward.7} parent=5 // pred_region
      // Predicated region
      $region41: #{conv_encoder_forward.7} parent=39 // pred_check
        %p302 = pneg %p49
      $region42: #{conv_encoder_forward.7} parent=39 // pred_check_branch
        %304 = sbr.rel (%p302) target = $region44
      $region43: #{conv_encoder_forward.7} parent=39 // pred_region
        %s305 = smul.u32 5, %s23
        %p306 = scmp.lt.s32.totalorder %s22, 1
        %s307 = scalar_select %p306, %s22, 1
        %p308 = scmp.lt.s32.totalorder %s305, 4
        %s309 = scalar_select %p308, %s305, 4
        %s310 = smul.addr %s309, 2
        %s311 = smul.addr %s307, 10
        %s312 = sadd.s32 %s310, %s311
        %s313 = smul.addr %s312, 4
        %s314 = scalar_lea.vmem %s0, %s313
        %s315 = smul.u32 5, %s23
      $region44: #{conv_encoder_forward.7} parent=39 // pred_fallthru
        _
      // Predicated region
      $region45: #{conv_encoder_forward.7} parent=39 // pred_check
        %p316 = pneg %p77
      $region46: #{conv_encoder_forward.7} parent=39 // pred_check_branch
        %318 = sbr.rel (%p316) target = $region48
      $region47: #{conv_encoder_forward.7} parent=39 // pred_region
        %p319 = scmp.lt.s32.totalorder %s22, 1
        %s320 = scalar_select %p319, %s22, 1
        %p321 = scmp.lt.s32.totalorder %s23, 0
        %s322 = scalar_select %p321, %s23, 0
        %s323 = smul.addr %s322, 2
        %s324 = smul.addr %s320, 2
        %s325 = sadd.s32 %s323, %s324
        %s326 = scalar_lea.vmem %s1, %s325
      $region48: #{conv_encoder_forward.7} parent=39 // pred_fallthru
        _
      // Predicated region
      $region49: #{conv_encoder_forward.7} parent=39 // pred_check
        %p327 = pneg %p105
      $region50: #{conv_encoder_forward.7} parent=39 // pred_check_branch
        %329 = sbr.rel (%p327) target = $region52
      $region51: #{conv_encoder_forward.7} parent=39 // pred_region
        %p330 = scmp.lt.s32.totalorder %s22, 1
        %s331 = scalar_select %p330, %s22, 1
        %p332 = scmp.lt.s32.totalorder %s23, 0
        %s333 = scalar_select %p332, %s23, 0
        %s334 = smul.addr %s333, 2
        %s335 = smul.addr %s331, 2
        %s336 = sadd.s32 %s334, %s335
        %s337 = scalar_lea.vmem %s2, %s336
      $region52: #{conv_encoder_forward.7} parent=39 // pred_fallthru
        _
    $region40: #{conv_encoder_forward.7} parent=5 // pred_fallthru
      _
    %p338 = scmp.le.s32.totalorder 1, %s15
    %p339 = scmp.lt.s32.totalorder %s15, 3
    %p340 = pnand %p338, %p339
    %p341 = pneg %p340
    // Predicated region
    $region53: #{conv_encoder_forward.7} parent=5 // pred_check
      _
    $region54: #{conv_encoder_forward.7} parent=5 // pred_check_branch
      %343 = sbr.rel (%p340) target = $region56
    $region55: #{conv_encoder_forward.7} parent=5 // pred_region
      %s344 = ssub.s32 %s15, 1
      %s345 = smul.u32 5, %s25
      %p346 = scmp.lt.s32.totalorder %s24, 1
      %s347 = scalar_select %p346, %s24, 1
      %p348 = scmp.lt.s32.totalorder %s345, 4
      %s349 = scalar_select %p348, %s345, 4
      %s350 = smul.addr %s349, 2
      %s351 = smul.addr %s347, 10
      %s352 = sadd.s32 %s350, %s351
      %s353 = smul.addr %s352, 4
      %s354 = scalar_lea.vmem %s0, %s353
      %p355 = pneg %p55
      %p356 = pneg %p52
      %p357 = scmp.lt.s32.totalorder %s24, 1
      %s358 = scalar_select %p357, %s24, 1
      %p359 = scmp.lt.s32.totalorder %s25, 0
      %s360 = scalar_select %p359, %s25, 0
      %s361 = smul.addr %s360, 2
      %s362 = smul.addr %s358, 2
      %s363 = sadd.s32 %s361, %s362
      %s364 = scalar_lea.vmem %s1, %s363
      %p365 = pneg %p83
      %p366 = pneg %p80
      %p367 = scmp.lt.s32.totalorder %s24, 1
      %s368 = scalar_select %p367, %s24, 1
      %p369 = scmp.lt.s32.totalorder %s25, 0
      %s370 = scalar_select %p369, %s25, 0
      %s371 = smul.addr %s370, 2
      %s372 = smul.addr %s368, 2
      %s373 = sadd.s32 %s371, %s372
      %s374 = scalar_lea.vmem %s2, %s373
      %p375 = pneg %p111
      %p376 = pneg %p108
      %p377 = pneg %p132
      %p378 = pneg %p129
      %p379 = pneg %p153
      %p380 = pneg %p150
      %p381 = pneg %p174
      %p382 = pneg %p171
      %p383 = pneg %p195
      %p384 = pneg %p192
      %p385 = pneg %p216
      %p386 = pneg %p213
      %p387 = pneg %p237
      %p388 = pneg %p234
      %p389 = pneg %p265
      %p390 = pneg %p262
      %s391 = smul.u32 5, %s25
      %p392 = scmp.lt.s32.totalorder %s24, 1
      %s393 = scalar_select %p392, %s24, 1
      %p394 = scmp.lt.s32.totalorder %s391, 4
      %s395 = scalar_select %p394, %s391, 4
      %s396 = smul.addr %s395, 2
      %s397 = smul.addr %s393, 10
      %s398 = sadd.s32 %s396, %s397
      %s399 = smul.addr %s398, 4
      %s400 = scalar_lea.vmem %s9, %s399
      %s401 = smul.u32 5, %s25
      %p402 = scmp.lt.s32.totalorder %s24, 1
      %s403 = scalar_select %p402, %s24, 1
      %p404 = scmp.lt.s32.totalorder %s401, 4
      %s405 = scalar_select %p404, %s401, 4
      %s406 = smul.addr %s405, 2
      %s407 = smul.addr %s403, 10
      %s408 = sadd.s32 %s406, %s407
      %s409 = smul.addr %s408, 4
      %s410 = scalar_lea.vmem %s0, %s409
      %s411 = smul.u32 5, %s25
      %p412 = scmp.lt.s32.totalorder %s24, 1
      %s413 = scalar_select %p412, %s24, 1
      %p414 = scmp.lt.s32.totalorder %s25, 0
      %s415 = scalar_select %p414, %s25, 0
      %s416 = smul.addr %s415, 2
      %s417 = smul.addr %s413, 2
      %s418 = sadd.s32 %s416, %s417
      %s419 = scalar_lea.vmem %s1, %s418
      %p420 = scmp.lt.s32.totalorder %s24, 1
      %s421 = scalar_select %p420, %s24, 1
      %p422 = scmp.lt.s32.totalorder %s25, 0
      %s423 = scalar_select %p422, %s25, 0
      %s424 = smul.addr %s423, 2
      %s425 = smul.addr %s421, 2
      %s426 = sadd.s32 %s424, %s425
      %s427 = scalar_lea.vmem %s2, %s426
      %s428 = smul.u32 5, %s25
      %p429 = scmp.lt.s32.totalorder %s24, 1
      %s430 = scalar_select %p429, %s24, 1
      %p431 = scmp.lt.s32.totalorder %s428, 4
      %s432 = scalar_select %p431, %s428, 4
      %s433 = smul.addr %s432, 2
      %s434 = smul.addr %s430, 10
      %s435 = sadd.s32 %s433, %s434
      %s436 = smul.addr %s435, 4
      %s437 = scalar_lea.vmem %s9, %s436
      %s438 = smul.u32 5, %s25
      %v439 = vld [vmem:[%s410] sm:$0xff]
      %v440 = vld [vmem:[%s410 + $0x8] sm:$0xff]
      %v441 = vld [vmem:[%s410 + $0x10] sm:$0xff]
      %v442 = vld [vmem:[%s410 + $0x18] sm:$0xff]
      %v443 = vld [vmem:[%s410 + $0x20] sm:$0xff]
      %v444 = vld [vmem:[%s419] sm:$0x3]
      %s446 = scalar_lea.vmem [#allocation1], 3
      %447 = vst [vmem:[%s446] ss:$4 sm:$0xff] %v444
      %v448 = vld [vmem:[#allocation1] sm:$0xff]
      %450 = vst [vmem:[#allocation2] sm:$0x88] %v448
      %451 = vst [vmem:[#allocation2 + $0x8] sm:$0xff] %v439
      %452 = vst [vmem:[#allocation2 + $0x10] sm:$0xff] %v440
      %453 = vst [vmem:[#allocation2 + $0x18] sm:$0xff] %v441
      %454 = vst [vmem:[#allocation2 + $0x20] sm:$0xff] %v442
      %455 = vst [vmem:[#allocation2 + $0x28] sm:$0xff] %v443
      %v456 = vld [vmem:[%s427] sm:$0x3]
      %458 = vst [vmem:[#allocation1] ss:$4 sm:$0xff] %v456
      %v459 = vld [vmem:[#allocation1] sm:$0xff]
      %461 = vst [vmem:[#allocation2 + $0x30] sm:$0x11] %v459
      %v462 = vld [vmem:[#allocation2] sm:$0xff]
      %v463 = vld [vmem:[#allocation2 + $0x8] sm:$0xff]
      %v464 = vld [vmem:[#allocation2 + $0x10] sm:$0xff]
      %v465 = vld [vmem:[#allocation2 + $0x18] sm:$0xff]
      %v466 = vld [vmem:[#allocation2 + $0x20] sm:$0xff]
      %v467 = vld [vmem:[#allocation2 + $0x28] sm:$0xff]
      %v468 = vld [vmem:[#allocation2 + $0x30] sm:$0xff]
      %v469 = vld [vmem:[%s3] sm:$0xff]
      %v470 = vld [vmem:[%s3 + $0x8] sm:$0xff]
      %v471 = vld [vmem:[%s3 + $0x10] sm:$0xff]
      %v472 = vld [vmem:[%s3 + $0x18] sm:$0xff]
      %v473 = vld [vmem:[%s3 + $0x20] sm:$0xff]
      %v474 = vld [vmem:[%s3 + $0x28] sm:$0xff]
      %v475 = vld [vmem:[%s3 + $0x30] sm:$0xff]
      %v476 = vld [vmem:[%s3 + $0x38] sm:$0xff]
      %v477 = vld [vmem:[%s3 + $0x40] sm:$0xff]
      %v478 = vld [vmem:[%s3 + $0x48] sm:$0xff]
      %v479 = vld [vmem:[%s3 + $0x50] sm:$0xff]
      %v480 = vld [vmem:[%s3 + $0x58] sm:$0xff]
      %v481 = vld [vmem:[%s3 + $0x60] sm:$0xff]
      %v482 = vld [vmem:[%s3 + $0x68] sm:$0xff]
      %v483 = vld [vmem:[%s3 + $0x70] sm:$0xff]
      %v484 = vld [vmem:[%s3 + $0x78] sm:$0xff]
      %v485 = vld [vmem:[%s3 + $0x80] sm:$0xff]
      %v486 = vld [vmem:[%s3 + $0x88] sm:$0xff]
      %v487 = vld [vmem:[%s3 + $0x90] sm:$0xff]
      %v488 = vld [vmem:[%s3 + $0x98] sm:$0xff]
      %v489 = vld [vmem:[%s3 + $0xa0] sm:$0xff]
      %v490 = vld [vmem:[%s3 + $0xa8] sm:$0xff]
      %v491 = vld [vmem:[%s3 + $0xb0] sm:$0xff]
      %v492 = vld [vmem:[%s3 + $0xb8] sm:$0xff]
      %v493 = vld [vmem:[%s3 + $0xc0] sm:$0xff]
      %v494 = vld [vmem:[%s3 + $0xc8] sm:$0xff]
      %v495 = vld [vmem:[%s3 + $0xd0] sm:$0xff]
      %v496 = vld [vmem:[%s3 + $0xd8] sm:$0xff]
      %v497 = vld [vmem:[%s3 + $0xe0] sm:$0xff]
      %v498 = vld [vmem:[%s3 + $0xe8] sm:$0xff]
      %v499 = vld [vmem:[%s3 + $0xf0] sm:$0xff]
      %v500 = vld [vmem:[%s3 + $0xf8] sm:$0xff]
      %s501 = scalar_lea.vmem %s3, 256
      %v502 = vld [vmem:[%s501] sm:$0xff]
      %v503 = vld [vmem:[%s501 + $0x8] sm:$0xff]
      %v504 = vld [vmem:[%s501 + $0x10] sm:$0xff]
      %v505 = vld [vmem:[%s501 + $0x18] sm:$0xff]
      %v506 = vld [vmem:[%s501 + $0x20] sm:$0xff]
      %v507 = vld [vmem:[%s501 + $0x28] sm:$0xff]
      %v508 = vld [vmem:[%s501 + $0x30] sm:$0xff]
      %v509 = vld [vmem:[%s501 + $0x38] sm:$0xff]
      %v510 = vld [vmem:[%s501 + $0x40] sm:$0xff]
      %v511 = vld [vmem:[%s501 + $0x48] sm:$0xff]
      %v512 = vld [vmem:[%s501 + $0x50] sm:$0xff]
      %v513 = vld [vmem:[%s501 + $0x58] sm:$0xff]
      %v514 = vld [vmem:[%s501 + $0x60] sm:$0xff]
      %v515 = vld [vmem:[%s501 + $0x68] sm:$0xff]
      %v516 = vld [vmem:[%s501 + $0x70] sm:$0xff]
      %v517 = vld [vmem:[%s501 + $0x78] sm:$0xff]
      %v518 = vld [vmem:[%s501 + $0x80] sm:$0xff]
      %v519 = vld [vmem:[%s501 + $0x88] sm:$0xff]
      %v520 = vld [vmem:[%s501 + $0x90] sm:$0xff]
      %v521 = vld [vmem:[%s501 + $0x98] sm:$0xff]
      %v522 = vld [vmem:[%s501 + $0xa0] sm:$0xff]
      %v523 = vld [vmem:[%s501 + $0xa8] sm:$0xff]
      %v524 = vld [vmem:[%s501 + $0xb0] sm:$0xff]
      %v525 = vld [vmem:[%s501 + $0xb8] sm:$0xff]
      %v526 = vld [vmem:[%s501 + $0xc0] sm:$0xff]
      %v527 = vld [vmem:[%s501 + $0xc8] sm:$0xff]
      %v528 = vld [vmem:[%s501 + $0xd0] sm:$0xff]
      %v529 = vld [vmem:[%s501 + $0xd8] sm:$0xff]
      %v530 = vld [vmem:[%s501 + $0xe0] sm:$0xff]
      %v531 = vld [vmem:[%s501 + $0xe8] sm:$0xff]
      %v532 = vld [vmem:[%s501 + $0xf0] sm:$0xff]
      %v533 = vld [vmem:[%s501 + $0xf8] sm:$0xff]
      %v541 = vunpack.c.l.b16 %v462
      %v542 = vunpack.c.h.b16 %v462
      %v543 = vunpack.c.l.b16 %v463
      %v544 = vunpack.c.h.b16 %v463
      %v545 = vunpack.c.l.b16 %v464
      %v546 = vunpack.c.h.b16 %v464
      %v547 = vunpack.c.l.b16 %v465
      %v548 = vunpack.c.h.b16 %v465
      %v549 = vunpack.c.l.b16 %v466
      %v550 = vunpack.c.h.b16 %v466
      %v551 = vunpack.c.l.b16 %v467
      %v552 = vunpack.c.h.b16 %v467
      %v553 = vunpack.c.l.b16 %v468
      %v554 = vunpack.c.h.b16 %v468
      %v555 = vpack.c.b16 %v543, %v541
      %v556 = vpack.c.b16 %v544, %v542
      %v557 = vpack.c.b16 %v547, %v545
      %v558 = vpack.c.b16 %v548, %v546
      %v559 = vpack.c.b16 %v551, %v549
      %v560 = vpack.c.b16 %v552, %v550
      %v561 = vpack.c.b16 %v553, %v553
      %v562 = vpack.c.b16 %v554, %v554
      %vm563 = vsmask.f32 4352
      %v565 = vshrl.u32 %v555, 16
      %v567 = vrot.slane %v565, 3
      %v568 = vshll.u32 %v555, 16
      %v570 = vrot.slane %v568, 4
      %v571 = vor.u32 %v567, %v570
      %v573 = vshrl.u32 %v557, 16
      %v575 = vrot.slane %v573, 3
      %v576 = vshll.u32 %v557, 16
      %v578 = vrot.slane %v576, 4
      %v579 = vor.u32 %v575, %v578
      %v580 = vsel %vm563, %v571, %v579
      %v582 = vshrl.u32 %v556, 16
      %v584 = vrot.slane %v582, 3
      %v585 = vshll.u32 %v556, 16
      %v587 = vrot.slane %v585, 4
      %v588 = vor.u32 %v584, %v587
      %v590 = vshrl.u32 %v558, 16
      %v592 = vrot.slane %v590, 3
      %v593 = vshll.u32 %v558, 16
      %v595 = vrot.slane %v593, 4
      %v596 = vor.u32 %v592, %v595
      %v597 = vsel %vm563, %v588, %v596
      %v599 = vshrl.u32 %v559, 16
      %v601 = vrot.slane %v599, 3
      %v602 = vshll.u32 %v559, 16
      %v604 = vrot.slane %v602, 4
      %v605 = vor.u32 %v601, %v604
      %v606 = vsel %vm563, %v579, %v605
      %v608 = vshrl.u32 %v560, 16
      %v610 = vrot.slane %v608, 3
      %v611 = vshll.u32 %v560, 16
      %v613 = vrot.slane %v611, 4
      %v614 = vor.u32 %v610, %v613
      %v615 = vsel %vm563, %v596, %v614
      %v617 = vshll.u32 %v561, 16
      %v619 = vrot.slane %v617, 4
      %v620 = vsel %vm563, %v605, %v619
      %v622 = vshll.u32 %v562, 16
      %v624 = vrot.slane %v622, 4
      %v625 = vsel %vm563, %v614, %v624
      %v664 = vunpack.c.l.b16 %v502
      %v665 = vunpack.c.h.b16 %v502
      %v666 = vunpack.c.l.b16 %v503
      %v667 = vunpack.c.h.b16 %v503
      %v668 = vunpack.c.l.b16 %v504
      %v669 = vunpack.c.h.b16 %v504
      %v670 = vunpack.c.l.b16 %v505
      %v671 = vunpack.c.h.b16 %v505
      %v672 = vunpack.c.l.b16 %v506
      %v673 = vunpack.c.h.b16 %v506
      %v674 = vunpack.c.l.b16 %v507
      %v675 = vunpack.c.h.b16 %v507
      %v676 = vunpack.c.l.b16 %v508
      %v677 = vunpack.c.h.b16 %v508
      %v678 = vunpack.c.l.b16 %v509
      %v679 = vunpack.c.h.b16 %v509
      %v680 = vunpack.c.l.b16 %v510
      %v681 = vunpack.c.h.b16 %v510
      %v682 = vunpack.c.l.b16 %v511
      %v683 = vunpack.c.h.b16 %v511
      %v684 = vunpack.c.l.b16 %v512
      %v685 = vunpack.c.h.b16 %v512
      %v686 = vunpack.c.l.b16 %v513
      %v687 = vunpack.c.h.b16 %v513
      %v688 = vunpack.c.l.b16 %v514
      %v689 = vunpack.c.h.b16 %v514
      %v690 = vunpack.c.l.b16 %v515
      %v691 = vunpack.c.h.b16 %v515
      %v692 = vunpack.c.l.b16 %v516
      %v693 = vunpack.c.h.b16 %v516
      %v694 = vunpack.c.l.b16 %v517
      %v695 = vunpack.c.h.b16 %v517
      %v696 = vunpack.c.l.b16 %v518
      %v697 = vunpack.c.h.b16 %v518
      %v698 = vunpack.c.l.b16 %v519
      %v699 = vunpack.c.h.b16 %v519
      %v700 = vunpack.c.l.b16 %v520
      %v701 = vunpack.c.h.b16 %v520
      %v702 = vunpack.c.l.b16 %v521
      %v703 = vunpack.c.h.b16 %v521
      %v704 = vunpack.c.l.b16 %v522
      %v705 = vunpack.c.h.b16 %v522
      %v706 = vunpack.c.l.b16 %v523
      %v707 = vunpack.c.h.b16 %v523
      %v708 = vunpack.c.l.b16 %v524
      %v709 = vunpack.c.h.b16 %v524
      %v710 = vunpack.c.l.b16 %v525
      %v711 = vunpack.c.h.b16 %v525
      %v712 = vunpack.c.l.b16 %v526
      %v713 = vunpack.c.h.b16 %v526
      %v714 = vunpack.c.l.b16 %v527
      %v715 = vunpack.c.h.b16 %v527
      %v716 = vunpack.c.l.b16 %v528
      %v717 = vunpack.c.h.b16 %v528
      %v718 = vunpack.c.l.b16 %v529
      %v719 = vunpack.c.h.b16 %v529
      %v720 = vunpack.c.l.b16 %v530
      %v721 = vunpack.c.h.b16 %v530
      %v722 = vunpack.c.l.b16 %v531
      %v723 = vunpack.c.h.b16 %v531
      %v724 = vunpack.c.l.b16 %v532
      %v725 = vunpack.c.h.b16 %v532
      %v726 = vunpack.c.l.b16 %v533
      %v727 = vunpack.c.h.b16 %v533
      %v728 = vpack.c.b16 %v666, %v664
      %v729 = vpack.c.b16 %v667, %v665
      %v730 = vpack.c.b16 %v670, %v668
      %v731 = vpack.c.b16 %v671, %v669
      %v732 = vpack.c.b16 %v674, %v672
      %v733 = vpack.c.b16 %v675, %v673
      %v734 = vpack.c.b16 %v678, %v676
      %v735 = vpack.c.b16 %v679, %v677
      %v736 = vpack.c.b16 %v682, %v680
      %v737 = vpack.c.b16 %v683, %v681
      %v738 = vpack.c.b16 %v686, %v684
      %v739 = vpack.c.b16 %v687, %v685
      %v740 = vpack.c.b16 %v690, %v688
      %v741 = vpack.c.b16 %v691, %v689
      %v742 = vpack.c.b16 %v694, %v692
      %v743 = vpack.c.b16 %v695, %v693
      %v744 = vpack.c.b16 %v698, %v696
      %v745 = vpack.c.b16 %v699, %v697
      %v746 = vpack.c.b16 %v702, %v700
      %v747 = vpack.c.b16 %v703, %v701
      %v748 = vpack.c.b16 %v706, %v704
      %v749 = vpack.c.b16 %v707, %v705
      %v750 = vpack.c.b16 %v710, %v708
      %v751 = vpack.c.b16 %v711, %v709
      %v752 = vpack.c.b16 %v714, %v712
      %v753 = vpack.c.b16 %v715, %v713
      %v754 = vpack.c.b16 %v718, %v716
      %v755 = vpack.c.b16 %v719, %v717
      %v756 = vpack.c.b16 %v722, %v720
      %v757 = vpack.c.b16 %v723, %v721
      %v758 = vpack.c.b16 %v726, %v724
      %v759 = vpack.c.b16 %v727, %v725
      %792 = vmatpush.bf16.msra.mxu0 %v742
      %793 = vmatpush.bf16.msra.mxu0 %v740
      %794 = vmatpush.bf16.msra.mxu0 %v738
      %795 = vmatpush.bf16.msra.mxu0 %v736
      %796 = vmatpush.bf16.msra.mxu0 %v734
      %797 = vmatpush.bf16.msra.mxu0 %v732
      %798 = vmatpush.bf16.msra.mxu0 %v730
      %799 = vmatpush.bf16.msra.mxu0 %v728
      %800 = vmatmul.bf16.gmra.mxu0 %v580
      %v801 = vpop.f32.mrf.mxu0
      %v802 = vadd.f32 0.0, %v801
      %v803 = vpop.f32.mrf.mxu0
      %v804 = vadd.f32 0.0, %v803
      %805 = vmatmul.bf16.gmra.mxu0 %v606
      %v806 = vpop.f32.mrf.mxu0
      %v807 = vadd.f32 0.0, %v806
      %v808 = vpop.f32.mrf.mxu0
      %v809 = vadd.f32 0.0, %v808
      %810 = vmatmul.bf16.gmra.mxu0 %v620
      %v811 = vpop.f32.mrf.mxu0
      %v812 = vadd.f32 0.0, %v811
      %v813 = vpop.f32.mrf.mxu0
      %v814 = vadd.f32 0.0, %v813
      %815 = vdwg.mxu0
      %816 = vmatpush.bf16.msra.mxu0 %v758
      %817 = vmatpush.bf16.msra.mxu0 %v756
      %818 = vmatpush.bf16.msra.mxu0 %v754
      %819 = vmatpush.bf16.msra.mxu0 %v752
      %820 = vmatpush.bf16.msra.mxu0 %v750
      %821 = vmatpush.bf16.msra.mxu0 %v748
      %822 = vmatpush.bf16.msra.mxu0 %v746
      %823 = vmatpush.bf16.msra.mxu0 %v744
      %824 = vmatmul.bf16.gmra.mxu0 %v597
      %v825 = vpop.f32.mrf.mxu0
      %v826 = vadd.f32 %v802, %v825
      %v827 = vpop.f32.mrf.mxu0
      %v828 = vadd.f32 %v804, %v827
      %829 = vmatmul.bf16.gmra.mxu0 %v615
      %v830 = vpop.f32.mrf.mxu0
      %v831 = vadd.f32 %v807, %v830
      %v832 = vpop.f32.mrf.mxu0
      %v833 = vadd.f32 %v809, %v832
      %834 = vmatmul.bf16.gmra.mxu0 %v625
      %v835 = vpop.f32.mrf.mxu0
      %v836 = vadd.f32 %v812, %v835
      %v837 = vpop.f32.mrf.mxu0
      %v838 = vadd.f32 %v814, %v837
      %839 = vdwg.mxu0
      %840 = vmatpush.bf16.msra.mxu0 %v743
      %841 = vmatpush.bf16.msra.mxu0 %v741
      %842 = vmatpush.bf16.msra.mxu0 %v739
      %843 = vmatpush.bf16.msra.mxu0 %v737
      %844 = vmatpush.bf16.msra.mxu0 %v735
      %845 = vmatpush.bf16.msra.mxu0 %v733
      %846 = vmatpush.bf16.msra.mxu0 %v731
      %847 = vmatpush.bf16.msra.mxu0 %v729
      %848 = vmatmul.bf16.gmra.mxu0 %v580
      %v849 = vpop.f32.mrf.mxu0
      %v850 = vadd.f32 0.0, %v849
      %v851 = vpop.f32.mrf.mxu0
      %v852 = vadd.f32 0.0, %v851
      %853 = vmatmul.bf16.gmra.mxu0 %v606
      %v854 = vpop.f32.mrf.mxu0
      %v855 = vadd.f32 0.0, %v854
      %v856 = vpop.f32.mrf.mxu0
      %v857 = vadd.f32 0.0, %v856
      %858 = vmatmul.bf16.gmra.mxu0 %v620
      %v859 = vpop.f32.mrf.mxu0
      %v860 = vadd.f32 0.0, %v859
      %v861 = vpop.f32.mrf.mxu0
      %v862 = vadd.f32 0.0, %v861
      %863 = vdwg.mxu0
      %864 = vmatpush.bf16.msra.mxu0 %v759
      %865 = vmatpush.bf16.msra.mxu0 %v757
      %866 = vmatpush.bf16.msra.mxu0 %v755
      %867 = vmatpush.bf16.msra.mxu0 %v753
      %868 = vmatpush.bf16.msra.mxu0 %v751
      %869 = vmatpush.bf16.msra.mxu0 %v749
      %870 = vmatpush.bf16.msra.mxu0 %v747
      %871 = vmatpush.bf16.msra.mxu0 %v745
      %872 = vmatmul.bf16.gmra.mxu0 %v597
      %v873 = vpop.f32.mrf.mxu0
      %v874 = vadd.f32 %v850, %v873
      %v875 = vpop.f32.mrf.mxu0
      %v876 = vadd.f32 %v852, %v875
      %877 = vmatmul.bf16.gmra.mxu0 %v615
      %v878 = vpop.f32.mrf.mxu0
      %v879 = vadd.f32 %v855, %v878
      %v880 = vpop.f32.mrf.mxu0
      %v881 = vadd.f32 %v857, %v880
      %882 = vmatmul.bf16.gmra.mxu0 %v625
      %v883 = vpop.f32.mrf.mxu0
      %v884 = vadd.f32 %v860, %v883
      %v885 = vpop.f32.mrf.mxu0
      %v886 = vadd.f32 %v862, %v885
      %887 = vdwg.mxu0
      %vm888 = vcmask 1044480
      %v889 = vrot.slane %v555, 3
      %v890 = vrot.slane %v557, 3
      %v891 = vsel %vm888, %v889, %v890
      %v892 = vrot.slane %v556, 3
      %v893 = vrot.slane %v558, 3
      %v894 = vsel %vm888, %v892, %v893
      %v895 = vrot.slane %v559, 3
      %v896 = vsel %vm888, %v890, %v895
      %v897 = vrot.slane %v560, 3
      %v898 = vsel %vm888, %v893, %v897
      %v937 = vunpack.c.l.b16 %v469
      %v938 = vunpack.c.h.b16 %v469
      %v939 = vunpack.c.l.b16 %v470
      %v940 = vunpack.c.h.b16 %v470
      %v941 = vunpack.c.l.b16 %v471
      %v942 = vunpack.c.h.b16 %v471
      %v943 = vunpack.c.l.b16 %v472
      %v944 = vunpack.c.h.b16 %v472
      %v945 = vunpack.c.l.b16 %v473
      %v946 = vunpack.c.h.b16 %v473
      %v947 = vunpack.c.l.b16 %v474
      %v948 = vunpack.c.h.b16 %v474
      %v949 = vunpack.c.l.b16 %v475
      %v950 = vunpack.c.h.b16 %v475
      %v951 = vunpack.c.l.b16 %v476
      %v952 = vunpack.c.h.b16 %v476
      %v953 = vunpack.c.l.b16 %v477
      %v954 = vunpack.c.h.b16 %v477
      %v955 = vunpack.c.l.b16 %v478
      %v956 = vunpack.c.h.b16 %v478
      %v957 = vunpack.c.l.b16 %v479
      %v958 = vunpack.c.h.b16 %v479
      %v959 = vunpack.c.l.b16 %v480
      %v960 = vunpack.c.h.b16 %v480
      %v961 = vunpack.c.l.b16 %v481
      %v962 = vunpack.c.h.b16 %v481
      %v963 = vunpack.c.l.b16 %v482
      %v964 = vunpack.c.h.b16 %v482
      %v965 = vunpack.c.l.b16 %v483
      %v966 = vunpack.c.h.b16 %v483
      %v967 = vunpack.c.l.b16 %v484
      %v968 = vunpack.c.h.b16 %v484
      %v969 = vunpack.c.l.b16 %v485
      %v970 = vunpack.c.h.b16 %v485
      %v971 = vunpack.c.l.b16 %v486
      %v972 = vunpack.c.h.b16 %v486
      %v973 = vunpack.c.l.b16 %v487
      %v974 = vunpack.c.h.b16 %v487
      %v975 = vunpack.c.l.b16 %v488
      %v976 = vunpack.c.h.b16 %v488
      %v977 = vunpack.c.l.b16 %v489
      %v978 = vunpack.c.h.b16 %v489
      %v979 = vunpack.c.l.b16 %v490
      %v980 = vunpack.c.h.b16 %v490
      %v981 = vunpack.c.l.b16 %v491
      %v982 = vunpack.c.h.b16 %v491
      %v983 = vunpack.c.l.b16 %v492
      %v984 = vunpack.c.h.b16 %v492
      %v985 = vunpack.c.l.b16 %v493
      %v986 = vunpack.c.h.b16 %v493
      %v987 = vunpack.c.l.b16 %v494
      %v988 = vunpack.c.h.b16 %v494
      %v989 = vunpack.c.l.b16 %v495
      %v990 = vunpack.c.h.b16 %v495
      %v991 = vunpack.c.l.b16 %v496
      %v992 = vunpack.c.h.b16 %v496
      %v993 = vunpack.c.l.b16 %v497
      %v994 = vunpack.c.h.b16 %v497
      %v995 = vunpack.c.l.b16 %v498
      %v996 = vunpack.c.h.b16 %v498
      %v997 = vunpack.c.l.b16 %v499
      %v998 = vunpack.c.h.b16 %v499
      %v999 = vunpack.c.l.b16 %v500
      %v1000 = vunpack.c.h.b16 %v500
      %v1001 = vpack.c.b16 %v939, %v937
      %v1002 = vpack.c.b16 %v940, %v938
      %v1003 = vpack.c.b16 %v943, %v941
      %v1004 = vpack.c.b16 %v944, %v942
      %v1005 = vpack.c.b16 %v947, %v945
      %v1006 = vpack.c.b16 %v948, %v946
      %v1007 = vpack.c.b16 %v951, %v949
      %v1008 = vpack.c.b16 %v952, %v950
      %v1009 = vpack.c.b16 %v955, %v953
      %v1010 = vpack.c.b16 %v956, %v954
      %v1011 = vpack.c.b16 %v959, %v957
      %v1012 = vpack.c.b16 %v960, %v958
      %v1013 = vpack.c.b16 %v963, %v961
      %v1014 = vpack.c.b16 %v964, %v962
      %v1015 = vpack.c.b16 %v967, %v965
      %v1016 = vpack.c.b16 %v968, %v966
      %v1017 = vpack.c.b16 %v971, %v969
      %v1018 = vpack.c.b16 %v972, %v970
      %v1019 = vpack.c.b16 %v975, %v973
      %v1020 = vpack.c.b16 %v976, %v974
      %v1021 = vpack.c.b16 %v979, %v977
      %v1022 = vpack.c.b16 %v980, %v978
      %v1023 = vpack.c.b16 %v983, %v981
      %v1024 = vpack.c.b16 %v984, %v982
      %v1025 = vpack.c.b16 %v987, %v985
      %v1026 = vpack.c.b16 %v988, %v986
      %v1027 = vpack.c.b16 %v991, %v989
      %v1028 = vpack.c.b16 %v992, %v990
      %v1029 = vpack.c.b16 %v995, %v993
      %v1030 = vpack.c.b16 %v996, %v994
      %v1031 = vpack.c.b16 %v999, %v997
      %v1032 = vpack.c.b16 %v1000, %v998
      %1065 = vmatpush.bf16.msra.mxu0 %v1015
      %1066 = vmatpush.bf16.msra.mxu0 %v1013
      %1067 = vmatpush.bf16.msra.mxu0 %v1011
      %1068 = vmatpush.bf16.msra.mxu0 %v1009
      %1069 = vmatpush.bf16.msra.mxu0 %v1007
      %1070 = vmatpush.bf16.msra.mxu0 %v1005
      %1071 = vmatpush.bf16.msra.mxu0 %v1003
      %1072 = vmatpush.bf16.msra.mxu0 %v1001
      %1073 = vmatmul.bf16.gmra.mxu0 %v891
      %v1074 = vpop.f32.mrf.mxu0
      %v1075 = vadd.f32 %v826, %v1074
      %v1076 = vpop.f32.mrf.mxu0
      %v1077 = vadd.f32 %v828, %v1076
      %1078 = vmatmul.bf16.gmra.mxu0 %v896
      %v1079 = vpop.f32.mrf.mxu0
      %v1080 = vadd.f32 %v831, %v1079
      %v1081 = vpop.f32.mrf.mxu0
      %v1082 = vadd.f32 %v833, %v1081
      %1083 = vmatmul.bf16.gmra.mxu0 %v895
      %v1084 = vpop.f32.mrf.mxu0
      %v1085 = vadd.f32 %v836, %v1084
      %v1086 = vpop.f32.mrf.mxu0
      %v1087 = vadd.f32 %v838, %v1086
      %1088 = vdwg.mxu0
      %1089 = vmatpush.bf16.msra.mxu0 %v1031
      %1090 = vmatpush.bf16.msra.mxu0 %v1029
      %1091 = vmatpush.bf16.msra.mxu0 %v1027
      %1092 = vmatpush.bf16.msra.mxu0 %v1025
      %1093 = vmatpush.bf16.msra.mxu0 %v1023
      %1094 = vmatpush.bf16.msra.mxu0 %v1021
      %1095 = vmatpush.bf16.msra.mxu0 %v1019
      %1096 = vmatpush.bf16.msra.mxu0 %v1017
      %1097 = vmatmul.bf16.gmra.mxu0 %v894
      %v1098 = vpop.f32.mrf.mxu0
      %v1099 = vadd.f32 %v1075, %v1098
      %v1100 = vpop.f32.mrf.mxu0
      %v1101 = vadd.f32 %v1077, %v1100
      %1102 = vmatmul.bf16.gmra.mxu0 %v898
      %v1103 = vpop.f32.mrf.mxu0
      %v1104 = vadd.f32 %v1080, %v1103
      %v1105 = vpop.f32.mrf.mxu0
      %v1106 = vadd.f32 %v1082, %v1105
      %1107 = vmatmul.bf16.gmra.mxu0 %v897
      %v1108 = vpop.f32.mrf.mxu0
      %v1109 = vadd.f32 %v1085, %v1108
      %v1110 = vpop.f32.mrf.mxu0
      %v1111 = vadd.f32 %v1087, %v1110
      %1112 = vdwg.mxu0
      %1113 = vmatpush.bf16.msra.mxu0 %v1016
      %1114 = vmatpush.bf16.msra.mxu0 %v1014
      %1115 = vmatpush.bf16.msra.mxu0 %v1012
      %1116 = vmatpush.bf16.msra.mxu0 %v1010
      %1117 = vmatpush.bf16.msra.mxu0 %v1008
      %1118 = vmatpush.bf16.msra.mxu0 %v1006
      %1119 = vmatpush.bf16.msra.mxu0 %v1004
      %1120 = vmatpush.bf16.msra.mxu0 %v1002
      %1121 = vmatmul.bf16.gmra.mxu0 %v891
      %v1122 = vpop.f32.mrf.mxu0
      %v1123 = vadd.f32 %v874, %v1122
      %v1124 = vpop.f32.mrf.mxu0
      %v1125 = vadd.f32 %v876, %v1124
      %1126 = vmatmul.bf16.gmra.mxu0 %v896
      %v1127 = vpop.f32.mrf.mxu0
      %v1128 = vadd.f32 %v879, %v1127
      %v1129 = vpop.f32.mrf.mxu0
      %v1130 = vadd.f32 %v881, %v1129
      %1131 = vmatmul.bf16.gmra.mxu0 %v895
      %v1132 = vpop.f32.mrf.mxu0
      %v1133 = vadd.f32 %v884, %v1132
      %v1134 = vpop.f32.mrf.mxu0
      %v1135 = vadd.f32 %v886, %v1134
      %1136 = vdwg.mxu0
      %1137 = vmatpush.bf16.msra.mxu0 %v1032
      %1138 = vmatpush.bf16.msra.mxu0 %v1030
      %1139 = vmatpush.bf16.msra.mxu0 %v1028
      %1140 = vmatpush.bf16.msra.mxu0 %v1026
      %1141 = vmatpush.bf16.msra.mxu0 %v1024
      %1142 = vmatpush.bf16.msra.mxu0 %v1022
      %1143 = vmatpush.bf16.msra.mxu0 %v1020
      %1144 = vmatpush.bf16.msra.mxu0 %v1018
      %1145 = vmatmul.bf16.gmra.mxu0 %v894
      %v1146 = vpop.f32.mrf.mxu0
      %v1147 = vadd.f32 %v1123, %v1146
      %v1148 = vpop.f32.mrf.mxu0
      %v1149 = vadd.f32 %v1125, %v1148
      %1150 = vmatmul.bf16.gmra.mxu0 %v898
      %v1151 = vpop.f32.mrf.mxu0
      %v1152 = vadd.f32 %v1128, %v1151
      %v1153 = vpop.f32.mrf.mxu0
      %v1154 = vadd.f32 %v1130, %v1153
      %1155 = vmatmul.bf16.gmra.mxu0 %v897
      %v1156 = vpop.f32.mrf.mxu0
      %v1157 = vadd.f32 %v1133, %v1156
      %v1158 = vpop.f32.mrf.mxu0
      %v1159 = vadd.f32 %v1135, %v1158
      %1160 = vdwg.mxu0
      %s1161 = scalar_lea.vmem %s3, 512
      %v1162 = vld [vmem:[%s1161] sm:$0xff]
      %v1163 = vld [vmem:[%s1161 + $0x8] sm:$0xff]
      %v1164 = vld [vmem:[%s1161 + $0x10] sm:$0xff]
      %v1165 = vld [vmem:[%s1161 + $0x18] sm:$0xff]
      %v1166 = vld [vmem:[%s1161 + $0x20] sm:$0xff]
      %v1167 = vld [vmem:[%s1161 + $0x28] sm:$0xff]
      %v1168 = vld [vmem:[%s1161 + $0x30] sm:$0xff]
      %v1169 = vld [vmem:[%s1161 + $0x38] sm:$0xff]
      %v1170 = vld [vmem:[%s1161 + $0x40] sm:$0xff]
      %v1171 = vld [vmem:[%s1161 + $0x48] sm:$0xff]
      %v1172 = vld [vmem:[%s1161 + $0x50] sm:$0xff]
      %v1173 = vld [vmem:[%s1161 + $0x58] sm:$0xff]
      %v1174 = vld [vmem:[%s1161 + $0x60] sm:$0xff]
      %v1175 = vld [vmem:[%s1161 + $0x68] sm:$0xff]
      %v1176 = vld [vmem:[%s1161 + $0x70] sm:$0xff]
      %v1177 = vld [vmem:[%s1161 + $0x78] sm:$0xff]
      %v1178 = vld [vmem:[%s1161 + $0x80] sm:$0xff]
      %v1179 = vld [vmem:[%s1161 + $0x88] sm:$0xff]
      %v1180 = vld [vmem:[%s1161 + $0x90] sm:$0xff]
      %v1181 = vld [vmem:[%s1161 + $0x98] sm:$0xff]
      %v1182 = vld [vmem:[%s1161 + $0xa0] sm:$0xff]
      %v1183 = vld [vmem:[%s1161 + $0xa8] sm:$0xff]
      %v1184 = vld [vmem:[%s1161 + $0xb0] sm:$0xff]
      %v1185 = vld [vmem:[%s1161 + $0xb8] sm:$0xff]
      %v1186 = vld [vmem:[%s1161 + $0xc0] sm:$0xff]
      %v1187 = vld [vmem:[%s1161 + $0xc8] sm:$0xff]
      %v1188 = vld [vmem:[%s1161 + $0xd0] sm:$0xff]
      %v1189 = vld [vmem:[%s1161 + $0xd8] sm:$0xff]
      %v1190 = vld [vmem:[%s1161 + $0xe0] sm:$0xff]
      %v1191 = vld [vmem:[%s1161 + $0xe8] sm:$0xff]
      %v1192 = vld [vmem:[%s1161 + $0xf0] sm:$0xff]
      %v1193 = vld [vmem:[%s1161 + $0xf8] sm:$0xff]
      %v1194 = vpack.c.b16 %v545, %v543
      %v1195 = vpack.c.b16 %v546, %v544
      %v1196 = vpack.c.b16 %v549, %v547
      %v1197 = vpack.c.b16 %v550, %v548
      %v1198 = vpack.c.b16 %v553, %v551
      %v1199 = vpack.c.b16 %v554, %v552
      %v1238 = vunpack.c.l.b16 %v1162
      %v1239 = vunpack.c.h.b16 %v1162
      %v1240 = vunpack.c.l.b16 %v1163
      %v1241 = vunpack.c.h.b16 %v1163
      %v1242 = vunpack.c.l.b16 %v1164
      %v1243 = vunpack.c.h.b16 %v1164
      %v1244 = vunpack.c.l.b16 %v1165
      %v1245 = vunpack.c.h.b16 %v1165
      %v1246 = vunpack.c.l.b16 %v1166
      %v1247 = vunpack.c.h.b16 %v1166
      %v1248 = vunpack.c.l.b16 %v1167
      %v1249 = vunpack.c.h.b16 %v1167
      %v1250 = vunpack.c.l.b16 %v1168
      %v1251 = vunpack.c.h.b16 %v1168
      %v1252 = vunpack.c.l.b16 %v1169
      %v1253 = vunpack.c.h.b16 %v1169
      %v1254 = vunpack.c.l.b16 %v1170
      %v1255 = vunpack.c.h.b16 %v1170
      %v1256 = vunpack.c.l.b16 %v1171
      %v1257 = vunpack.c.h.b16 %v1171
      %v1258 = vunpack.c.l.b16 %v1172
      %v1259 = vunpack.c.h.b16 %v1172
      %v1260 = vunpack.c.l.b16 %v1173
      %v1261 = vunpack.c.h.b16 %v1173
      %v1262 = vunpack.c.l.b16 %v1174
      %v1263 = vunpack.c.h.b16 %v1174
      %v1264 = vunpack.c.l.b16 %v1175
      %v1265 = vunpack.c.h.b16 %v1175
      %v1266 = vunpack.c.l.b16 %v1176
      %v1267 = vunpack.c.h.b16 %v1176
      %v1268 = vunpack.c.l.b16 %v1177
      %v1269 = vunpack.c.h.b16 %v1177
      %v1270 = vunpack.c.l.b16 %v1178
      %v1271 = vunpack.c.h.b16 %v1178
      %v1272 = vunpack.c.l.b16 %v1179
      %v1273 = vunpack.c.h.b16 %v1179
      %v1274 = vunpack.c.l.b16 %v1180
      %v1275 = vunpack.c.h.b16 %v1180
      %v1276 = vunpack.c.l.b16 %v1181
      %v1277 = vunpack.c.h.b16 %v1181
      %v1278 = vunpack.c.l.b16 %v1182
      %v1279 = vunpack.c.h.b16 %v1182
      %v1280 = vunpack.c.l.b16 %v1183
      %v1281 = vunpack.c.h.b16 %v1183
      %v1282 = vunpack.c.l.b16 %v1184
      %v1283 = vunpack.c.h.b16 %v1184
      %v1284 = vunpack.c.l.b16 %v1185
      %v1285 = vunpack.c.h.b16 %v1185
      %v1286 = vunpack.c.l.b16 %v1186
      %v1287 = vunpack.c.h.b16 %v1186
      %v1288 = vunpack.c.l.b16 %v1187
      %v1289 = vunpack.c.h.b16 %v1187
      %v1290 = vunpack.c.l.b16 %v1188
      %v1291 = vunpack.c.h.b16 %v1188
      %v1292 = vunpack.c.l.b16 %v1189
      %v1293 = vunpack.c.h.b16 %v1189
      %v1294 = vunpack.c.l.b16 %v1190
      %v1295 = vunpack.c.h.b16 %v1190
      %v1296 = vunpack.c.l.b16 %v1191
      %v1297 = vunpack.c.h.b16 %v1191
      %v1298 = vunpack.c.l.b16 %v1192
      %v1299 = vunpack.c.h.b16 %v1192
      %v1300 = vunpack.c.l.b16 %v1193
      %v1301 = vunpack.c.h.b16 %v1193
      %v1302 = vpack.c.b16 %v1240, %v1238
      %v1303 = vpack.c.b16 %v1241, %v1239
      %v1304 = vpack.c.b16 %v1244, %v1242
      %v1305 = vpack.c.b16 %v1245, %v1243
      %v1306 = vpack.c.b16 %v1248, %v1246
      %v1307 = vpack.c.b16 %v1249, %v1247
      %v1308 = vpack.c.b16 %v1252, %v1250
      %v1309 = vpack.c.b16 %v1253, %v1251
      %v1310 = vpack.c.b16 %v1256, %v1254
      %v1311 = vpack.c.b16 %v1257, %v1255
      %v1312 = vpack.c.b16 %v1260, %v1258
      %v1313 = vpack.c.b16 %v1261, %v1259
      %v1314 = vpack.c.b16 %v1264, %v1262
      %v1315 = vpack.c.b16 %v1265, %v1263
      %v1316 = vpack.c.b16 %v1268, %v1266
      %v1317 = vpack.c.b16 %v1269, %v1267
      %v1318 = vpack.c.b16 %v1272, %v1270
      %v1319 = vpack.c.b16 %v1273, %v1271
      %v1320 = vpack.c.b16 %v1276, %v1274
      %v1321 = vpack.c.b16 %v1277, %v1275
      %v1322 = vpack.c.b16 %v1280, %v1278
      %v1323 = vpack.c.b16 %v1281, %v1279
      %v1324 = vpack.c.b16 %v1284, %v1282
      %v1325 = vpack.c.b16 %v1285, %v1283
      %v1326 = vpack.c.b16 %v1288, %v1286
      %v1327 = vpack.c.b16 %v1289, %v1287
      %v1328 = vpack.c.b16 %v1292, %v1290
      %v1329 = vpack.c.b16 %v1293, %v1291
      %v1330 = vpack.c.b16 %v1296, %v1294
      %v1331 = vpack.c.b16 %v1297, %v1295
      %v1332 = vpack.c.b16 %v1300, %v1298
      %v1333 = vpack.c.b16 %v1301, %v1299
      %1366 = vmatpush.bf16.msra.mxu0 %v1316
      %1367 = vmatpush.bf16.msra.mxu0 %v1314
      %1368 = vmatpush.bf16.msra.mxu0 %v1312
      %1369 = vmatpush.bf16.msra.mxu0 %v1310
      %1370 = vmatpush.bf16.msra.mxu0 %v1308
      %1371 = vmatpush.bf16.msra.mxu0 %v1306
      %1372 = vmatpush.bf16.msra.mxu0 %v1304
      %1373 = vmatpush.bf16.msra.mxu0 %v1302
      %1374 = vmatmul.bf16.gmra.mxu0 %v1194
      %v1375 = vpop.f32.mrf.mxu0
      %v1376 = vadd.f32 0.0, %v1375
      %v1377 = vpop.f32.mrf.mxu0
      %v1378 = vadd.f32 0.0, %v1377
      %1379 = vmatmul.bf16.gmra.mxu0 %v1196
      %v1380 = vpop.f32.mrf.mxu0
      %v1381 = vadd.f32 0.0, %v1380
      %v1382 = vpop.f32.mrf.mxu0
      %v1383 = vadd.f32 0.0, %v1382
      %1384 = vmatmul.bf16.gmra.mxu0 %v1198
      %v1385 = vpop.f32.mrf.mxu0
      %v1386 = vadd.f32 0.0, %v1385
      %v1387 = vpop.f32.mrf.mxu0
      %v1388 = vadd.f32 0.0, %v1387
      %1389 = vdwg.mxu0
      %1390 = vmatpush.bf16.msra.mxu0 %v1332
      %1391 = vmatpush.bf16.msra.mxu0 %v1330
      %1392 = vmatpush.bf16.msra.mxu0 %v1328
      %1393 = vmatpush.bf16.msra.mxu0 %v1326
      %1394 = vmatpush.bf16.msra.mxu0 %v1324
      %1395 = vmatpush.bf16.msra.mxu0 %v1322
      %1396 = vmatpush.bf16.msra.mxu0 %v1320
      %1397 = vmatpush.bf16.msra.mxu0 %v1318
      %1398 = vmatmul.bf16.gmra.mxu0 %v1195
      %v1399 = vpop.f32.mrf.mxu0
      %v1400 = vadd.f32 %v1376, %v1399
      %v1401 = vpop.f32.mrf.mxu0
      %v1402 = vadd.f32 %v1378, %v1401
      %1403 = vmatmul.bf16.gmra.mxu0 %v1197
      %v1404 = vpop.f32.mrf.mxu0
      %v1405 = vadd.f32 %v1381, %v1404
      %v1406 = vpop.f32.mrf.mxu0
      %v1407 = vadd.f32 %v1383, %v1406
      %1408 = vmatmul.bf16.gmra.mxu0 %v1199
      %v1409 = vpop.f32.mrf.mxu0
      %v1410 = vadd.f32 %v1386, %v1409
      %v1411 = vpop.f32.mrf.mxu0
      %v1412 = vadd.f32 %v1388, %v1411
      %1413 = vdwg.mxu0
      %1414 = vmatpush.bf16.msra.mxu0 %v1317
      %1415 = vmatpush.bf16.msra.mxu0 %v1315
      %1416 = vmatpush.bf16.msra.mxu0 %v1313
      %1417 = vmatpush.bf16.msra.mxu0 %v1311
      %1418 = vmatpush.bf16.msra.mxu0 %v1309
      %1419 = vmatpush.bf16.msra.mxu0 %v1307
      %1420 = vmatpush.bf16.msra.mxu0 %v1305
      %1421 = vmatpush.bf16.msra.mxu0 %v1303
      %1422 = vmatmul.bf16.gmra.mxu0 %v1194
      %v1423 = vpop.f32.mrf.mxu0
      %v1424 = vadd.f32 0.0, %v1423
      %v1425 = vpop.f32.mrf.mxu0
      %v1426 = vadd.f32 0.0, %v1425
      %1427 = vmatmul.bf16.gmra.mxu0 %v1196
      %v1428 = vpop.f32.mrf.mxu0
      %v1429 = vadd.f32 0.0, %v1428
      %v1430 = vpop.f32.mrf.mxu0
      %v1431 = vadd.f32 0.0, %v1430
      %1432 = vmatmul.bf16.gmra.mxu0 %v1198
      %v1433 = vpop.f32.mrf.mxu0
      %v1434 = vadd.f32 0.0, %v1433
      %v1435 = vpop.f32.mrf.mxu0
      %v1436 = vadd.f32 0.0, %v1435
      %1437 = vdwg.mxu0
      %1438 = vmatpush.bf16.msra.mxu0 %v1333
      %1439 = vmatpush.bf16.msra.mxu0 %v1331
      %1440 = vmatpush.bf16.msra.mxu0 %v1329
      %1441 = vmatpush.bf16.msra.mxu0 %v1327
      %1442 = vmatpush.bf16.msra.mxu0 %v1325
      %1443 = vmatpush.bf16.msra.mxu0 %v1323
      %1444 = vmatpush.bf16.msra.mxu0 %v1321
      %1445 = vmatpush.bf16.msra.mxu0 %v1319
      %1446 = vmatmul.bf16.gmra.mxu0 %v1195
      %v1447 = vpop.f32.mrf.mxu0
      %v1448 = vadd.f32 %v1424, %v1447
      %v1449 = vpop.f32.mrf.mxu0
      %v1450 = vadd.f32 %v1426, %v1449
      %1451 = vmatmul.bf16.gmra.mxu0 %v1197
      %v1452 = vpop.f32.mrf.mxu0
      %v1453 = vadd.f32 %v1429, %v1452
      %v1454 = vpop.f32.mrf.mxu0
      %v1455 = vadd.f32 %v1431, %v1454
      %1456 = vmatmul.bf16.gmra.mxu0 %v1199
      %v1457 = vpop.f32.mrf.mxu0
      %v1458 = vadd.f32 %v1434, %v1457
      %v1459 = vpop.f32.mrf.mxu0
      %v1460 = vadd.f32 %v1436, %v1459
      %1461 = vdwg.mxu0
      %v1462 = vadd.f32 %v1099, %v1400
      %v1463 = vadd.f32 %v1147, %v1448
      %v1464 = vadd.f32 %v1101, %v1402
      %v1465 = vadd.f32 %v1149, %v1450
      %v1466 = vadd.f32 %v1104, %v1405
      %v1467 = vadd.f32 %v1152, %v1453
      %v1468 = vadd.f32 %v1106, %v1407
      %v1469 = vadd.f32 %v1154, %v1455
      %v1470 = vadd.f32 %v1109, %v1410
      %v1471 = vadd.f32 %v1157, %v1458
      %v1472 = vadd.f32 %v1111, %v1412
      %v1473 = vadd.f32 %v1159, %v1460
      %v1474 = vld [vmem:[%s4] sm:$0x3]
      %v1476 = vperm.slane %v1474, 0
      %v1477 = vperm.slane %v1474, 1
      %v1480 = vmul.f32 %v1462, %v1476
      %v1481 = vmul.f32 %v1463, %v1477
      %v1482 = vmul.f32 %v1464, %v1476
      %v1483 = vmul.f32 %v1465, %v1477
      %v1484 = vmul.f32 %v1466, %v1476
      %v1485 = vmul.f32 %v1467, %v1477
      %v1486 = vmul.f32 %v1468, %v1476
      %v1487 = vmul.f32 %v1469, %v1477
      %v1488 = vmul.f32 %v1470, %v1476
      %v1489 = vmul.f32 %v1471, %v1477
      %v1490 = vmul.f32 %v1472, %v1476
      %v1491 = vmul.f32 %v1473, %v1477
      %v1492 = vld [vmem:[%s5] sm:$0x3]
      %v1494 = vperm.slane %v1492, 0
      %v1495 = vperm.slane %v1492, 1
      %v1498 = vadd.f32 %v1480, %v1494
      %v1499 = vadd.f32 %v1481, %v1495
      %v1500 = vadd.f32 %v1482, %v1494
      %v1501 = vadd.f32 %v1483, %v1495
      %v1502 = vadd.f32 %v1484, %v1494
      %v1503 = vadd.f32 %v1485, %v1495
      %v1504 = vadd.f32 %v1486, %v1494
      %v1505 = vadd.f32 %v1487, %v1495
      %v1506 = vadd.f32 %v1488, %v1494
      %v1507 = vadd.f32 %v1489, %v1495
      %v1508 = vadd.f32 %v1490, %v1494
      %v1509 = vadd.f32 %v1491, %v1495
      %v1510 = vmax.f32 %v1498, 0.0
      %v1511 = vmax.f32 %v1499, 0.0
      %v1512 = vmax.f32 %v1500, 0.0
      %v1513 = vmax.f32 %v1501, 0.0
      %v1514 = vmax.f32 %v1502, 0.0
      %v1515 = vmax.f32 %v1503, 0.0
      %v1516 = vmax.f32 %v1504, 0.0
      %v1517 = vmax.f32 %v1505, 0.0
      %v1518 = vmax.f32 %v1506, 0.0
      %v1519 = vmax.f32 %v1507, 0.0
      %v1520 = vmax.f32 %v1508, 0.0
      %v1521 = vmax.f32 %v1509, 0.0
      %s1522 = smul.u32 %s25, 40
      %s1523 = ssub.s32 %s1522, 1
      %v1524 = vlaneseq
      %v1525 = vshrl.u32 %v1524, 7
      %v1526 = vadd.s32 %v1525, 8
      %v1527 = vadd.s32 %v1525, 16
      %v1528 = vadd.s32 %v1525, 24
      %v1529 = vadd.s32 %v1525, 32
      %v1530 = vadd.s32 %v1525, 40
      %v1531 = vstv %s1523
      %v1532 = vadd.s32 %v1531, %v1525
      %v1533 = vadd.s32 %v1531, %v1526
      %v1534 = vadd.s32 %v1531, %v1527
      %v1535 = vadd.s32 %v1531, %v1528
      %v1536 = vadd.s32 %v1531, %v1529
      %v1537 = vadd.s32 %v1531, %v1530
      %vm1538 = vcmp.ge.s32.totalorder %v1532, 0
      %vm1539 = vcmp.ge.s32.totalorder %v1533, 0
      %vm1540 = vcmp.ge.s32.totalorder %v1534, 0
      %vm1541 = vcmp.ge.s32.totalorder %v1535, 0
      %vm1542 = vcmp.ge.s32.totalorder %v1536, 0
      %vm1543 = vcmp.ge.s32.totalorder %v1537, 0
      %vm1544 = vcmp.lt.s32.totalorder %v1532, 33
      %vm1545 = vcmp.lt.s32.totalorder %v1533, 33
      %vm1546 = vcmp.lt.s32.totalorder %v1534, 33
      %vm1547 = vcmp.lt.s32.totalorder %v1535, 33
      %vm1548 = vcmp.lt.s32.totalorder %v1536, 33
      %vm1549 = vcmp.lt.s32.totalorder %v1537, 33
      %vm1550 = vmand %vm1538, %vm1544
      %vm1551 = vmand %vm1539, %vm1545
      %vm1552 = vmand %vm1540, %vm1546
      %vm1553 = vmand %vm1541, %vm1547
      %vm1554 = vmand %vm1542, %vm1548
      %vm1555 = vmand %vm1543, %vm1549
      %v1556 = vsel %vm1550, 1, 0
      %v1557 = vsel %vm1551, 1, 0
      %v1558 = vsel %vm1552, 1, 0
      %v1559 = vsel %vm1553, 1, 0
      %v1560 = vsel %vm1554, 1, 0
      %v1561 = vsel %vm1555, 1, 0
      %vm1562 = vcmp.eq.s32.totalorder %v1556, 1
      %vm1563 = vcmp.eq.s32.totalorder %v1557, 1
      %vm1564 = vcmp.eq.s32.totalorder %v1558, 1
      %vm1565 = vcmp.eq.s32.totalorder %v1559, 1
      %vm1566 = vcmp.eq.s32.totalorder %v1560, 1
      %vm1567 = vcmp.eq.s32.totalorder %v1561, 1
      %v1568 = vsel %vm1562, %v1510, 0.0
      %v1569 = vsel %vm1562, %v1511, 0.0
      %v1570 = vsel %vm1563, %v1512, 0.0
      %v1571 = vsel %vm1563, %v1513, 0.0
      %v1572 = vsel %vm1564, %v1514, 0.0
      %v1573 = vsel %vm1564, %v1515, 0.0
      %v1574 = vsel %vm1565, %v1516, 0.0
      %v1575 = vsel %vm1565, %v1517, 0.0
      %v1576 = vsel %vm1566, %v1518, 0.0
      %v1577 = vsel %vm1566, %v1519, 0.0
      %v1578 = vsel %vm1567, %v1520, 0.0
      %v1579 = vsel %vm1567, %v1521, 0.0
      %v1580 = vpack.c.bf16 %v1569, %v1568
      %v1581 = vpack.c.bf16 %v1571, %v1570
      %v1582 = vpack.c.bf16 %v1573, %v1572
      %v1583 = vpack.c.bf16 %v1575, %v1574
      %v1584 = vpack.c.bf16 %v1577, %v1576
      %v1585 = vpack.c.bf16 %v1579, %v1578
      %v1586 = vld [vmem:[%s6] sm:$0xff]
      %v1587 = vld [vmem:[%s6 + $0x8] sm:$0xff]
      %v1588 = vld [vmem:[%s6 + $0x10] sm:$0xff]
      %v1589 = vld [vmem:[%s6 + $0x18] sm:$0xff]
      %v1590 = vld [vmem:[%s6 + $0x20] sm:$0xff]
      %v1591 = vld [vmem:[%s6 + $0x28] sm:$0xff]
      %v1592 = vld [vmem:[%s6 + $0x30] sm:$0xff]
      %v1593 = vld [vmem:[%s6 + $0x38] sm:$0xff]
      %v1594 = vld [vmem:[%s6 + $0x40] sm:$0xff]
      %v1595 = vld [vmem:[%s6 + $0x48] sm:$0xff]
      %v1596 = vld [vmem:[%s6 + $0x50] sm:$0xff]
      %v1597 = vld [vmem:[%s6 + $0x58] sm:$0xff]
      %v1598 = vld [vmem:[%s6 + $0x60] sm:$0xff]
      %v1599 = vld [vmem:[%s6 + $0x68] sm:$0xff]
      %v1600 = vld [vmem:[%s6 + $0x70] sm:$0xff]
      %v1601 = vld [vmem:[%s6 + $0x78] sm:$0xff]
      %v1602 = vld [vmem:[%s6 + $0x80] sm:$0xff]
      %v1603 = vld [vmem:[%s6 + $0x88] sm:$0xff]
      %v1604 = vld [vmem:[%s6 + $0x90] sm:$0xff]
      %v1605 = vld [vmem:[%s6 + $0x98] sm:$0xff]
      %v1606 = vld [vmem:[%s6 + $0xa0] sm:$0xff]
      %v1607 = vld [vmem:[%s6 + $0xa8] sm:$0xff]
      %v1608 = vld [vmem:[%s6 + $0xb0] sm:$0xff]
      %v1609 = vld [vmem:[%s6 + $0xb8] sm:$0xff]
      %v1610 = vld [vmem:[%s6 + $0xc0] sm:$0xff]
      %v1611 = vld [vmem:[%s6 + $0xc8] sm:$0xff]
      %v1612 = vld [vmem:[%s6 + $0xd0] sm:$0xff]
      %v1613 = vld [vmem:[%s6 + $0xd8] sm:$0xff]
      %v1614 = vld [vmem:[%s6 + $0xe0] sm:$0xff]
      %v1615 = vld [vmem:[%s6 + $0xe8] sm:$0xff]
      %v1616 = vld [vmem:[%s6 + $0xf0] sm:$0xff]
      %v1617 = vld [vmem:[%s6 + $0xf8] sm:$0xff]
      %s1618 = scalar_lea.vmem %s6, 256
      %v1619 = vld [vmem:[%s1618] sm:$0xff]
      %v1620 = vld [vmem:[%s1618 + $0x8] sm:$0xff]
      %v1621 = vld [vmem:[%s1618 + $0x10] sm:$0xff]
      %v1622 = vld [vmem:[%s1618 + $0x18] sm:$0xff]
      %v1623 = vld [vmem:[%s1618 + $0x20] sm:$0xff]
      %v1624 = vld [vmem:[%s1618 + $0x28] sm:$0xff]
      %v1625 = vld [vmem:[%s1618 + $0x30] sm:$0xff]
      %v1626 = vld [vmem:[%s1618 + $0x38] sm:$0xff]
      %v1627 = vld [vmem:[%s1618 + $0x40] sm:$0xff]
      %v1628 = vld [vmem:[%s1618 + $0x48] sm:$0xff]
      %v1629 = vld [vmem:[%s1618 + $0x50] sm:$0xff]
      %v1630 = vld [vmem:[%s1618 + $0x58] sm:$0xff]
      %v1631 = vld [vmem:[%s1618 + $0x60] sm:$0xff]
      %v1632 = vld [vmem:[%s1618 + $0x68] sm:$0xff]
      %v1633 = vld [vmem:[%s1618 + $0x70] sm:$0xff]
      %v1634 = vld [vmem:[%s1618 + $0x78] sm:$0xff]
      %v1635 = vld [vmem:[%s1618 + $0x80] sm:$0xff]
      %v1636 = vld [vmem:[%s1618 + $0x88] sm:$0xff]
      %v1637 = vld [vmem:[%s1618 + $0x90] sm:$0xff]
      %v1638 = vld [vmem:[%s1618 + $0x98] sm:$0xff]
      %v1639 = vld [vmem:[%s1618 + $0xa0] sm:$0xff]
      %v1640 = vld [vmem:[%s1618 + $0xa8] sm:$0xff]
      %v1641 = vld [vmem:[%s1618 + $0xb0] sm:$0xff]
      %v1642 = vld [vmem:[%s1618 + $0xb8] sm:$0xff]
      %v1643 = vld [vmem:[%s1618 + $0xc0] sm:$0xff]
      %v1644 = vld [vmem:[%s1618 + $0xc8] sm:$0xff]
      %v1645 = vld [vmem:[%s1618 + $0xd0] sm:$0xff]
      %v1646 = vld [vmem:[%s1618 + $0xd8] sm:$0xff]
      %v1647 = vld [vmem:[%s1618 + $0xe0] sm:$0xff]
      %v1648 = vld [vmem:[%s1618 + $0xe8] sm:$0xff]
      %v1649 = vld [vmem:[%s1618 + $0xf0] sm:$0xff]
      %v1650 = vld [vmem:[%s1618 + $0xf8] sm:$0xff]
      %v1657 = vunpack.c.l.b16 %v1580
      %v1658 = vunpack.c.h.b16 %v1580
      %v1659 = vunpack.c.l.b16 %v1581
      %v1660 = vunpack.c.h.b16 %v1581
      %v1661 = vunpack.c.l.b16 %v1582
      %v1662 = vunpack.c.h.b16 %v1582
      %v1663 = vunpack.c.l.b16 %v1583
      %v1664 = vunpack.c.h.b16 %v1583
      %v1665 = vunpack.c.l.b16 %v1584
      %v1666 = vunpack.c.h.b16 %v1584
      %v1667 = vunpack.c.l.b16 %v1585
      %v1668 = vunpack.c.h.b16 %v1585
      %v1669 = vpack.c.b16 %v1659, %v1657
      %v1670 = vpack.c.b16 %v1660, %v1658
      %v1671 = vpack.c.b16 %v1663, %v1661
      %v1672 = vpack.c.b16 %v1664, %v1662
      %v1673 = vpack.c.b16 %v1667, %v1665
      %v1674 = vpack.c.b16 %v1668, %v1666
      %vm1675 = vsmask.f32 7424
      %v1677 = vshrl.u32 %v1669, 16
      %v1679 = vshll.u32 %v1669, 16
      %v1681 = vrot.slane %v1679, 1
      %v1682 = vor.u32 %v1677, %v1681
      %v1684 = vshll.u32 %v1671, 16
      %v1686 = vrot.slane %v1684, 1
      %v1687 = vsel %vm1675, %v1682, %v1686
      %v1689 = vshrl.u32 %v1670, 16
      %v1691 = vshll.u32 %v1670, 16
      %v1693 = vrot.slane %v1691, 1
      %v1694 = vor.u32 %v1689, %v1693
      %v1696 = vshll.u32 %v1672, 16
      %v1698 = vrot.slane %v1696, 1
      %v1699 = vsel %vm1675, %v1694, %v1698
      %v1700 = vshrl.u32 %v1671, 16
      %v1702 = vor.u32 %v1700, %v1686
      %v1704 = vshll.u32 %v1673, 16
      %v1706 = vrot.slane %v1704, 1
      %v1707 = vsel %vm1675, %v1702, %v1706
      %v1708 = vshrl.u32 %v1672, 16
      %v1710 = vor.u32 %v1708, %v1698
      %v1712 = vshll.u32 %v1674, 16
      %v1714 = vrot.slane %v1712, 1
      %v1715 = vsel %vm1675, %v1710, %v1714
      %v1716 = vshrl.u32 %v1673, 16
      %v1718 = vor.u32 %v1716, %v1706
      %v1719 = vshrl.u32 %v1674, 16
      %v1721 = vor.u32 %v1719, %v1714
      %v1760 = vunpack.c.l.b16 %v1619
      %v1761 = vunpack.c.h.b16 %v1619
      %v1762 = vunpack.c.l.b16 %v1620
      %v1763 = vunpack.c.h.b16 %v1620
      %v1764 = vunpack.c.l.b16 %v1621
      %v1765 = vunpack.c.h.b16 %v1621
      %v1766 = vunpack.c.l.b16 %v1622
      %v1767 = vunpack.c.h.b16 %v1622
      %v1768 = vunpack.c.l.b16 %v1623
      %v1769 = vunpack.c.h.b16 %v1623
      %v1770 = vunpack.c.l.b16 %v1624
      %v1771 = vunpack.c.h.b16 %v1624
      %v1772 = vunpack.c.l.b16 %v1625
      %v1773 = vunpack.c.h.b16 %v1625
      %v1774 = vunpack.c.l.b16 %v1626
      %v1775 = vunpack.c.h.b16 %v1626
      %v1776 = vunpack.c.l.b16 %v1627
      %v1777 = vunpack.c.h.b16 %v1627
      %v1778 = vunpack.c.l.b16 %v1628
      %v1779 = vunpack.c.h.b16 %v1628
      %v1780 = vunpack.c.l.b16 %v1629
      %v1781 = vunpack.c.h.b16 %v1629
      %v1782 = vunpack.c.l.b16 %v1630
      %v1783 = vunpack.c.h.b16 %v1630
      %v1784 = vunpack.c.l.b16 %v1631
      %v1785 = vunpack.c.h.b16 %v1631
      %v1786 = vunpack.c.l.b16 %v1632
      %v1787 = vunpack.c.h.b16 %v1632
      %v1788 = vunpack.c.l.b16 %v1633
      %v1789 = vunpack.c.h.b16 %v1633
      %v1790 = vunpack.c.l.b16 %v1634
      %v1791 = vunpack.c.h.b16 %v1634
      %v1792 = vunpack.c.l.b16 %v1635
      %v1793 = vunpack.c.h.b16 %v1635
      %v1794 = vunpack.c.l.b16 %v1636
      %v1795 = vunpack.c.h.b16 %v1636
      %v1796 = vunpack.c.l.b16 %v1637
      %v1797 = vunpack.c.h.b16 %v1637
      %v1798 = vunpack.c.l.b16 %v1638
      %v1799 = vunpack.c.h.b16 %v1638
      %v1800 = vunpack.c.l.b16 %v1639
      %v1801 = vunpack.c.h.b16 %v1639
      %v1802 = vunpack.c.l.b16 %v1640
      %v1803 = vunpack.c.h.b16 %v1640
      %v1804 = vunpack.c.l.b16 %v1641
      %v1805 = vunpack.c.h.b16 %v1641
      %v1806 = vunpack.c.l.b16 %v1642
      %v1807 = vunpack.c.h.b16 %v1642
      %v1808 = vunpack.c.l.b16 %v1643
      %v1809 = vunpack.c.h.b16 %v1643
      %v1810 = vunpack.c.l.b16 %v1644
      %v1811 = vunpack.c.h.b16 %v1644
      %v1812 = vunpack.c.l.b16 %v1645
      %v1813 = vunpack.c.h.b16 %v1645
      %v1814 = vunpack.c.l.b16 %v1646
      %v1815 = vunpack.c.h.b16 %v1646
      %v1816 = vunpack.c.l.b16 %v1647
      %v1817 = vunpack.c.h.b16 %v1647
      %v1818 = vunpack.c.l.b16 %v1648
      %v1819 = vunpack.c.h.b16 %v1648
      %v1820 = vunpack.c.l.b16 %v1649
      %v1821 = vunpack.c.h.b16 %v1649
      %v1822 = vunpack.c.l.b16 %v1650
      %v1823 = vunpack.c.h.b16 %v1650
      %v1824 = vpack.c.b16 %v1762, %v1760
      %v1825 = vpack.c.b16 %v1763, %v1761
      %v1826 = vpack.c.b16 %v1766, %v1764
      %v1827 = vpack.c.b16 %v1767, %v1765
      %v1828 = vpack.c.b16 %v1770, %v1768
      %v1829 = vpack.c.b16 %v1771, %v1769
      %v1830 = vpack.c.b16 %v1774, %v1772
      %v1831 = vpack.c.b16 %v1775, %v1773
      %v1832 = vpack.c.b16 %v1778, %v1776
      %v1833 = vpack.c.b16 %v1779, %v1777
      %v1834 = vpack.c.b16 %v1782, %v1780
      %v1835 = vpack.c.b16 %v1783, %v1781
      %v1836 = vpack.c.b16 %v1786, %v1784
      %v1837 = vpack.c.b16 %v1787, %v1785
      %v1838 = vpack.c.b16 %v1790, %v1788
      %v1839 = vpack.c.b16 %v1791, %v1789
      %v1840 = vpack.c.b16 %v1794, %v1792
      %v1841 = vpack.c.b16 %v1795, %v1793
      %v1842 = vpack.c.b16 %v1798, %v1796
      %v1843 = vpack.c.b16 %v1799, %v1797
      %v1844 = vpack.c.b16 %v1802, %v1800
      %v1845 = vpack.c.b16 %v1803, %v1801
      %v1846 = vpack.c.b16 %v1806, %v1804
      %v1847 = vpack.c.b16 %v1807, %v1805
      %v1848 = vpack.c.b16 %v1810, %v1808
      %v1849 = vpack.c.b16 %v1811, %v1809
      %v1850 = vpack.c.b16 %v1814, %v1812
      %v1851 = vpack.c.b16 %v1815, %v1813
      %v1852 = vpack.c.b16 %v1818, %v1816
      %v1853 = vpack.c.b16 %v1819, %v1817
      %v1854 = vpack.c.b16 %v1822, %v1820
      %v1855 = vpack.c.b16 %v1823, %v1821
      %1888 = vmatpush.bf16.msra.mxu0 %v1838
      %1889 = vmatpush.bf16.msra.mxu0 %v1836
      %1890 = vmatpush.bf16.msra.mxu0 %v1834
      %1891 = vmatpush.bf16.msra.mxu0 %v1832
      %1892 = vmatpush.bf16.msra.mxu0 %v1830
      %1893 = vmatpush.bf16.msra.mxu0 %v1828
      %1894 = vmatpush.bf16.msra.mxu0 %v1826
      %1895 = vmatpush.bf16.msra.mxu0 %v1824
      %1896 = vmatmul.bf16.gmra.mxu0 %v1687
      %v1897 = vpop.f32.mrf.mxu0
      %v1898 = vadd.f32 0.0, %v1897
      %v1899 = vpop.f32.mrf.mxu0
      %v1900 = vadd.f32 0.0, %v1899
      %1901 = vmatmul.bf16.gmra.mxu0 %v1707
      %v1902 = vpop.f32.mrf.mxu0
      %v1903 = vadd.f32 0.0, %v1902
      %v1904 = vpop.f32.mrf.mxu0
      %v1905 = vadd.f32 0.0, %v1904
      %1906 = vmatmul.bf16.gmra.mxu0 %v1718
      %v1907 = vpop.f32.mrf.mxu0
      %v1908 = vadd.f32 0.0, %v1907
      %v1909 = vpop.f32.mrf.mxu0
      %1910 = vdwg.mxu0
      %1911 = vmatpush.bf16.msra.mxu0 %v1854
      %1912 = vmatpush.bf16.msra.mxu0 %v1852
      %1913 = vmatpush.bf16.msra.mxu0 %v1850
      %1914 = vmatpush.bf16.msra.mxu0 %v1848
      %1915 = vmatpush.bf16.msra.mxu0 %v1846
      %1916 = vmatpush.bf16.msra.mxu0 %v1844
      %1917 = vmatpush.bf16.msra.mxu0 %v1842
      %1918 = vmatpush.bf16.msra.mxu0 %v1840
      %1919 = vmatmul.bf16.gmra.mxu0 %v1699
      %v1920 = vpop.f32.mrf.mxu0
      %v1921 = vadd.f32 %v1898, %v1920
      %v1922 = vpop.f32.mrf.mxu0
      %v1923 = vadd.f32 %v1900, %v1922
      %1924 = vmatmul.bf16.gmra.mxu0 %v1715
      %v1925 = vpop.f32.mrf.mxu0
      %v1926 = vadd.f32 %v1903, %v1925
      %v1927 = vpop.f32.mrf.mxu0
      %v1928 = vadd.f32 %v1905, %v1927
      %1929 = vmatmul.bf16.gmra.mxu0 %v1721
      %v1930 = vpop.f32.mrf.mxu0
      %v1931 = vadd.f32 %v1908, %v1930
      %v1932 = vpop.f32.mrf.mxu0
      %1933 = vdwg.mxu0
      %1934 = vmatpush.bf16.msra.mxu0 %v1839
      %1935 = vmatpush.bf16.msra.mxu0 %v1837
      %1936 = vmatpush.bf16.msra.mxu0 %v1835
      %1937 = vmatpush.bf16.msra.mxu0 %v1833
      %1938 = vmatpush.bf16.msra.mxu0 %v1831
      %1939 = vmatpush.bf16.msra.mxu0 %v1829
      %1940 = vmatpush.bf16.msra.mxu0 %v1827
      %1941 = vmatpush.bf16.msra.mxu0 %v1825
      %1942 = vmatmul.bf16.gmra.mxu0 %v1687
      %v1943 = vpop.f32.mrf.mxu0
      %v1944 = vadd.f32 0.0, %v1943
      %v1945 = vpop.f32.mrf.mxu0
      %v1946 = vadd.f32 0.0, %v1945
      %1947 = vmatmul.bf16.gmra.mxu0 %v1707
      %v1948 = vpop.f32.mrf.mxu0
      %v1949 = vadd.f32 0.0, %v1948
      %v1950 = vpop.f32.mrf.mxu0
      %v1951 = vadd.f32 0.0, %v1950
      %1952 = vmatmul.bf16.gmra.mxu0 %v1718
      %v1953 = vpop.f32.mrf.mxu0
      %v1954 = vadd.f32 0.0, %v1953
      %v1955 = vpop.f32.mrf.mxu0
      %1956 = vdwg.mxu0
      %1957 = vmatpush.bf16.msra.mxu0 %v1855
      %1958 = vmatpush.bf16.msra.mxu0 %v1853
      %1959 = vmatpush.bf16.msra.mxu0 %v1851
      %1960 = vmatpush.bf16.msra.mxu0 %v1849
      %1961 = vmatpush.bf16.msra.mxu0 %v1847
      %1962 = vmatpush.bf16.msra.mxu0 %v1845
      %1963 = vmatpush.bf16.msra.mxu0 %v1843
      %1964 = vmatpush.bf16.msra.mxu0 %v1841
      %1965 = vmatmul.bf16.gmra.mxu0 %v1699
      %v1966 = vpop.f32.mrf.mxu0
      %v1967 = vadd.f32 %v1944, %v1966
      %v1968 = vpop.f32.mrf.mxu0
      %v1969 = vadd.f32 %v1946, %v1968
      %1970 = vmatmul.bf16.gmra.mxu0 %v1715
      %v1971 = vpop.f32.mrf.mxu0
      %v1972 = vadd.f32 %v1949, %v1971
      %v1973 = vpop.f32.mrf.mxu0
      %v1974 = vadd.f32 %v1951, %v1973
      %1975 = vmatmul.bf16.gmra.mxu0 %v1721
      %v1976 = vpop.f32.mrf.mxu0
      %v1977 = vadd.f32 %v1954, %v1976
      %v1978 = vpop.f32.mrf.mxu0
      %1979 = vdwg.mxu0
      %v1980 = vpack.c.b16 %v1665, %v1665
      %v1981 = vpack.c.b16 %v1666, %v1666
      %v2020 = vunpack.c.l.b16 %v1586
      %v2021 = vunpack.c.h.b16 %v1586
      %v2022 = vunpack.c.l.b16 %v1587
      %v2023 = vunpack.c.h.b16 %v1587
      %v2024 = vunpack.c.l.b16 %v1588
      %v2025 = vunpack.c.h.b16 %v1588
      %v2026 = vunpack.c.l.b16 %v1589
      %v2027 = vunpack.c.h.b16 %v1589
      %v2028 = vunpack.c.l.b16 %v1590
      %v2029 = vunpack.c.h.b16 %v1590
      %v2030 = vunpack.c.l.b16 %v1591
      %v2031 = vunpack.c.h.b16 %v1591
      %v2032 = vunpack.c.l.b16 %v1592
      %v2033 = vunpack.c.h.b16 %v1592
      %v2034 = vunpack.c.l.b16 %v1593
      %v2035 = vunpack.c.h.b16 %v1593
      %v2036 = vunpack.c.l.b16 %v1594
      %v2037 = vunpack.c.h.b16 %v1594
      %v2038 = vunpack.c.l.b16 %v1595
      %v2039 = vunpack.c.h.b16 %v1595
      %v2040 = vunpack.c.l.b16 %v1596
      %v2041 = vunpack.c.h.b16 %v1596
      %v2042 = vunpack.c.l.b16 %v1597
      %v2043 = vunpack.c.h.b16 %v1597
      %v2044 = vunpack.c.l.b16 %v1598
      %v2045 = vunpack.c.h.b16 %v1598
      %v2046 = vunpack.c.l.b16 %v1599
      %v2047 = vunpack.c.h.b16 %v1599
      %v2048 = vunpack.c.l.b16 %v1600
      %v2049 = vunpack.c.h.b16 %v1600
      %v2050 = vunpack.c.l.b16 %v1601
      %v2051 = vunpack.c.h.b16 %v1601
      %v2052 = vunpack.c.l.b16 %v1602
      %v2053 = vunpack.c.h.b16 %v1602
      %v2054 = vunpack.c.l.b16 %v1603
      %v2055 = vunpack.c.h.b16 %v1603
      %v2056 = vunpack.c.l.b16 %v1604
      %v2057 = vunpack.c.h.b16 %v1604
      %v2058 = vunpack.c.l.b16 %v1605
      %v2059 = vunpack.c.h.b16 %v1605
      %v2060 = vunpack.c.l.b16 %v1606
      %v2061 = vunpack.c.h.b16 %v1606
      %v2062 = vunpack.c.l.b16 %v1607
      %v2063 = vunpack.c.h.b16 %v1607
      %v2064 = vunpack.c.l.b16 %v1608
      %v2065 = vunpack.c.h.b16 %v1608
      %v2066 = vunpack.c.l.b16 %v1609
      %v2067 = vunpack.c.h.b16 %v1609
      %v2068 = vunpack.c.l.b16 %v1610
      %v2069 = vunpack.c.h.b16 %v1610
      %v2070 = vunpack.c.l.b16 %v1611
      %v2071 = vunpack.c.h.b16 %v1611
      %v2072 = vunpack.c.l.b16 %v1612
      %v2073 = vunpack.c.h.b16 %v1612
      %v2074 = vunpack.c.l.b16 %v1613
      %v2075 = vunpack.c.h.b16 %v1613
      %v2076 = vunpack.c.l.b16 %v1614
      %v2077 = vunpack.c.h.b16 %v1614
      %v2078 = vunpack.c.l.b16 %v1615
      %v2079 = vunpack.c.h.b16 %v1615
      %v2080 = vunpack.c.l.b16 %v1616
      %v2081 = vunpack.c.h.b16 %v1616
      %v2082 = vunpack.c.l.b16 %v1617
      %v2083 = vunpack.c.h.b16 %v1617
      %v2084 = vpack.c.b16 %v2022, %v2020
      %v2085 = vpack.c.b16 %v2023, %v2021
      %v2086 = vpack.c.b16 %v2026, %v2024
      %v2087 = vpack.c.b16 %v2027, %v2025
      %v2088 = vpack.c.b16 %v2030, %v2028
      %v2089 = vpack.c.b16 %v2031, %v2029
      %v2090 = vpack.c.b16 %v2034, %v2032
      %v2091 = vpack.c.b16 %v2035, %v2033
      %v2092 = vpack.c.b16 %v2038, %v2036
      %v2093 = vpack.c.b16 %v2039, %v2037
      %v2094 = vpack.c.b16 %v2042, %v2040
      %v2095 = vpack.c.b16 %v2043, %v2041
      %v2096 = vpack.c.b16 %v2046, %v2044
      %v2097 = vpack.c.b16 %v2047, %v2045
      %v2098 = vpack.c.b16 %v2050, %v2048
      %v2099 = vpack.c.b16 %v2051, %v2049
      %v2100 = vpack.c.b16 %v2054, %v2052
      %v2101 = vpack.c.b16 %v2055, %v2053
      %v2102 = vpack.c.b16 %v2058, %v2056
      %v2103 = vpack.c.b16 %v2059, %v2057
      %v2104 = vpack.c.b16 %v2062, %v2060
      %v2105 = vpack.c.b16 %v2063, %v2061
      %v2106 = vpack.c.b16 %v2066, %v2064
      %v2107 = vpack.c.b16 %v2067, %v2065
      %v2108 = vpack.c.b16 %v2070, %v2068
      %v2109 = vpack.c.b16 %v2071, %v2069
      %v2110 = vpack.c.b16 %v2074, %v2072
      %v2111 = vpack.c.b16 %v2075, %v2073
      %v2112 = vpack.c.b16 %v2078, %v2076
      %v2113 = vpack.c.b16 %v2079, %v2077
      %v2114 = vpack.c.b16 %v2082, %v2080
      %v2115 = vpack.c.b16 %v2083, %v2081
      %2148 = vmatpush.bf16.msra.mxu0 %v2098
      %2149 = vmatpush.bf16.msra.mxu0 %v2096
      %2150 = vmatpush.bf16.msra.mxu0 %v2094
      %2151 = vmatpush.bf16.msra.mxu0 %v2092
      %2152 = vmatpush.bf16.msra.mxu0 %v2090
      %2153 = vmatpush.bf16.msra.mxu0 %v2088
      %2154 = vmatpush.bf16.msra.mxu0 %v2086
      %2155 = vmatpush.bf16.msra.mxu0 %v2084
      %2156 = vmatmul.bf16.gmra.mxu0 %v1669
      %v2157 = vpop.f32.mrf.mxu0
      %v2158 = vadd.f32 %v1921, %v2157
      %v2159 = vpop.f32.mrf.mxu0
      %v2160 = vadd.f32 %v1923, %v2159
      %2161 = vmatmul.bf16.gmra.mxu0 %v1671
      %v2162 = vpop.f32.mrf.mxu0
      %v2163 = vadd.f32 %v1926, %v2162
      %v2164 = vpop.f32.mrf.mxu0
      %v2165 = vadd.f32 %v1928, %v2164
      %2166 = vmatmul.bf16.gmra.mxu0 %v1980
      %v2167 = vpop.f32.mrf.mxu0
      %v2168 = vadd.f32 %v1931, %v2167
      %v2169 = vpop.f32.mrf.mxu0
      %2170 = vdwg.mxu0
      %2171 = vmatpush.bf16.msra.mxu0 %v2114
      %2172 = vmatpush.bf16.msra.mxu0 %v2112
      %2173 = vmatpush.bf16.msra.mxu0 %v2110
      %2174 = vmatpush.bf16.msra.mxu0 %v2108
      %2175 = vmatpush.bf16.msra.mxu0 %v2106
      %2176 = vmatpush.bf16.msra.mxu0 %v2104
      %2177 = vmatpush.bf16.msra.mxu0 %v2102
      %2178 = vmatpush.bf16.msra.mxu0 %v2100
      %2179 = vmatmul.bf16.gmra.mxu0 %v1670
      %v2180 = vpop.f32.mrf.mxu0
      %v2181 = vadd.f32 %v2158, %v2180
      %v2182 = vpop.f32.mrf.mxu0
      %v2183 = vadd.f32 %v2160, %v2182
      %2184 = vmatmul.bf16.gmra.mxu0 %v1672
      %v2185 = vpop.f32.mrf.mxu0
      %v2186 = vadd.f32 %v2163, %v2185
      %v2187 = vpop.f32.mrf.mxu0
      %v2188 = vadd.f32 %v2165, %v2187
      %2189 = vmatmul.bf16.gmra.mxu0 %v1981
      %v2190 = vpop.f32.mrf.mxu0
      %v2191 = vadd.f32 %v2168, %v2190
      %v2192 = vpop.f32.mrf.mxu0
      %2193 = vdwg.mxu0
      %2194 = vmatpush.bf16.msra.mxu0 %v2099
      %2195 = vmatpush.bf16.msra.mxu0 %v2097
      %2196 = vmatpush.bf16.msra.mxu0 %v2095
      %2197 = vmatpush.bf16.msra.mxu0 %v2093
      %2198 = vmatpush.bf16.msra.mxu0 %v2091
      %2199 = vmatpush.bf16.msra.mxu0 %v2089
      %2200 = vmatpush.bf16.msra.mxu0 %v2087
      %2201 = vmatpush.bf16.msra.mxu0 %v2085
      %2202 = vmatmul.bf16.gmra.mxu0 %v1669
      %v2203 = vpop.f32.mrf.mxu0
      %v2204 = vadd.f32 %v1967, %v2203
      %v2205 = vpop.f32.mrf.mxu0
      %v2206 = vadd.f32 %v1969, %v2205
      %2207 = vmatmul.bf16.gmra.mxu0 %v1671
      %v2208 = vpop.f32.mrf.mxu0
      %v2209 = vadd.f32 %v1972, %v2208
      %v2210 = vpop.f32.mrf.mxu0
      %v2211 = vadd.f32 %v1974, %v2210
      %2212 = vmatmul.bf16.gmra.mxu0 %v1980
      %v2213 = vpop.f32.mrf.mxu0
      %v2214 = vadd.f32 %v1977, %v2213
      %v2215 = vpop.f32.mrf.mxu0
      %2216 = vdwg.mxu0
      %2217 = vmatpush.bf16.msra.mxu0 %v2115
      %2218 = vmatpush.bf16.msra.mxu0 %v2113
      %2219 = vmatpush.bf16.msra.mxu0 %v2111
      %2220 = vmatpush.bf16.msra.mxu0 %v2109
      %2221 = vmatpush.bf16.msra.mxu0 %v2107
      %2222 = vmatpush.bf16.msra.mxu0 %v2105
      %2223 = vmatpush.bf16.msra.mxu0 %v2103
      %2224 = vmatpush.bf16.msra.mxu0 %v2101
      %2225 = vmatmul.bf16.gmra.mxu0 %v1670
      %v2226 = vpop.f32.mrf.mxu0
      %v2227 = vadd.f32 %v2204, %v2226
      %v2228 = vpop.f32.mrf.mxu0
      %v2229 = vadd.f32 %v2206, %v2228
      %2230 = vmatmul.bf16.gmra.mxu0 %v1672
      %v2231 = vpop.f32.mrf.mxu0
      %v2232 = vadd.f32 %v2209, %v2231
      %v2233 = vpop.f32.mrf.mxu0
      %v2234 = vadd.f32 %v2211, %v2233
      %2235 = vmatmul.bf16.gmra.mxu0 %v1981
      %v2236 = vpop.f32.mrf.mxu0
      %v2237 = vadd.f32 %v2214, %v2236
      %v2238 = vpop.f32.mrf.mxu0
      %2239 = vdwg.mxu0
      %s2240 = scalar_lea.vmem %s6, 512
      %v2241 = vld [vmem:[%s2240] sm:$0xff]
      %v2242 = vld [vmem:[%s2240 + $0x8] sm:$0xff]
      %v2243 = vld [vmem:[%s2240 + $0x10] sm:$0xff]
      %v2244 = vld [vmem:[%s2240 + $0x18] sm:$0xff]
      %v2245 = vld [vmem:[%s2240 + $0x20] sm:$0xff]
      %v2246 = vld [vmem:[%s2240 + $0x28] sm:$0xff]
      %v2247 = vld [vmem:[%s2240 + $0x30] sm:$0xff]
      %v2248 = vld [vmem:[%s2240 + $0x38] sm:$0xff]
      %v2249 = vld [vmem:[%s2240 + $0x40] sm:$0xff]
      %v2250 = vld [vmem:[%s2240 + $0x48] sm:$0xff]
      %v2251 = vld [vmem:[%s2240 + $0x50] sm:$0xff]
      %v2252 = vld [vmem:[%s2240 + $0x58] sm:$0xff]
      %v2253 = vld [vmem:[%s2240 + $0x60] sm:$0xff]
      %v2254 = vld [vmem:[%s2240 + $0x68] sm:$0xff]
      %v2255 = vld [vmem:[%s2240 + $0x70] sm:$0xff]
      %v2256 = vld [vmem:[%s2240 + $0x78] sm:$0xff]
      %v2257 = vld [vmem:[%s2240 + $0x80] sm:$0xff]
      %v2258 = vld [vmem:[%s2240 + $0x88] sm:$0xff]
      %v2259 = vld [vmem:[%s2240 + $0x90] sm:$0xff]
      %v2260 = vld [vmem:[%s2240 + $0x98] sm:$0xff]
      %v2261 = vld [vmem:[%s2240 + $0xa0] sm:$0xff]
      %v2262 = vld [vmem:[%s2240 + $0xa8] sm:$0xff]
      %v2263 = vld [vmem:[%s2240 + $0xb0] sm:$0xff]
      %v2264 = vld [vmem:[%s2240 + $0xb8] sm:$0xff]
      %v2265 = vld [vmem:[%s2240 + $0xc0] sm:$0xff]
      %v2266 = vld [vmem:[%s2240 + $0xc8] sm:$0xff]
      %v2267 = vld [vmem:[%s2240 + $0xd0] sm:$0xff]
      %v2268 = vld [vmem:[%s2240 + $0xd8] sm:$0xff]
      %v2269 = vld [vmem:[%s2240 + $0xe0] sm:$0xff]
      %v2270 = vld [vmem:[%s2240 + $0xe8] sm:$0xff]
      %v2271 = vld [vmem:[%s2240 + $0xf0] sm:$0xff]
      %v2272 = vld [vmem:[%s2240 + $0xf8] sm:$0xff]
      %vm2273 = vcmask 1046528
      %v2274 = vrot.slane %v1669, 1
      %v2275 = vrot.slane %v1671, 1
      %v2276 = vsel %vm2273, %v2274, %v2275
      %v2277 = vrot.slane %v1670, 1
      %v2278 = vrot.slane %v1672, 1
      %v2279 = vsel %vm2273, %v2277, %v2278
      %v2280 = vrot.slane %v1673, 1
      %v2281 = vsel %vm2273, %v2275, %v2280
      %v2282 = vrot.slane %v1674, 1
      %v2283 = vsel %vm2273, %v2278, %v2282
      %v2322 = vunpack.c.l.b16 %v2241
      %v2323 = vunpack.c.h.b16 %v2241
      %v2324 = vunpack.c.l.b16 %v2242
      %v2325 = vunpack.c.h.b16 %v2242
      %v2326 = vunpack.c.l.b16 %v2243
      %v2327 = vunpack.c.h.b16 %v2243
      %v2328 = vunpack.c.l.b16 %v2244
      %v2329 = vunpack.c.h.b16 %v2244
      %v2330 = vunpack.c.l.b16 %v2245
      %v2331 = vunpack.c.h.b16 %v2245
      %v2332 = vunpack.c.l.b16 %v2246
      %v2333 = vunpack.c.h.b16 %v2246
      %v2334 = vunpack.c.l.b16 %v2247
      %v2335 = vunpack.c.h.b16 %v2247
      %v2336 = vunpack.c.l.b16 %v2248
      %v2337 = vunpack.c.h.b16 %v2248
      %v2338 = vunpack.c.l.b16 %v2249
      %v2339 = vunpack.c.h.b16 %v2249
      %v2340 = vunpack.c.l.b16 %v2250
      %v2341 = vunpack.c.h.b16 %v2250
      %v2342 = vunpack.c.l.b16 %v2251
      %v2343 = vunpack.c.h.b16 %v2251
      %v2344 = vunpack.c.l.b16 %v2252
      %v2345 = vunpack.c.h.b16 %v2252
      %v2346 = vunpack.c.l.b16 %v2253
      %v2347 = vunpack.c.h.b16 %v2253
      %v2348 = vunpack.c.l.b16 %v2254
      %v2349 = vunpack.c.h.b16 %v2254
      %v2350 = vunpack.c.l.b16 %v2255
      %v2351 = vunpack.c.h.b16 %v2255
      %v2352 = vunpack.c.l.b16 %v2256
      %v2353 = vunpack.c.h.b16 %v2256
      %v2354 = vunpack.c.l.b16 %v2257
      %v2355 = vunpack.c.h.b16 %v2257
      %v2356 = vunpack.c.l.b16 %v2258
      %v2357 = vunpack.c.h.b16 %v2258
      %v2358 = vunpack.c.l.b16 %v2259
      %v2359 = vunpack.c.h.b16 %v2259
      %v2360 = vunpack.c.l.b16 %v2260
      %v2361 = vunpack.c.h.b16 %v2260
      %v2362 = vunpack.c.l.b16 %v2261
      %v2363 = vunpack.c.h.b16 %v2261
      %v2364 = vunpack.c.l.b16 %v2262
      %v2365 = vunpack.c.h.b16 %v2262
      %v2366 = vunpack.c.l.b16 %v2263
      %v2367 = vunpack.c.h.b16 %v2263
      %v2368 = vunpack.c.l.b16 %v2264
      %v2369 = vunpack.c.h.b16 %v2264
      %v2370 = vunpack.c.l.b16 %v2265
      %v2371 = vunpack.c.h.b16 %v2265
      %v2372 = vunpack.c.l.b16 %v2266
      %v2373 = vunpack.c.h.b16 %v2266
      %v2374 = vunpack.c.l.b16 %v2267
      %v2375 = vunpack.c.h.b16 %v2267
      %v2376 = vunpack.c.l.b16 %v2268
      %v2377 = vunpack.c.h.b16 %v2268
      %v2378 = vunpack.c.l.b16 %v2269
      %v2379 = vunpack.c.h.b16 %v2269
      %v2380 = vunpack.c.l.b16 %v2270
      %v2381 = vunpack.c.h.b16 %v2270
      %v2382 = vunpack.c.l.b16 %v2271
      %v2383 = vunpack.c.h.b16 %v2271
      %v2384 = vunpack.c.l.b16 %v2272
      %v2385 = vunpack.c.h.b16 %v2272
      %v2386 = vpack.c.b16 %v2324, %v2322
      %v2387 = vpack.c.b16 %v2325, %v2323
      %v2388 = vpack.c.b16 %v2328, %v2326
      %v2389 = vpack.c.b16 %v2329, %v2327
      %v2390 = vpack.c.b16 %v2332, %v2330
      %v2391 = vpack.c.b16 %v2333, %v2331
      %v2392 = vpack.c.b16 %v2336, %v2334
      %v2393 = vpack.c.b16 %v2337, %v2335
      %v2394 = vpack.c.b16 %v2340, %v2338
      %v2395 = vpack.c.b16 %v2341, %v2339
      %v2396 = vpack.c.b16 %v2344, %v2342
      %v2397 = vpack.c.b16 %v2345, %v2343
      %v2398 = vpack.c.b16 %v2348, %v2346
      %v2399 = vpack.c.b16 %v2349, %v2347
      %v2400 = vpack.c.b16 %v2352, %v2350
      %v2401 = vpack.c.b16 %v2353, %v2351
      %v2402 = vpack.c.b16 %v2356, %v2354
      %v2403 = vpack.c.b16 %v2357, %v2355
      %v2404 = vpack.c.b16 %v2360, %v2358
      %v2405 = vpack.c.b16 %v2361, %v2359
      %v2406 = vpack.c.b16 %v2364, %v2362
      %v2407 = vpack.c.b16 %v2365, %v2363
      %v2408 = vpack.c.b16 %v2368, %v2366
      %v2409 = vpack.c.b16 %v2369, %v2367
      %v2410 = vpack.c.b16 %v2372, %v2370
      %v2411 = vpack.c.b16 %v2373, %v2371
      %v2412 = vpack.c.b16 %v2376, %v2374
      %v2413 = vpack.c.b16 %v2377, %v2375
      %v2414 = vpack.c.b16 %v2380, %v2378
      %v2415 = vpack.c.b16 %v2381, %v2379
      %v2416 = vpack.c.b16 %v2384, %v2382
      %v2417 = vpack.c.b16 %v2385, %v2383
      %2450 = vmatpush.bf16.msra.mxu0 %v2400
      %2451 = vmatpush.bf16.msra.mxu0 %v2398
      %2452 = vmatpush.bf16.msra.mxu0 %v2396
      %2453 = vmatpush.bf16.msra.mxu0 %v2394
      %2454 = vmatpush.bf16.msra.mxu0 %v2392
      %2455 = vmatpush.bf16.msra.mxu0 %v2390
      %2456 = vmatpush.bf16.msra.mxu0 %v2388
      %2457 = vmatpush.bf16.msra.mxu0 %v2386
      %2458 = vmatmul.bf16.gmra.mxu0 %v2276
      %v2459 = vpop.f32.mrf.mxu0
      %v2460 = vadd.f32 0.0, %v2459
      %v2461 = vpop.f32.mrf.mxu0
      %v2462 = vadd.f32 0.0, %v2461
      %2463 = vmatmul.bf16.gmra.mxu0 %v2281
      %v2464 = vpop.f32.mrf.mxu0
      %v2465 = vadd.f32 0.0, %v2464
      %v2466 = vpop.f32.mrf.mxu0
      %v2467 = vadd.f32 0.0, %v2466
      %2468 = vmatmul.bf16.gmra.mxu0 %v2280
      %v2469 = vpop.f32.mrf.mxu0
      %v2470 = vadd.f32 0.0, %v2469
      %v2471 = vpop.f32.mrf.mxu0
      %2472 = vdwg.mxu0
      %2473 = vmatpush.bf16.msra.mxu0 %v2416
      %2474 = vmatpush.bf16.msra.mxu0 %v2414
      %2475 = vmatpush.bf16.msra.mxu0 %v2412
      %2476 = vmatpush.bf16.msra.mxu0 %v2410
      %2477 = vmatpush.bf16.msra.mxu0 %v2408
      %2478 = vmatpush.bf16.msra.mxu0 %v2406
      %2479 = vmatpush.bf16.msra.mxu0 %v2404
      %2480 = vmatpush.bf16.msra.mxu0 %v2402
      %2481 = vmatmul.bf16.gmra.mxu0 %v2279
      %v2482 = vpop.f32.mrf.mxu0
      %v2483 = vadd.f32 %v2460, %v2482
      %v2484 = vpop.f32.mrf.mxu0
      %v2485 = vadd.f32 %v2462, %v2484
      %2486 = vmatmul.bf16.gmra.mxu0 %v2283
      %v2487 = vpop.f32.mrf.mxu0
      %v2488 = vadd.f32 %v2465, %v2487
      %v2489 = vpop.f32.mrf.mxu0
      %v2490 = vadd.f32 %v2467, %v2489
      %2491 = vmatmul.bf16.gmra.mxu0 %v2282
      %v2492 = vpop.f32.mrf.mxu0
      %v2493 = vadd.f32 %v2470, %v2492
      %v2494 = vpop.f32.mrf.mxu0
      %2495 = vdwg.mxu0
      %2496 = vmatpush.bf16.msra.mxu0 %v2401
      %2497 = vmatpush.bf16.msra.mxu0 %v2399
      %2498 = vmatpush.bf16.msra.mxu0 %v2397
      %2499 = vmatpush.bf16.msra.mxu0 %v2395
      %2500 = vmatpush.bf16.msra.mxu0 %v2393
      %2501 = vmatpush.bf16.msra.mxu0 %v2391
      %2502 = vmatpush.bf16.msra.mxu0 %v2389
      %2503 = vmatpush.bf16.msra.mxu0 %v2387
      %2504 = vmatmul.bf16.gmra.mxu0 %v2276
      %v2505 = vpop.f32.mrf.mxu0
      %v2506 = vadd.f32 0.0, %v2505
      %v2507 = vpop.f32.mrf.mxu0
      %v2508 = vadd.f32 0.0, %v2507
      %2509 = vmatmul.bf16.gmra.mxu0 %v2281
      %v2510 = vpop.f32.mrf.mxu0
      %v2511 = vadd.f32 0.0, %v2510
      %v2512 = vpop.f32.mrf.mxu0
      %v2513 = vadd.f32 0.0, %v2512
      %2514 = vmatmul.bf16.gmra.mxu0 %v2280
      %v2515 = vpop.f32.mrf.mxu0
      %v2516 = vadd.f32 0.0, %v2515
      %v2517 = vpop.f32.mrf.mxu0
      %2518 = vdwg.mxu0
      %2519 = vmatpush.bf16.msra.mxu0 %v2417
      %2520 = vmatpush.bf16.msra.mxu0 %v2415
      %2521 = vmatpush.bf16.msra.mxu0 %v2413
      %2522 = vmatpush.bf16.msra.mxu0 %v2411
      %2523 = vmatpush.bf16.msra.mxu0 %v2409
      %2524 = vmatpush.bf16.msra.mxu0 %v2407
      %2525 = vmatpush.bf16.msra.mxu0 %v2405
      %2526 = vmatpush.bf16.msra.mxu0 %v2403
      %2527 = vmatmul.bf16.gmra.mxu0 %v2279
      %v2528 = vpop.f32.mrf.mxu0
      %v2529 = vadd.f32 %v2506, %v2528
      %v2530 = vpop.f32.mrf.mxu0
      %v2531 = vadd.f32 %v2508, %v2530
      %2532 = vmatmul.bf16.gmra.mxu0 %v2283
      %v2533 = vpop.f32.mrf.mxu0
      %v2534 = vadd.f32 %v2511, %v2533
      %v2535 = vpop.f32.mrf.mxu0
      %v2536 = vadd.f32 %v2513, %v2535
      %2537 = vmatmul.bf16.gmra.mxu0 %v2282
      %v2538 = vpop.f32.mrf.mxu0
      %v2539 = vadd.f32 %v2516, %v2538
      %v2540 = vpop.f32.mrf.mxu0
      %2541 = vdwg.mxu0
      %v2542 = vadd.f32 %v2181, %v2483
      %v2543 = vadd.f32 %v2227, %v2529
      %v2544 = vadd.f32 %v2183, %v2485
      %v2545 = vadd.f32 %v2229, %v2531
      %v2546 = vadd.f32 %v2186, %v2488
      %v2547 = vadd.f32 %v2232, %v2534
      %v2548 = vadd.f32 %v2188, %v2490
      %v2549 = vadd.f32 %v2234, %v2536
      %v2550 = vadd.f32 %v2191, %v2493
      %v2551 = vadd.f32 %v2237, %v2539
      %v2552 = vld [vmem:[%s7] sm:$0x3]
      %v2554 = vperm.slane %v2552, 0
      %v2555 = vperm.slane %v2552, 1
      %v2558 = vmul.f32 %v2542, %v2554
      %v2559 = vmul.f32 %v2543, %v2555
      %v2560 = vmul.f32 %v2544, %v2554
      %v2561 = vmul.f32 %v2545, %v2555
      %v2562 = vmul.f32 %v2546, %v2554
      %v2563 = vmul.f32 %v2547, %v2555
      %v2564 = vmul.f32 %v2548, %v2554
      %v2565 = vmul.f32 %v2549, %v2555
      %v2566 = vmul.f32 %v2550, %v2554
      %v2567 = vmul.f32 %v2551, %v2555
      %v2568 = vld [vmem:[%s8] sm:$0x3]
      %v2570 = vperm.slane %v2568, 0
      %v2571 = vperm.slane %v2568, 1
      %v2574 = vadd.f32 %v2558, %v2570
      %v2575 = vadd.f32 %v2559, %v2571
      %v2576 = vadd.f32 %v2560, %v2570
      %v2577 = vadd.f32 %v2561, %v2571
      %v2578 = vadd.f32 %v2562, %v2570
      %v2579 = vadd.f32 %v2563, %v2571
      %v2580 = vadd.f32 %v2564, %v2570
      %v2581 = vadd.f32 %v2565, %v2571
      %v2582 = vadd.f32 %v2566, %v2570
      %v2583 = vadd.f32 %v2567, %v2571
      %v2584 = vunpack.c.l.bf16 %v439
      %v2585 = vunpack.c.h.bf16 %v439
      %v2586 = vunpack.c.l.bf16 %v440
      %v2587 = vunpack.c.h.bf16 %v440
      %v2588 = vunpack.c.l.bf16 %v441
      %v2589 = vunpack.c.h.bf16 %v441
      %v2590 = vunpack.c.l.bf16 %v442
      %v2591 = vunpack.c.h.bf16 %v442
      %v2592 = vunpack.c.l.bf16 %v443
      %v2593 = vunpack.c.h.bf16 %v443
      %v2594 = vadd.f32 %v2574, %v2584
      %v2595 = vadd.f32 %v2575, %v2585
      %v2596 = vadd.f32 %v2576, %v2586
      %v2597 = vadd.f32 %v2577, %v2587
      %v2598 = vadd.f32 %v2578, %v2588
      %v2599 = vadd.f32 %v2579, %v2589
      %v2600 = vadd.f32 %v2580, %v2590
      %v2601 = vadd.f32 %v2581, %v2591
      %v2602 = vadd.f32 %v2582, %v2592
      %v2603 = vadd.f32 %v2583, %v2593
      %v2604 = vstv %s1522
      %v2605 = vadd.s32 %v2604, %v1525
      %v2606 = vadd.s32 %v2604, %v1526
      %v2607 = vadd.s32 %v2604, %v1527
      %v2608 = vadd.s32 %v2604, %v1528
      %v2609 = vadd.s32 %v2604, %v1529
      %vm2610 = vcmp.lt.s32.totalorder %v2605, 33
      %vm2611 = vcmp.lt.s32.totalorder %v2606, 33
      %vm2612 = vcmp.lt.s32.totalorder %v2607, 33
      %vm2613 = vcmp.lt.s32.totalorder %v2608, 33
      %vm2614 = vcmp.lt.s32.totalorder %v2609, 33
      %v2615 = vsel %vm2610, 1, 0
      %v2616 = vsel %vm2611, 1, 0
      %v2617 = vsel %vm2612, 1, 0
      %v2618 = vsel %vm2613, 1, 0
      %v2619 = vsel %vm2614, 1, 0
      %vm2620 = vcmp.eq.s32.totalorder %v2615, 1
      %vm2621 = vcmp.eq.s32.totalorder %v2616, 1
      %vm2622 = vcmp.eq.s32.totalorder %v2617, 1
      %vm2623 = vcmp.eq.s32.totalorder %v2618, 1
      %vm2624 = vcmp.eq.s32.totalorder %v2619, 1
      %v2625 = vsel %vm2620, %v2594, 0.0
      %v2626 = vsel %vm2620, %v2595, 0.0
      %v2627 = vsel %vm2621, %v2596, 0.0
      %v2628 = vsel %vm2621, %v2597, 0.0
      %v2629 = vsel %vm2622, %v2598, 0.0
      %v2630 = vsel %vm2622, %v2599, 0.0
      %v2631 = vsel %vm2623, %v2600, 0.0
      %v2632 = vsel %vm2623, %v2601, 0.0
      %v2633 = vsel %vm2624, %v2602, 0.0
      %v2634 = vsel %vm2624, %v2603, 0.0
      %v2635 = vpack.c.bf16 %v2626, %v2625
      %v2636 = vpack.c.bf16 %v2628, %v2627
      %v2637 = vpack.c.bf16 %v2630, %v2629
      %v2638 = vpack.c.bf16 %v2632, %v2631
      %v2639 = vpack.c.bf16 %v2634, %v2633
      %2640 = vst [vmem:[%s437] sm:$0xff] %v2635
      %2641 = vst [vmem:[%s437 + $0x8] sm:$0xff] %v2636
      %2642 = vst [vmem:[%s437 + $0x10] sm:$0xff] %v2637
      %2643 = vst [vmem:[%s437 + $0x18] sm:$0xff] %v2638
      %2644 = vst [vmem:[%s437 + $0x20] sm:$0xff] %v2639
      %s2645 = smul.u32 5, %s25
      %p2646 = scmp.lt.s32.totalorder %s24, 1
      %s2647 = scalar_select %p2646, %s24, 1
      %p2648 = scmp.lt.s32.totalorder %s2645, 4
      %s2649 = scalar_select %p2648, %s2645, 4
      %s2650 = smul.addr %s2649, 2
      %s2651 = smul.addr %s2647, 10
      %s2652 = sadd.s32 %s2650, %s2651
      %s2653 = smul.addr %s2652, 4
      %s2654 = scalar_lea.vmem %s9, %s2653
      // Predicated region
      $region57: #{conv_encoder_forward.7} parent=55 // pred_check
        %p2655 = pneg %p262
      $region58: #{conv_encoder_forward.7} parent=55 // pred_check_branch
        %2657 = sbr.rel (%p2655) target = $region60
      $region59: #{conv_encoder_forward.7} parent=55 // pred_region
        %s2658 = smul.u32 5, %s25
      $region60: #{conv_encoder_forward.7} parent=55 // pred_fallthru
        _
    $region56: #{conv_encoder_forward.7} parent=5 // pred_fallthru
      _
    %p2659 = scmp.le.s32.totalorder 2, %s15
    // Predicated region
    $region61: #{conv_encoder_forward.7} parent=5 // pred_check
      %p2660 = pneg %p2659
    $region62: #{conv_encoder_forward.7} parent=5 // pred_check_branch
      %2662 = sbr.rel (%p2660) target = $region64
    $region63: #{conv_encoder_forward.7} parent=5 // pred_region
      %s2663 = ssub.s32 %s15, 2
      // Predicated region
      $region65: #{conv_encoder_forward.7} parent=63 // pred_check
        %p2664 = pneg %p268
      $region66: #{conv_encoder_forward.7} parent=63 // pred_check_branch
        %2666 = sbr.rel (%p2664) target = $region68
      $region67: #{conv_encoder_forward.7} parent=63 // pred_region
        %s2667 = smul.u32 5, %s27
        %p2668 = scmp.lt.s32.totalorder %s26, 1
        %s2669 = scalar_select %p2668, %s26, 1
        %p2670 = scmp.lt.s32.totalorder %s2667, 4
        %s2671 = scalar_select %p2670, %s2667, 4
        %s2672 = smul.addr %s2671, 2
        %s2673 = smul.addr %s2669, 10
        %s2674 = sadd.s32 %s2672, %s2673
        %s2675 = smul.addr %s2674, 4
        %s2676 = scalar_lea.vmem %s9, %s2675
      $region68: #{conv_encoder_forward.7} parent=63 // pred_fallthru
        _
    $region64: #{conv_encoder_forward.7} parent=5 // pred_fallthru
      _
  $region6: #{conv_encoder_forward.7} parent=0 // loop_footer
    %s19 = sadd.s32 1, %s15
  $region7: #{conv_encoder_forward.7} parent=0 // loop_footer_branch
    %14 = sbr.rel target = $region3
  $region8: #{conv_encoder_forward.7} parent=0 // loop_exit
    _

// kernel: conv_encoder_forward.8
$region0: #{conv_encoder_forward.8}
  #allocation0 [shape = 'u32[]', space=smem, size = 0x4, offset = 0x4, fixed_abs, tag = 'smem constant byte address 0x4 - core index']
  #allocation1 [shape = 'u32[72,128]{1,0:T(1,128)}', space=vmem, size = 0x9000, scoped, tag = 'internal scratch']
  #allocation2 [shape = 'bf16[56,128]{1,0:T(8,128)(2,1)}', space=vmem, size = 0x3800, scoped, tag = 'scratch operand']
  %s0 = inlined_call_operand.vmem [shape: bf16[2,40,128], index: 0, kind: input, shape index: {}]
  %s1 = inlined_call_operand.vmem [shape: bf16[2,1,2,128], index: 1, kind: input, shape index: {}]
  %s2 = inlined_call_operand.vmem [shape: bf16[2,1,2,128], index: 2, kind: input, shape index: {}]
  %s3 = inlined_call_operand.vmem [shape: bf16[3,128,128], index: 3, kind: input, shape index: {}]
  %s4 = inlined_call_operand.vmem [shape: f32[1,128], index: 4, kind: input, shape index: {}]
  %s5 = inlined_call_operand.vmem [shape: f32[1,128], index: 5, kind: input, shape index: {}]
  %s6 = inlined_call_operand.vmem [shape: bf16[3,128,128], index: 6, kind: input, shape index: {}]
  %s7 = inlined_call_operand.vmem [shape: f32[1,128], index: 7, kind: input, shape index: {}]
  %s8 = inlined_call_operand.vmem [shape: f32[1,128], index: 8, kind: input, shape index: {}]
  %s9 = inlined_call_operand.vmem [shape: bf16[2,40,128], index: 9, kind: output, shape index: {}]
  %s10 = sld [smem:[#allocation0]]
  $region69: #{conv_encoder_forward.8} parent=0
    _
  %s12 = ssub.s32 1, %s10
  %s13 = scalar_select 0, %s12, %s10
  loop: start=0, step=1, limit=4
  $region2: #{conv_encoder_forward.8} parent=0 // loop_pre_header
    _
  $region3: #{conv_encoder_forward.8} parent=0 // loop_header
    %s15 = sphi 0, %s19
    %p16 = scmp.ge.s32.totalorder %s15, 4
    %s22 = sphi 0, %s34
    %s23 = sphi 0, %s30
    %s24 = sphi 0, %s22
    %s25 = sphi 0, %s23
    %s26 = sphi 0, %s24
    %s27 = sphi 0, %s25
    %s39 = sphi 0, %s41
    %s42 = sphi 0, %s39
    %s43 = sphi 0, %s42
    %s59 = sphi 0, %s43
    %s67 = sphi 0, %s69
    %s70 = sphi 0, %s67
    %s71 = sphi 0, %s70
    %s87 = sphi 0, %s71
    %s95 = sphi 0, %s97
    %s98 = sphi 0, %s95
    %s99 = sphi 0, %s98
    %s115 = sphi 0, %s99
    %s119 = sphi 0, %s119
    %s121 = sphi 0, %s119
    %s122 = sphi 0, %s121
    %s136 = sphi 0, %s122
    %s140 = sphi 0, %s140
    %s142 = sphi 0, %s140
    %s143 = sphi 0, %s142
    %s157 = sphi 0, %s143
    %s161 = sphi 0, %s161
    %s163 = sphi 0, %s161
    %s164 = sphi 0, %s163
    %s178 = sphi 0, %s164
    %s182 = sphi 0, %s182
    %s184 = sphi 0, %s182
    %s185 = sphi 0, %s184
    %s199 = sphi 0, %s185
    %s203 = sphi 0, %s203
    %s205 = sphi 0, %s203
    %s206 = sphi 0, %s205
    %s220 = sphi 0, %s206
    %s224 = sphi 0, %s224
    %s226 = sphi 0, %s224
    %s227 = sphi 0, %s226
    %s241 = sphi 0, %s227
    %s249 = sphi 0, %s251
    %s252 = sphi 0, %s249
    %s253 = sphi 0, %s252
    %s269 = sphi 0, %s253
  $region4: #{conv_encoder_forward.8} parent=0 // loop_header_branch
    %18 = sbr.rel (%p16) target = $region8
  $region5: #{conv_encoder_forward.8} parent=0 // loop_body
    %s20 = ssub.s32 %s15, 1
    %s21 = ssub.s32 %s15, 2
    %s28 = sadd.s32 1, %s23
    %p29 = scmp.ge.s32.totalorder %s28, 1
    %s30 = scalar_select %p29, 0, %s28
    %s31 = sadd.s32 1, %s22
    %s32 = scalar_select %p29, %s31, %s22
    %p33 = scmp.ge.s32.totalorder %s32, 2
    %s34 = scalar_select %p33, 0, %s32
    %s35 = ssub.s32 %s22, %s34
    %s36 = ssub.s32 %s23, %s30
    %s37 = sor.u32 %s35, %s36
    %p38 = scmp.eq.s32.totalorder %s37, 0
    %s40 = sadd.s32 %s39, 1
    %s41 = scalar_select %p38, %s39, %s40
    %p44 = pneg %p38
    %p45 = scmp.eq.s32.totalorder %s15, 1
    %p46 = por %p44, %p45
    %p47 = scmp.ne.s32.totalorder %s39, %s42
    %p48 = scmp.eq.s32.totalorder %s15, 0
    %p49 = por %p47, %p48
    %p50 = scmp.ne.s32.totalorder %s39, %s42
    %p51 = scmp.eq.s32.totalorder %s20, 1
    %p52 = por %p50, %p51
    %p53 = scmp.ne.s32.totalorder %s42, %s43
    %p54 = scmp.eq.s32.totalorder %s20, 0
    %p55 = por %p53, %p54
    %p56 = scmp.ne.s32.totalorder %s42, %s43
    %p57 = scmp.eq.s32.totalorder %s21, 1
    %p58 = por %p56, %p57
    %p60 = scmp.ne.s32.totalorder %s43, %s59
    %p61 = scmp.eq.s32.totalorder %s21, 0
    %p62 = por %p60, %p61
    %s63 = ssub.s32 %s22, %s34
    %s64 = ssub.s32 %s23, %s30
    %s65 = sor.u32 %s63, %s64
    %p66 = scmp.eq.s32.totalorder %s65, 0
    %s68 = sadd.s32 %s67, 1
    %s69 = scalar_select %p66, %s67, %s68
    %p72 = pneg %p66
    %p73 = scmp.eq.s32.totalorder %s15, 1
    %p74 = por %p72, %p73
    %p75 = scmp.ne.s32.totalorder %s67, %s70
    %p76 = scmp.eq.s32.totalorder %s15, 0
    %p77 = por %p75, %p76
    %p78 = scmp.ne.s32.totalorder %s67, %s70
    %p79 = scmp.eq.s32.totalorder %s20, 1
    %p80 = por %p78, %p79
    %p81 = scmp.ne.s32.totalorder %s70, %s71
    %p82 = scmp.eq.s32.totalorder %s20, 0
    %p83 = por %p81, %p82
    %p84 = scmp.ne.s32.totalorder %s70, %s71
    %p85 = scmp.eq.s32.totalorder %s21, 1
    %p86 = por %p84, %p85
    %p88 = scmp.ne.s32.totalorder %s71, %s87
    %p89 = scmp.eq.s32.totalorder %s21, 0
    %p90 = por %p88, %p89
    %s91 = ssub.s32 %s22, %s34
    %s92 = ssub.s32 %s23, %s30
    %s93 = sor.u32 %s91, %s92
    %p94 = scmp.eq.s32.totalorder %s93, 0
    %s96 = sadd.s32 %s95, 1
    %s97 = scalar_select %p94, %s95, %s96
    %p100 = pneg %p94
    %p101 = scmp.eq.s32.totalorder %s15, 1
    %p102 = por %p100, %p101
    %p103 = scmp.ne.s32.totalorder %s95, %s98
    %p104 = scmp.eq.s32.totalorder %s15, 0
    %p105 = por %p103, %p104
    %p106 = scmp.ne.s32.totalorder %s95, %s98
    %p107 = scmp.eq.s32.totalorder %s20, 1
    %p108 = por %p106, %p107
    %p109 = scmp.ne.s32.totalorder %s98, %s99
    %p110 = scmp.eq.s32.totalorder %s20, 0
    %p111 = por %p109, %p110
    %p112 = scmp.ne.s32.totalorder %s98, %s99
    %p113 = scmp.eq.s32.totalorder %s21, 1
    %p114 = por %p112, %p113
    %p116 = scmp.ne.s32.totalorder %s99, %s115
    %p117 = scmp.eq.s32.totalorder %s21, 0
    %p118 = por %p116, %p117
    %s120 = sadd.s32 %s119, 1
    %p123 = scmp.eq.s32.totalorder %s15, 1
    %p124 = scmp.ne.s32.totalorder %s119, %s121
    %p125 = scmp.eq.s32.totalorder %s15, 0
    %p126 = por %p124, %p125
    %p127 = scmp.ne.s32.totalorder %s119, %s121
    %p128 = scmp.eq.s32.totalorder %s20, 1
    %p129 = por %p127, %p128
    %p130 = scmp.ne.s32.totalorder %s121, %s122
    %p131 = scmp.eq.s32.totalorder %s20, 0
    %p132 = por %p130, %p131
    %p133 = scmp.ne.s32.totalorder %s121, %s122
    %p134 = scmp.eq.s32.totalorder %s21, 1
    %p135 = por %p133, %p134
    %p137 = scmp.ne.s32.totalorder %s122, %s136
    %p138 = scmp.eq.s32.totalorder %s21, 0
    %p139 = por %p137, %p138
    %s141 = sadd.s32 %s140, 1
    %p144 = scmp.eq.s32.totalorder %s15, 1
    %p145 = scmp.ne.s32.totalorder %s140, %s142
    %p146 = scmp.eq.s32.totalorder %s15, 0
    %p147 = por %p145, %p146
    %p148 = scmp.ne.s32.totalorder %s140, %s142
    %p149 = scmp.eq.s32.totalorder %s20, 1
    %p150 = por %p148, %p149
    %p151 = scmp.ne.s32.totalorder %s142, %s143
    %p152 = scmp.eq.s32.totalorder %s20, 0
    %p153 = por %p151, %p152
    %p154 = scmp.ne.s32.totalorder %s142, %s143
    %p155 = scmp.eq.s32.totalorder %s21, 1
    %p156 = por %p154, %p155
    %p158 = scmp.ne.s32.totalorder %s143, %s157
    %p159 = scmp.eq.s32.totalorder %s21, 0
    %p160 = por %p158, %p159
    %s162 = sadd.s32 %s161, 1
    %p165 = scmp.eq.s32.totalorder %s15, 1
    %p166 = scmp.ne.s32.totalorder %s161, %s163
    %p167 = scmp.eq.s32.totalorder %s15, 0
    %p168 = por %p166, %p167
    %p169 = scmp.ne.s32.totalorder %s161, %s163
    %p170 = scmp.eq.s32.totalorder %s20, 1
    %p171 = por %p169, %p170
    %p172 = scmp.ne.s32.totalorder %s163, %s164
    %p173 = scmp.eq.s32.totalorder %s20, 0
    %p174 = por %p172, %p173
    %p175 = scmp.ne.s32.totalorder %s163, %s164
    %p176 = scmp.eq.s32.totalorder %s21, 1
    %p177 = por %p175, %p176
    %p179 = scmp.ne.s32.totalorder %s164, %s178
    %p180 = scmp.eq.s32.totalorder %s21, 0
    %p181 = por %p179, %p180
    %s183 = sadd.s32 %s182, 1
    %p186 = scmp.eq.s32.totalorder %s15, 1
    %p187 = scmp.ne.s32.totalorder %s182, %s184
    %p188 = scmp.eq.s32.totalorder %s15, 0
    %p189 = por %p187, %p188
    %p190 = scmp.ne.s32.totalorder %s182, %s184
    %p191 = scmp.eq.s32.totalorder %s20, 1
    %p192 = por %p190, %p191
    %p193 = scmp.ne.s32.totalorder %s184, %s185
    %p194 = scmp.eq.s32.totalorder %s20, 0
    %p195 = por %p193, %p194
    %p196 = scmp.ne.s32.totalorder %s184, %s185
    %p197 = scmp.eq.s32.totalorder %s21, 1
    %p198 = por %p196, %p197
    %p200 = scmp.ne.s32.totalorder %s185, %s199
    %p201 = scmp.eq.s32.totalorder %s21, 0
    %p202 = por %p200, %p201
    %s204 = sadd.s32 %s203, 1
    %p207 = scmp.eq.s32.totalorder %s15, 1
    %p208 = scmp.ne.s32.totalorder %s203, %s205
    %p209 = scmp.eq.s32.totalorder %s15, 0
    %p210 = por %p208, %p209
    %p211 = scmp.ne.s32.totalorder %s203, %s205
    %p212 = scmp.eq.s32.totalorder %s20, 1
    %p213 = por %p211, %p212
    %p214 = scmp.ne.s32.totalorder %s205, %s206
    %p215 = scmp.eq.s32.totalorder %s20, 0
    %p216 = por %p214, %p215
    %p217 = scmp.ne.s32.totalorder %s205, %s206
    %p218 = scmp.eq.s32.totalorder %s21, 1
    %p219 = por %p217, %p218
    %p221 = scmp.ne.s32.totalorder %s206, %s220
    %p222 = scmp.eq.s32.totalorder %s21, 0
    %p223 = por %p221, %p222
    %s225 = sadd.s32 %s224, 1
    %p228 = scmp.eq.s32.totalorder %s15, 1
    %p229 = scmp.ne.s32.totalorder %s224, %s226
    %p230 = scmp.eq.s32.totalorder %s15, 0
    %p231 = por %p229, %p230
    %p232 = scmp.ne.s32.totalorder %s224, %s226
    %p233 = scmp.eq.s32.totalorder %s20, 1
    %p234 = por %p232, %p233
    %p235 = scmp.ne.s32.totalorder %s226, %s227
    %p236 = scmp.eq.s32.totalorder %s20, 0
    %p237 = por %p235, %p236
    %p238 = scmp.ne.s32.totalorder %s226, %s227
    %p239 = scmp.eq.s32.totalorder %s21, 1
    %p240 = por %p238, %p239
    %p242 = scmp.ne.s32.totalorder %s227, %s241
    %p243 = scmp.eq.s32.totalorder %s21, 0
    %p244 = por %p242, %p243
    %s245 = ssub.s32 %s22, %s34
    %s246 = ssub.s32 %s23, %s30
    %s247 = sor.u32 %s245, %s246
    %p248 = scmp.eq.s32.totalorder %s247, 0
    %s250 = sadd.s32 %s249, 1
    %s251 = scalar_select %p248, %s249, %s250
    %p254 = pneg %p248
    %p255 = scmp.eq.s32.totalorder %s15, 1
    %p256 = por %p254, %p255
    %p257 = scmp.ne.s32.totalorder %s249, %s252
    %p258 = scmp.eq.s32.totalorder %s15, 0
    %p259 = por %p257, %p258
    %p260 = scmp.ne.s32.totalorder %s249, %s252
    %p261 = scmp.eq.s32.totalorder %s20, 1
    %p262 = por %p260, %p261
    %p263 = scmp.ne.s32.totalorder %s252, %s253
    %p264 = scmp.eq.s32.totalorder %s20, 0
    %p265 = por %p263, %p264
    %p266 = scmp.ne.s32.totalorder %s252, %s253
    %p267 = scmp.eq.s32.totalorder %s21, 1
    %p268 = por %p266, %p267
    %p270 = scmp.ne.s32.totalorder %s253, %s269
    %p271 = scmp.eq.s32.totalorder %s21, 0
    %p272 = por %p270, %p271
    %p273 = scmp.le.s32.totalorder 1, %s15
    %p274 = scmp.lt.s32.totalorder %s15, 3
    %p275 = pnand %p273, %p274
    %p276 = pneg %p275
    // Predicated region
    $region9: #{conv_encoder_forward.8} parent=5 // pred_check
      _
    $region10: #{conv_encoder_forward.8} parent=5 // pred_check_branch
      %278 = sbr.rel (%p275) target = $region12
    $region11: #{conv_encoder_forward.8} parent=5 // pred_region
      %s279 = ssub.s32 %s15, 1
      // Predicated region
      $region13: #{conv_encoder_forward.8} parent=11 // pred_check
        %p280 = pneg %p132
      $region14: #{conv_encoder_forward.8} parent=11 // pred_check_branch
        %282 = sbr.rel (%p280) target = $region16
      $region15: #{conv_encoder_forward.8} parent=11 // pred_region
        _
      $region16: #{conv_encoder_forward.8} parent=11 // pred_fallthru
        _
      // Predicated region
      $region17: #{conv_encoder_forward.8} parent=11 // pred_check
        %p283 = pneg %p153
      $region18: #{conv_encoder_forward.8} parent=11 // pred_check_branch
        %285 = sbr.rel (%p283) target = $region20
      $region19: #{conv_encoder_forward.8} parent=11 // pred_region
        _
      $region20: #{conv_encoder_forward.8} parent=11 // pred_fallthru
        _
      // Predicated region
      $region21: #{conv_encoder_forward.8} parent=11 // pred_check
        %p286 = pneg %p174
      $region22: #{conv_encoder_forward.8} parent=11 // pred_check_branch
        %288 = sbr.rel (%p286) target = $region24
      $region23: #{conv_encoder_forward.8} parent=11 // pred_region
        _
      $region24: #{conv_encoder_forward.8} parent=11 // pred_fallthru
        _
      // Predicated region
      $region25: #{conv_encoder_forward.8} parent=11 // pred_check
        %p289 = pneg %p195
      $region26: #{conv_encoder_forward.8} parent=11 // pred_check_branch
        %291 = sbr.rel (%p289) target = $region28
      $region27: #{conv_encoder_forward.8} parent=11 // pred_region
        _
      $region28: #{conv_encoder_forward.8} parent=11 // pred_fallthru
        _
      // Predicated region
      $region29: #{conv_encoder_forward.8} parent=11 // pred_check
        %p292 = pneg %p216
      $region30: #{conv_encoder_forward.8} parent=11 // pred_check_branch
        %294 = sbr.rel (%p292) target = $region32
      $region31: #{conv_encoder_forward.8} parent=11 // pred_region
        _
      $region32: #{conv_encoder_forward.8} parent=11 // pred_fallthru
        _
      // Predicated region
      $region33: #{conv_encoder_forward.8} parent=11 // pred_check
        %p295 = pneg %p237
      $region34: #{conv_encoder_forward.8} parent=11 // pred_check_branch
        %297 = sbr.rel (%p295) target = $region36
      $region35: #{conv_encoder_forward.8} parent=11 // pred_region
        _
      $region36: #{conv_encoder_forward.8} parent=11 // pred_fallthru
        _
    $region12: #{conv_encoder_forward.8} parent=5 // pred_fallthru
      _
    %p298 = scmp.lt.s32.totalorder %s15, 2
    // Predicated region
    $region37: #{conv_encoder_forward.8} parent=5 // pred_check
      %p299 = pneg %p298
    $region38: #{conv_encoder_forward.8} parent=5 // pred_check_branch
      %301 = sbr.rel (%p299) target = $region40
    $region39: #{conv_encoder_forward.8} parent=5 // pred_region
      // Predicated region
      $region41: #{conv_encoder_forward.8} parent=39 // pred_check
        %p302 = pneg %p49
      $region42: #{conv_encoder_forward.8} parent=39 // pred_check_branch
        %304 = sbr.rel (%p302) target = $region44
      $region43: #{conv_encoder_forward.8} parent=39 // pred_region
        %s305 = smul.u32 5, %s23
        %p306 = scmp.lt.s32.totalorder %s22, 1
        %s307 = scalar_select %p306, %s22, 1
        %p308 = scmp.lt.s32.totalorder %s305, 4
        %s309 = scalar_select %p308, %s305, 4
        %s310 = smul.addr %s307, 5
        %s311 = sadd.s32 %s309, %s310
        %s312 = smul.addr %s311, 4
        %s313 = scalar_lea.vmem %s0, %s312
        %s314 = smul.u32 5, %s23
      $region44: #{conv_encoder_forward.8} parent=39 // pred_fallthru
        _
      // Predicated region
      $region45: #{conv_encoder_forward.8} parent=39 // pred_check
        %p315 = pneg %p77
      $region46: #{conv_encoder_forward.8} parent=39 // pred_check_branch
        %317 = sbr.rel (%p315) target = $region48
      $region47: #{conv_encoder_forward.8} parent=39 // pred_region
        %p318 = scmp.lt.s32.totalorder %s22, 1
        %s319 = scalar_select %p318, %s22, 1
        %p320 = scmp.lt.s32.totalorder %s23, 0
        %s321 = scalar_select %p320, %s23, 0
        %s322 = sadd.s32 %s321, %s319
        %s323 = scalar_lea.vmem %s1, %s322
      $region48: #{conv_encoder_forward.8} parent=39 // pred_fallthru
        _
      // Predicated region
      $region49: #{conv_encoder_forward.8} parent=39 // pred_check
        %p324 = pneg %p105
      $region50: #{conv_encoder_forward.8} parent=39 // pred_check_branch
        %326 = sbr.rel (%p324) target = $region52
      $region51: #{conv_encoder_forward.8} parent=39 // pred_region
        %p327 = scmp.lt.s32.totalorder %s22, 1
        %s328 = scalar_select %p327, %s22, 1
        %p329 = scmp.lt.s32.totalorder %s23, 0
        %s330 = scalar_select %p329, %s23, 0
        %s331 = sadd.s32 %s330, %s328
        %s332 = scalar_lea.vmem %s2, %s331
      $region52: #{conv_encoder_forward.8} parent=39 // pred_fallthru
        _
    $region40: #{conv_encoder_forward.8} parent=5 // pred_fallthru
      _
    %p333 = scmp.le.s32.totalorder 1, %s15
    %p334 = scmp.lt.s32.totalorder %s15, 3
    %p335 = pnand %p333, %p334
    %p336 = pneg %p335
    // Predicated region
    $region53: #{conv_encoder_forward.8} parent=5 // pred_check
      _
    $region54: #{conv_encoder_forward.8} parent=5 // pred_check_branch
      %338 = sbr.rel (%p335) target = $region56
    $region55: #{conv_encoder_forward.8} parent=5 // pred_region
      %s339 = ssub.s32 %s15, 1
      %s340 = smul.u32 5, %s25
      %p341 = scmp.lt.s32.totalorder %s24, 1
      %s342 = scalar_select %p341, %s24, 1
      %p343 = scmp.lt.s32.totalorder %s340, 4
      %s344 = scalar_select %p343, %s340, 4
      %s345 = smul.addr %s342, 5
      %s346 = sadd.s32 %s344, %s345
      %s347 = smul.addr %s346, 4
      %s348 = scalar_lea.vmem %s0, %s347
      %p349 = pneg %p55
      %p350 = pneg %p52
      %p351 = scmp.lt.s32.totalorder %s24, 1
      %s352 = scalar_select %p351, %s24, 1
      %p353 = scmp.lt.s32.totalorder %s25, 0
      %s354 = scalar_select %p353, %s25, 0
      %s355 = sadd.s32 %s354, %s352
      %s356 = scalar_lea.vmem %s1, %s355
      %p357 = pneg %p83
      %p358 = pneg %p80
      %p359 = scmp.lt.s32.totalorder %s24, 1
      %s360 = scalar_select %p359, %s24, 1
      %p361 = scmp.lt.s32.totalorder %s25, 0
      %s362 = scalar_select %p361, %s25, 0
      %s363 = sadd.s32 %s362, %s360
      %s364 = scalar_lea.vmem %s2, %s363
      %p365 = pneg %p111
      %p366 = pneg %p108
      %p367 = pneg %p132
      %p368 = pneg %p129
      %p369 = pneg %p153
      %p370 = pneg %p150
      %p371 = pneg %p174
      %p372 = pneg %p171
      %p373 = pneg %p195
      %p374 = pneg %p192
      %p375 = pneg %p216
      %p376 = pneg %p213
      %p377 = pneg %p237
      %p378 = pneg %p234
      %p379 = pneg %p265
      %p380 = pneg %p262
      %s381 = smul.u32 5, %s25
      %p382 = scmp.lt.s32.totalorder %s24, 1
      %s383 = scalar_select %p382, %s24, 1
      %p384 = scmp.lt.s32.totalorder %s381, 4
      %s385 = scalar_select %p384, %s381, 4
      %s386 = smul.addr %s383, 5
      %s387 = sadd.s32 %s385, %s386
      %s388 = smul.addr %s387, 4
      %s389 = scalar_lea.vmem %s9, %s388
      %s390 = smul.u32 5, %s25
      %p391 = scmp.lt.s32.totalorder %s24, 1
      %s392 = scalar_select %p391, %s24, 1
      %p393 = scmp.lt.s32.totalorder %s390, 4
      %s394 = scalar_select %p393, %s390, 4
      %s395 = smul.addr %s392, 5
      %s396 = sadd.s32 %s394, %s395
      %s397 = smul.addr %s396, 4
      %s398 = scalar_lea.vmem %s0, %s397
      %s399 = smul.u32 5, %s25
      %p400 = scmp.lt.s32.totalorder %s24, 1
      %s401 = scalar_select %p400, %s24, 1
      %p402 = scmp.lt.s32.totalorder %s25, 0
      %s403 = scalar_select %p402, %s25, 0
      %s404 = sadd.s32 %s403, %s401
      %s405 = scalar_lea.vmem %s1, %s404
      %p406 = scmp.lt.s32.totalorder %s24, 1
      %s407 = scalar_select %p406, %s24, 1
      %p408 = scmp.lt.s32.totalorder %s25, 0
      %s409 = scalar_select %p408, %s25, 0
      %s410 = sadd.s32 %s409, %s407
      %s411 = scalar_lea.vmem %s2, %s410
      %s412 = smul.u32 5, %s25
      %p413 = scmp.lt.s32.totalorder %s24, 1
      %s414 = scalar_select %p413, %s24, 1
      %p415 = scmp.lt.s32.totalorder %s412, 4
      %s416 = scalar_select %p415, %s412, 4
      %s417 = smul.addr %s414, 5
      %s418 = sadd.s32 %s416, %s417
      %s419 = smul.addr %s418, 4
      %s420 = scalar_lea.vmem %s9, %s419
      %s421 = smul.u32 5, %s25
      %v422 = vld [vmem:[%s398] sm:$0xf]
      %v423 = vld [vmem:[%s398 + $0x4] sm:$0xf]
      %v424 = vld [vmem:[%s398 + $0x8] sm:$0xf]
      %v425 = vld [vmem:[%s398 + $0xc] sm:$0xf]
      %v426 = vld [vmem:[%s398 + $0x10] sm:$0xf]
      %v427 = vld [vmem:[%s405] sm:$0x1]
      %s429 = scalar_lea.vmem [#allocation1], 3
      %430 = vst [vmem:[%s429] ss:$4 sm:$0xff] %v427
      %v431 = vld [vmem:[#allocation1] sm:$0xff]
      %433 = vst [vmem:[#allocation2] sm:$0x8] %v431
      %434 = vst [vmem:[#allocation2 + $0x4] sm:$0xf] %v422
      %435 = vst [vmem:[#allocation2 + $0x8] sm:$0xf] %v423
      %436 = vst [vmem:[#allocation2 + $0xc] sm:$0xf] %v424
      %437 = vst [vmem:[#allocation2 + $0x10] sm:$0xf] %v425
      %438 = vst [vmem:[#allocation2 + $0x14] sm:$0xf] %v426
      %v439 = vld [vmem:[%s411] sm:$0x1]
      %440 = vst [vmem:[#allocation2 + $0x18] sm:$0x1] %v439
      %v441 = vld [vmem:[#allocation2] sm:$0xf]
      %v442 = vld [vmem:[#allocation2 + $0x4] sm:$0xf]
      %v443 = vld [vmem:[#allocation2 + $0x8] sm:$0xf]
      %v444 = vld [vmem:[#allocation2 + $0xc] sm:$0xf]
      %v445 = vld [vmem:[#allocation2 + $0x10] sm:$0xf]
      %v446 = vld [vmem:[#allocation2 + $0x14] sm:$0xf]
      %v447 = vld [vmem:[#allocation2 + $0x18] sm:$0xf]
      %v448 = vld [vmem:[%s3] sm:$0xf]
      %v449 = vld [vmem:[%s3 + $0x4] sm:$0xf]
      %v450 = vld [vmem:[%s3 + $0x8] sm:$0xf]
      %v451 = vld [vmem:[%s3 + $0xc] sm:$0xf]
      %v452 = vld [vmem:[%s3 + $0x10] sm:$0xf]
      %v453 = vld [vmem:[%s3 + $0x14] sm:$0xf]
      %v454 = vld [vmem:[%s3 + $0x18] sm:$0xf]
      %v455 = vld [vmem:[%s3 + $0x1c] sm:$0xf]
      %v456 = vld [vmem:[%s3 + $0x20] sm:$0xf]
      %v457 = vld [vmem:[%s3 + $0x24] sm:$0xf]
      %v458 = vld [vmem:[%s3 + $0x28] sm:$0xf]
      %v459 = vld [vmem:[%s3 + $0x2c] sm:$0xf]
      %v460 = vld [vmem:[%s3 + $0x30] sm:$0xf]
      %v461 = vld [vmem:[%s3 + $0x34] sm:$0xf]
      %v462 = vld [vmem:[%s3 + $0x38] sm:$0xf]
      %v463 = vld [vmem:[%s3 + $0x3c] sm:$0xf]
      %s464 = scalar_lea.vmem %s3, 64
      %v465 = vld [vmem:[%s464] sm:$0xf]
      %v466 = vld [vmem:[%s464 + $0x4] sm:$0xf]
      %v467 = vld [vmem:[%s464 + $0x8] sm:$0xf]
      %v468 = vld [vmem:[%s464 + $0xc] sm:$0xf]
      %v469 = vld [vmem:[%s464 + $0x10] sm:$0xf]
      %v470 = vld [vmem:[%s464 + $0x14] sm:$0xf]
      %v471 = vld [vmem:[%s464 + $0x18] sm:$0xf]
      %v472 = vld [vmem:[%s464 + $0x1c] sm:$0xf]
      %v473 = vld [vmem:[%s464 + $0x20] sm:$0xf]
      %v474 = vld [vmem:[%s464 + $0x24] sm:$0xf]
      %v475 = vld [vmem:[%s464 + $0x28] sm:$0xf]
      %v476 = vld [vmem:[%s464 + $0x2c] sm:$0xf]
      %v477 = vld [vmem:[%s464 + $0x30] sm:$0xf]
      %v478 = vld [vmem:[%s464 + $0x34] sm:$0xf]
      %v479 = vld [vmem:[%s464 + $0x38] sm:$0xf]
      %v480 = vld [vmem:[%s464 + $0x3c] sm:$0xf]
      %v488 = vunpack.c.l.b16 %v441
      %v489 = vunpack.c.l.b16 %v442
      %v490 = vunpack.c.l.b16 %v443
      %v491 = vunpack.c.l.b16 %v444
      %v492 = vunpack.c.l.b16 %v445
      %v493 = vunpack.c.l.b16 %v446
      %v494 = vunpack.c.l.b16 %v447
      %v495 = vpack.c.b16 %v489, %v488
      %v496 = vpack.c.b16 %v491, %v490
      %v497 = vpack.c.b16 %v493, %v492
      %v498 = vpack.c.b16 %v494, %v494
      %vm499 = vsmask.f32 4352
      %v501 = vshrl.u32 %v495, 16
      %v503 = vrot.slane %v501, 3
      %v504 = vshll.u32 %v495, 16
      %v506 = vrot.slane %v504, 4
      %v507 = vor.u32 %v503, %v506
      %v509 = vshrl.u32 %v496, 16
      %v511 = vrot.slane %v509, 3
      %v512 = vshll.u32 %v496, 16
      %v514 = vrot.slane %v512, 4
      %v515 = vor.u32 %v511, %v514
      %v516 = vsel %vm499, %v507, %v515
      %v518 = vshrl.u32 %v497, 16
      %v520 = vrot.slane %v518, 3
      %v521 = vshll.u32 %v497, 16
      %v523 = vrot.slane %v521, 4
      %v524 = vor.u32 %v520, %v523
      %v525 = vsel %vm499, %v515, %v524
      %v527 = vshll.u32 %v498, 16
      %v529 = vrot.slane %v527, 4
      %v530 = vsel %vm499, %v524, %v529
      %v550 = vunpack.c.l.b16 %v465
      %v551 = vunpack.c.l.b16 %v466
      %v552 = vunpack.c.l.b16 %v467
      %v553 = vunpack.c.l.b16 %v468
      %v554 = vunpack.c.l.b16 %v469
      %v555 = vunpack.c.l.b16 %v470
      %v556 = vunpack.c.l.b16 %v471
      %v557 = vunpack.c.l.b16 %v472
      %v558 = vunpack.c.l.b16 %v473
      %v559 = vunpack.c.l.b16 %v474
      %v560 = vunpack.c.l.b16 %v475
      %v561 = vunpack.c.l.b16 %v476
      %v562 = vunpack.c.l.b16 %v477
      %v563 = vunpack.c.l.b16 %v478
      %v564 = vunpack.c.l.b16 %v479
      %v565 = vunpack.c.l.b16 %v480
      %v566 = vpack.c.b16 %v551, %v550
      %v567 = vpack.c.b16 %v553, %v552
      %v568 = vpack.c.b16 %v555, %v554
      %v569 = vpack.c.b16 %v557, %v556
      %v570 = vpack.c.b16 %v559, %v558
      %v571 = vpack.c.b16 %v561, %v560
      %v572 = vpack.c.b16 %v563, %v562
      %v573 = vpack.c.b16 %v565, %v564
      %582 = vmatpush.bf16.msra.mxu0 %v573
      %583 = vmatpush.bf16.msra.mxu0 %v572
      %584 = vmatpush.bf16.msra.mxu0 %v571
      %585 = vmatpush.bf16.msra.mxu0 %v570
      %586 = vmatpush.bf16.msra.mxu0 %v569
      %587 = vmatpush.bf16.msra.mxu0 %v568
      %588 = vmatpush.bf16.msra.mxu0 %v567
      %589 = vmatpush.bf16.msra.mxu0 %v566
      %590 = vmatmul.bf16.gmra.mxu0 %v516
      %v591 = vpop.f32.mrf.mxu0
      %v592 = vadd.f32 0.0, %v591
      %v593 = vpop.f32.mrf.mxu0
      %v594 = vadd.f32 0.0, %v593
      %595 = vmatmul.bf16.gmra.mxu0 %v525
      %v596 = vpop.f32.mrf.mxu0
      %v597 = vadd.f32 0.0, %v596
      %v598 = vpop.f32.mrf.mxu0
      %v599 = vadd.f32 0.0, %v598
      %600 = vmatmul.bf16.gmra.mxu0 %v530
      %v601 = vpop.f32.mrf.mxu0
      %v602 = vadd.f32 0.0, %v601
      %v603 = vpop.f32.mrf.mxu0
      %v604 = vadd.f32 0.0, %v603
      %605 = vdwg.mxu0
      %vm606 = vcmask 1044480
      %v607 = vrot.slane %v495, 3
      %v608 = vrot.slane %v496, 3
      %v609 = vsel %vm606, %v607, %v608
      %v610 = vrot.slane %v497, 3
      %v611 = vsel %vm606, %v608, %v610
      %v631 = vunpack.c.l.b16 %v448
      %v632 = vunpack.c.l.b16 %v449
      %v633 = vunpack.c.l.b16 %v450
      %v634 = vunpack.c.l.b16 %v451
      %v635 = vunpack.c.l.b16 %v452
      %v636 = vunpack.c.l.b16 %v453
      %v637 = vunpack.c.l.b16 %v454
      %v638 = vunpack.c.l.b16 %v455
      %v639 = vunpack.c.l.b16 %v456
      %v640 = vunpack.c.l.b16 %v457
      %v641 = vunpack.c.l.b16 %v458
      %v642 = vunpack.c.l.b16 %v459
      %v643 = vunpack.c.l.b16 %v460
      %v644 = vunpack.c.l.b16 %v461
      %v645 = vunpack.c.l.b16 %v462
      %v646 = vunpack.c.l.b16 %v463
      %v647 = vpack.c.b16 %v632, %v631
      %v648 = vpack.c.b16 %v634, %v633
      %v649 = vpack.c.b16 %v636, %v635
      %v650 = vpack.c.b16 %v638, %v637
      %v651 = vpack.c.b16 %v640, %v639
      %v652 = vpack.c.b16 %v642, %v641
      %v653 = vpack.c.b16 %v644, %v643
      %v654 = vpack.c.b16 %v646, %v645
      %663 = vmatpush.bf16.msra.mxu0 %v654
      %664 = vmatpush.bf16.msra.mxu0 %v653
      %665 = vmatpush.bf16.msra.mxu0 %v652
      %666 = vmatpush.bf16.msra.mxu0 %v651
      %667 = vmatpush.bf16.msra.mxu0 %v650
      %668 = vmatpush.bf16.msra.mxu0 %v649
      %669 = vmatpush.bf16.msra.mxu0 %v648
      %670 = vmatpush.bf16.msra.mxu0 %v647
      %671 = vmatmul.bf16.gmra.mxu0 %v609
      %v672 = vpop.f32.mrf.mxu0
      %v673 = vadd.f32 %v592, %v672
      %v674 = vpop.f32.mrf.mxu0
      %v675 = vadd.f32 %v594, %v674
      %676 = vmatmul.bf16.gmra.mxu0 %v611
      %v677 = vpop.f32.mrf.mxu0
      %v678 = vadd.f32 %v597, %v677
      %v679 = vpop.f32.mrf.mxu0
      %v680 = vadd.f32 %v599, %v679
      %681 = vmatmul.bf16.gmra.mxu0 %v610
      %v682 = vpop.f32.mrf.mxu0
      %v683 = vadd.f32 %v602, %v682
      %v684 = vpop.f32.mrf.mxu0
      %v685 = vadd.f32 %v604, %v684
      %686 = vdwg.mxu0
      %s687 = scalar_lea.vmem %s3, 128
      %v688 = vld [vmem:[%s687] sm:$0xf]
      %v689 = vld [vmem:[%s687 + $0x4] sm:$0xf]
      %v690 = vld [vmem:[%s687 + $0x8] sm:$0xf]
      %v691 = vld [vmem:[%s687 + $0xc] sm:$0xf]
      %v692 = vld [vmem:[%s687 + $0x10] sm:$0xf]
      %v693 = vld [vmem:[%s687 + $0x14] sm:$0xf]
      %v694 = vld [vmem:[%s687 + $0x18] sm:$0xf]
      %v695 = vld [vmem:[%s687 + $0x1c] sm:$0xf]
      %v696 = vld [vmem:[%s687 + $0x20] sm:$0xf]
      %v697 = vld [vmem:[%s687 + $0x24] sm:$0xf]
      %v698 = vld [vmem:[%s687 + $0x28] sm:$0xf]
      %v699 = vld [vmem:[%s687 + $0x2c] sm:$0xf]
      %v700 = vld [vmem:[%s687 + $0x30] sm:$0xf]
      %v701 = vld [vmem:[%s687 + $0x34] sm:$0xf]
      %v702 = vld [vmem:[%s687 + $0x38] sm:$0xf]
      %v703 = vld [vmem:[%s687 + $0x3c] sm:$0xf]
      %v704 = vpack.c.b16 %v490, %v489
      %v705 = vpack.c.b16 %v492, %v491
      %v706 = vpack.c.b16 %v494, %v493
      %v726 = vunpack.c.l.b16 %v688
      %v727 = vunpack.c.l.b16 %v689
      %v728 = vunpack.c.l.b16 %v690
      %v729 = vunpack.c.l.b16 %v691
      %v730 = vunpack.c.l.b16 %v692
      %v731 = vunpack.c.l.b16 %v693
      %v732 = vunpack.c.l.b16 %v694
      %v733 = vunpack.c.l.b16 %v695
      %v734 = vunpack.c.l.b16 %v696
      %v735 = vunpack.c.l.b16 %v697
      %v736 = vunpack.c.l.b16 %v698
      %v737 = vunpack.c.l.b16 %v699
      %v738 = vunpack.c.l.b16 %v700
      %v739 = vunpack.c.l.b16 %v701
      %v740 = vunpack.c.l.b16 %v702
      %v741 = vunpack.c.l.b16 %v703
      %v742 = vpack.c.b16 %v727, %v726
      %v743 = vpack.c.b16 %v729, %v728
      %v744 = vpack.c.b16 %v731, %v730
      %v745 = vpack.c.b16 %v733, %v732
      %v746 = vpack.c.b16 %v735, %v734
      %v747 = vpack.c.b16 %v737, %v736
      %v748 = vpack.c.b16 %v739, %v738
      %v749 = vpack.c.b16 %v741, %v740
      %758 = vmatpush.bf16.msra.mxu0 %v749
      %759 = vmatpush.bf16.msra.mxu0 %v748
      %760 = vmatpush.bf16.msra.mxu0 %v747
      %761 = vmatpush.bf16.msra.mxu0 %v746
      %762 = vmatpush.bf16.msra.mxu0 %v745
      %763 = vmatpush.bf16.msra.mxu0 %v744
      %764 = vmatpush.bf16.msra.mxu0 %v743
      %765 = vmatpush.bf16.msra.mxu0 %v742
      %766 = vmatmul.bf16.gmra.mxu0 %v704
      %v767 = vpop.f32.mrf.mxu0
      %v768 = vadd.f32 0.0, %v767
      %v769 = vpop.f32.mrf.mxu0
      %v770 = vadd.f32 0.0, %v769
      %771 = vmatmul.bf16.gmra.mxu0 %v705
      %v772 = vpop.f32.mrf.mxu0
      %v773 = vadd.f32 0.0, %v772
      %v774 = vpop.f32.mrf.mxu0
      %v775 = vadd.f32 0.0, %v774
      %776 = vmatmul.bf16.gmra.mxu0 %v706
      %v777 = vpop.f32.mrf.mxu0
      %v778 = vadd.f32 0.0, %v777
      %v779 = vpop.f32.mrf.mxu0
      %v780 = vadd.f32 0.0, %v779
      %781 = vdwg.mxu0
      %v782 = vadd.f32 %v673, %v768
      %v783 = vadd.f32 %v675, %v770
      %v784 = vadd.f32 %v678, %v773
      %v785 = vadd.f32 %v680, %v775
      %v786 = vadd.f32 %v683, %v778
      %v787 = vadd.f32 %v685, %v780
      %v788 = vld [vmem:[%s4] sm:$0x1]
      %v790 = vperm.slane %v788, 0
      %v792 = vmul.f32 %v782, %v790
      %v793 = vmul.f32 %v783, %v790
      %v794 = vmul.f32 %v784, %v790
      %v795 = vmul.f32 %v785, %v790
      %v796 = vmul.f32 %v786, %v790
      %v797 = vmul.f32 %v787, %v790
      %v798 = vld [vmem:[%s5] sm:$0x1]
      %v800 = vperm.slane %v798, 0
      %v802 = vadd.f32 %v792, %v800
      %v803 = vadd.f32 %v793, %v800
      %v804 = vadd.f32 %v794, %v800
      %v805 = vadd.f32 %v795, %v800
      %v806 = vadd.f32 %v796, %v800
      %v807 = vadd.f32 %v797, %v800
      %v808 = vmax.f32 %v802, 0.0
      %v809 = vmax.f32 %v803, 0.0
      %v810 = vmax.f32 %v804, 0.0
      %v811 = vmax.f32 %v805, 0.0
      %v812 = vmax.f32 %v806, 0.0
      %v813 = vmax.f32 %v807, 0.0
      %s814 = smul.u32 %s25, 40
      %s815 = ssub.s32 %s814, 1
      %v816 = vlaneseq
      %v817 = vshrl.u32 %v816, 7
      %v818 = vadd.s32 %v817, 8
      %v819 = vadd.s32 %v817, 16
      %v820 = vadd.s32 %v817, 24
      %v821 = vadd.s32 %v817, 32
      %v822 = vadd.s32 %v817, 40
      %v823 = vstv %s815
      %v824 = vadd.s32 %v823, %v817
      %v825 = vadd.s32 %v823, %v818
      %v826 = vadd.s32 %v823, %v819
      %v827 = vadd.s32 %v823, %v820
      %v828 = vadd.s32 %v823, %v821
      %v829 = vadd.s32 %v823, %v822
      %vm830 = vcmp.ge.s32.totalorder %v824, 0
      %vm831 = vcmp.ge.s32.totalorder %v825, 0
      %vm832 = vcmp.ge.s32.totalorder %v826, 0
      %vm833 = vcmp.ge.s32.totalorder %v827, 0
      %vm834 = vcmp.ge.s32.totalorder %v828, 0
      %vm835 = vcmp.ge.s32.totalorder %v829, 0
      %vm836 = vcmp.lt.s32.totalorder %v824, 33
      %vm837 = vcmp.lt.s32.totalorder %v825, 33
      %vm838 = vcmp.lt.s32.totalorder %v826, 33
      %vm839 = vcmp.lt.s32.totalorder %v827, 33
      %vm840 = vcmp.lt.s32.totalorder %v828, 33
      %vm841 = vcmp.lt.s32.totalorder %v829, 33
      %vm842 = vmand %vm830, %vm836
      %vm843 = vmand %vm831, %vm837
      %vm844 = vmand %vm832, %vm838
      %vm845 = vmand %vm833, %vm839
      %vm846 = vmand %vm834, %vm840
      %vm847 = vmand %vm835, %vm841
      %v848 = vsel %vm842, 1, 0
      %v849 = vsel %vm843, 1, 0
      %v850 = vsel %vm844, 1, 0
      %v851 = vsel %vm845, 1, 0
      %v852 = vsel %vm846, 1, 0
      %v853 = vsel %vm847, 1, 0
      %vm854 = vcmp.eq.s32.totalorder %v848, 1
      %vm855 = vcmp.eq.s32.totalorder %v849, 1
      %vm856 = vcmp.eq.s32.totalorder %v850, 1
      %vm857 = vcmp.eq.s32.totalorder %v851, 1
      %vm858 = vcmp.eq.s32.totalorder %v852, 1
      %vm859 = vcmp.eq.s32.totalorder %v853, 1
      %v860 = vsel %vm854, %v808, 0.0
      %v861 = vsel %vm855, %v809, 0.0
      %v862 = vsel %vm856, %v810, 0.0
      %v863 = vsel %vm857, %v811, 0.0
      %v864 = vsel %vm858, %v812, 0.0
      %v865 = vsel %vm859, %v813, 0.0
      %v866 = vpack.c.bf16 %v860, %v860
      %v867 = vpack.c.bf16 %v861, %v861
      %v868 = vpack.c.bf16 %v862, %v862
      %v869 = vpack.c.bf16 %v863, %v863
      %v870 = vpack.c.bf16 %v864, %v864
      %v871 = vpack.c.bf16 %v865, %v865
      %v872 = vld [vmem:[%s6] sm:$0xf]
      %v873 = vld [vmem:[%s6 + $0x4] sm:$0xf]
      %v874 = vld [vmem:[%s6 + $0x8] sm:$0xf]
      %v875 = vld [vmem:[%s6 + $0xc] sm:$0xf]
      %v876 = vld [vmem:[%s6 + $0x10] sm:$0xf]
      %v877 = vld [vmem:[%s6 + $0x14] sm:$0xf]
      %v878 = vld [vmem:[%s6 + $0x18] sm:$0xf]
      %v879 = vld [vmem:[%s6 + $0x1c] sm:$0xf]
      %v880 = vld [vmem:[%s6 + $0x20] sm:$0xf]
      %v881 = vld [vmem:[%s6 + $0x24] sm:$0xf]
      %v882 = vld [vmem:[%s6 + $0x28] sm:$0xf]
      %v883 = vld [vmem:[%s6 + $0x2c] sm:$0xf]
      %v884 = vld [vmem:[%s6 + $0x30] sm:$0xf]
      %v885 = vld [vmem:[%s6 + $0x34] sm:$0xf]
      %v886 = vld [vmem:[%s6 + $0x38] sm:$0xf]
      %v887 = vld [vmem:[%s6 + $0x3c] sm:$0xf]
      %s888 = scalar_lea.vmem %s6, 64
      %v889 = vld [vmem:[%s888] sm:$0xf]
      %v890 = vld [vmem:[%s888 + $0x4] sm:$0xf]
      %v891 = vld [vmem:[%s888 + $0x8] sm:$0xf]
      %v892 = vld [vmem:[%s888 + $0xc] sm:$0xf]
      %v893 = vld [vmem:[%s888 + $0x10] sm:$0xf]
      %v894 = vld [vmem:[%s888 + $0x14] sm:$0xf]
      %v895 = vld [vmem:[%s888 + $0x18] sm:$0xf]
      %v896 = vld [vmem:[%s888 + $0x1c] sm:$0xf]
      %v897 = vld [vmem:[%s888 + $0x20] sm:$0xf]
      %v898 = vld [vmem:[%s888 + $0x24] sm:$0xf]
      %v899 = vld [vmem:[%s888 + $0x28] sm:$0xf]
      %v900 = vld [vmem:[%s888 + $0x2c] sm:$0xf]
      %v901 = vld [vmem:[%s888 + $0x30] sm:$0xf]
      %v902 = vld [vmem:[%s888 + $0x34] sm:$0xf]
      %v903 = vld [vmem:[%s888 + $0x38] sm:$0xf]
      %v904 = vld [vmem:[%s888 + $0x3c] sm:$0xf]
      %v911 = vunpack.c.l.b16 %v866
      %v912 = vunpack.c.l.b16 %v867
      %v913 = vunpack.c.l.b16 %v868
      %v914 = vunpack.c.l.b16 %v869
      %v915 = vunpack.c.l.b16 %v870
      %v916 = vunpack.c.l.b16 %v871
      %v917 = vpack.c.b16 %v912, %v911
      %v918 = vpack.c.b16 %v914, %v913
      %v919 = vpack.c.b16 %v916, %v915
      %vm920 = vsmask.f32 7424
      %v922 = vshrl.u32 %v917, 16
      %v924 = vshll.u32 %v917, 16
      %v926 = vrot.slane %v924, 1
      %v927 = vor.u32 %v922, %v926
      %v929 = vshll.u32 %v918, 16
      %v931 = vrot.slane %v929, 1
      %v932 = vsel %vm920, %v927, %v931
      %v933 = vshrl.u32 %v918, 16
      %v935 = vor.u32 %v933, %v931
      %v937 = vshll.u32 %v919, 16
      %v939 = vrot.slane %v937, 1
      %v940 = vsel %vm920, %v935, %v939
      %v941 = vshrl.u32 %v919, 16
      %v943 = vor.u32 %v941, %v939
      %v963 = vunpack.c.l.b16 %v889
      %v964 = vunpack.c.l.b16 %v890
      %v965 = vunpack.c.l.b16 %v891
      %v966 = vunpack.c.l.b16 %v892
      %v967 = vunpack.c.l.b16 %v893
      %v968 = vunpack.c.l.b16 %v894
      %v969 = vunpack.c.l.b16 %v895
      %v970 = vunpack.c.l.b16 %v896
      %v971 = vunpack.c.l.b16 %v897
      %v972 = vunpack.c.l.b16 %v898
      %v973 = vunpack.c.l.b16 %v899
      %v974 = vunpack.c.l.b16 %v900
      %v975 = vunpack.c.l.b16 %v901
      %v976 = vunpack.c.l.b16 %v902
      %v977 = vunpack.c.l.b16 %v903
      %v978 = vunpack.c.l.b16 %v904
      %v979 = vpack.c.b16 %v964, %v963
      %v980 = vpack.c.b16 %v966, %v965
      %v981 = vpack.c.b16 %v968, %v967
      %v982 = vpack.c.b16 %v970, %v969
      %v983 = vpack.c.b16 %v972, %v971
      %v984 = vpack.c.b16 %v974, %v973
      %v985 = vpack.c.b16 %v976, %v975
      %v986 = vpack.c.b16 %v978, %v977
      %995 = vmatpush.bf16.msra.mxu0 %v986
      %996 = vmatpush.bf16.msra.mxu0 %v985
      %997 = vmatpush.bf16.msra.mxu0 %v984
      %998 = vmatpush.bf16.msra.mxu0 %v983
      %999 = vmatpush.bf16.msra.mxu0 %v982
      %1000 = vmatpush.bf16.msra.mxu0 %v981
      %1001 = vmatpush.bf16.msra.mxu0 %v980
      %1002 = vmatpush.bf16.msra.mxu0 %v979
      %1003 = vmatmul.bf16.gmra.mxu0 %v932
      %v1004 = vpop.f32.mrf.mxu0
      %v1005 = vadd.f32 0.0, %v1004
      %v1006 = vpop.f32.mrf.mxu0
      %v1007 = vadd.f32 0.0, %v1006
      %1008 = vmatmul.bf16.gmra.mxu0 %v940
      %v1009 = vpop.f32.mrf.mxu0
      %v1010 = vadd.f32 0.0, %v1009
      %v1011 = vpop.f32.mrf.mxu0
      %v1012 = vadd.f32 0.0, %v1011
      %1013 = vmatmul.bf16.gmra.mxu0 %v943
      %v1014 = vpop.f32.mrf.mxu0
      %v1015 = vadd.f32 0.0, %v1014
      %v1016 = vpop.f32.mrf.mxu0
      %1017 = vdwg.mxu0
      %v1018 = vpack.c.b16 %v915, %v915
      %v1038 = vunpack.c.l.b16 %v872
      %v1039 = vunpack.c.l.b16 %v873
      %v1040 = vunpack.c.l.b16 %v874
      %v1041 = vunpack.c.l.b16 %v875
      %v1042 = vunpack.c.l.b16 %v876
      %v1043 = vunpack.c.l.b16 %v877
      %v1044 = vunpack.c.l.b16 %v878
      %v1045 = vunpack.c.l.b16 %v879
      %v1046 = vunpack.c.l.b16 %v880
      %v1047 = vunpack.c.l.b16 %v881
      %v1048 = vunpack.c.l.b16 %v882
      %v1049 = vunpack.c.l.b16 %v883
      %v1050 = vunpack.c.l.b16 %v884
      %v1051 = vunpack.c.l.b16 %v885
      %v1052 = vunpack.c.l.b16 %v886
      %v1053 = vunpack.c.l.b16 %v887
      %v1054 = vpack.c.b16 %v1039, %v1038
      %v1055 = vpack.c.b16 %v1041, %v1040
      %v1056 = vpack.c.b16 %v1043, %v1042
      %v1057 = vpack.c.b16 %v1045, %v1044
      %v1058 = vpack.c.b16 %v1047, %v1046
      %v1059 = vpack.c.b16 %v1049, %v1048
      %v1060 = vpack.c.b16 %v1051, %v1050
      %v1061 = vpack.c.b16 %v1053, %v1052
      %1070 = vmatpush.bf16.msra.mxu0 %v1061
      %1071 = vmatpush.bf16.msra.mxu0 %v1060
      %1072 = vmatpush.bf16.msra.mxu0 %v1059
      %1073 = vmatpush.bf16.msra.mxu0 %v1058
      %1074 = vmatpush.bf16.msra.mxu0 %v1057
      %1075 = vmatpush.bf16.msra.mxu0 %v1056
      %1076 = vmatpush.bf16.msra.mxu0 %v1055
      %1077 = vmatpush.bf16.msra.mxu0 %v1054
      %1078 = vmatmul.bf16.gmra.mxu0 %v917
      %v1079 = vpop.f32.mrf.mxu0
      %v1080 = vadd.f32 %v1005, %v1079
      %v1081 = vpop.f32.mrf.mxu0
      %v1082 = vadd.f32 %v1007, %v1081
      %1083 = vmatmul.bf16.gmra.mxu0 %v918
      %v1084 = vpop.f32.mrf.mxu0
      %v1085 = vadd.f32 %v1010, %v1084
      %v1086 = vpop.f32.mrf.mxu0
      %v1087 = vadd.f32 %v1012, %v1086
      %1088 = vmatmul.bf16.gmra.mxu0 %v1018
      %v1089 = vpop.f32.mrf.mxu0
      %v1090 = vadd.f32 %v1015, %v1089
      %v1091 = vpop.f32.mrf.mxu0
      %1092 = vdwg.mxu0
      %s1093 = scalar_lea.vmem %s6, 128
      %v1094 = vld [vmem:[%s1093] sm:$0xf]
      %v1095 = vld [vmem:[%s1093 + $0x4] sm:$0xf]
      %v1096 = vld [vmem:[%s1093 + $0x8] sm:$0xf]
      %v1097 = vld [vmem:[%s1093 + $0xc] sm:$0xf]
      %v1098 = vld [vmem:[%s1093 + $0x10] sm:$0xf]
      %v1099 = vld [vmem:[%s1093 + $0x14] sm:$0xf]
      %v1100 = vld [vmem:[%s1093 + $0x18] sm:$0xf]
      %v1101 = vld [vmem:[%s1093 + $0x1c] sm:$0xf]
      %v1102 = vld [vmem:[%s1093 + $0x20] sm:$0xf]
      %v1103 = vld [vmem:[%s1093 + $0x24] sm:$0xf]
      %v1104 = vld [vmem:[%s1093 + $0x28] sm:$0xf]
      %v1105 = vld [vmem:[%s1093 + $0x2c] sm:$0xf]
      %v1106 = vld [vmem:[%s1093 + $0x30] sm:$0xf]
      %v1107 = vld [vmem:[%s1093 + $0x34] sm:$0xf]
      %v1108 = vld [vmem:[%s1093 + $0x38] sm:$0xf]
      %v1109 = vld [vmem:[%s1093 + $0x3c] sm:$0xf]
      %vm1110 = vcmask 1046528
      %v1111 = vrot.slane %v917, 1
      %v1112 = vrot.slane %v918, 1
      %v1113 = vsel %vm1110, %v1111, %v1112
      %v1114 = vrot.slane %v919, 1
      %v1115 = vsel %vm1110, %v1112, %v1114
      %v1135 = vunpack.c.l.b16 %v1094
      %v1136 = vunpack.c.l.b16 %v1095
      %v1137 = vunpack.c.l.b16 %v1096
      %v1138 = vunpack.c.l.b16 %v1097
      %v1139 = vunpack.c.l.b16 %v1098
      %v1140 = vunpack.c.l.b16 %v1099
      %v1141 = vunpack.c.l.b16 %v1100
      %v1142 = vunpack.c.l.b16 %v1101
      %v1143 = vunpack.c.l.b16 %v1102
      %v1144 = vunpack.c.l.b16 %v1103
      %v1145 = vunpack.c.l.b16 %v1104
      %v1146 = vunpack.c.l.b16 %v1105
      %v1147 = vunpack.c.l.b16 %v1106
      %v1148 = vunpack.c.l.b16 %v1107
      %v1149 = vunpack.c.l.b16 %v1108
      %v1150 = vunpack.c.l.b16 %v1109
      %v1151 = vpack.c.b16 %v1136, %v1135
      %v1152 = vpack.c.b16 %v1138, %v1137
      %v1153 = vpack.c.b16 %v1140, %v1139
      %v1154 = vpack.c.b16 %v1142, %v1141
      %v1155 = vpack.c.b16 %v1144, %v1143
      %v1156 = vpack.c.b16 %v1146, %v1145
      %v1157 = vpack.c.b16 %v1148, %v1147
      %v1158 = vpack.c.b16 %v1150, %v1149
      %1167 = vmatpush.bf16.msra.mxu0 %v1158
      %1168 = vmatpush.bf16.msra.mxu0 %v1157
      %1169 = vmatpush.bf16.msra.mxu0 %v1156
      %1170 = vmatpush.bf16.msra.mxu0 %v1155
      %1171 = vmatpush.bf16.msra.mxu0 %v1154
      %1172 = vmatpush.bf16.msra.mxu0 %v1153
      %1173 = vmatpush.bf16.msra.mxu0 %v1152
      %1174 = vmatpush.bf16.msra.mxu0 %v1151
      %1175 = vmatmul.bf16.gmra.mxu0 %v1113
      %v1176 = vpop.f32.mrf.mxu0
      %v1177 = vadd.f32 0.0, %v1176
      %v1178 = vpop.f32.mrf.mxu0
      %v1179 = vadd.f32 0.0, %v1178
      %1180 = vmatmul.bf16.gmra.mxu0 %v1115
      %v1181 = vpop.f32.mrf.mxu0
      %v1182 = vadd.f32 0.0, %v1181
      %v1183 = vpop.f32.mrf.mxu0
      %v1184 = vadd.f32 0.0, %v1183
      %1185 = vmatmul.bf16.gmra.mxu0 %v1114
      %v1186 = vpop.f32.mrf.mxu0
      %v1187 = vadd.f32 0.0, %v1186
      %v1188 = vpop.f32.mrf.mxu0
      %1189 = vdwg.mxu0
      %v1190 = vadd.f32 %v1080, %v1177
      %v1191 = vadd.f32 %v1082, %v1179
      %v1192 = vadd.f32 %v1085, %v1182
      %v1193 = vadd.f32 %v1087, %v1184
      %v1194 = vadd.f32 %v1090, %v1187
      %v1195 = vld [vmem:[%s7] sm:$0x1]
      %v1197 = vperm.slane %v1195, 0
      %v1199 = vmul.f32 %v1190, %v1197
      %v1200 = vmul.f32 %v1191, %v1197
      %v1201 = vmul.f32 %v1192, %v1197
      %v1202 = vmul.f32 %v1193, %v1197
      %v1203 = vmul.f32 %v1194, %v1197
      %v1204 = vld [vmem:[%s8] sm:$0x1]
      %v1206 = vperm.slane %v1204, 0
      %v1208 = vadd.f32 %v1199, %v1206
      %v1209 = vadd.f32 %v1200, %v1206
      %v1210 = vadd.f32 %v1201, %v1206
      %v1211 = vadd.f32 %v1202, %v1206
      %v1212 = vadd.f32 %v1203, %v1206
      %v1213 = vunpack.c.l.bf16 %v422
      %v1214 = vunpack.c.l.bf16 %v423
      %v1215 = vunpack.c.l.bf16 %v424
      %v1216 = vunpack.c.l.bf16 %v425
      %v1217 = vunpack.c.l.bf16 %v426
      %v1218 = vadd.f32 %v1208, %v1213
      %v1219 = vadd.f32 %v1209, %v1214
      %v1220 = vadd.f32 %v1210, %v1215
      %v1221 = vadd.f32 %v1211, %v1216
      %v1222 = vadd.f32 %v1212, %v1217
      %v1223 = vstv %s814
      %v1224 = vadd.s32 %v1223, %v817
      %v1225 = vadd.s32 %v1223, %v818
      %v1226 = vadd.s32 %v1223, %v819
      %v1227 = vadd.s32 %v1223, %v820
      %v1228 = vadd.s32 %v1223, %v821
      %vm1229 = vcmp.lt.s32.totalorder %v1224, 33
      %vm1230 = vcmp.lt.s32.totalorder %v1225, 33
      %vm1231 = vcmp.lt.s32.totalorder %v1226, 33
      %vm1232 = vcmp.lt.s32.totalorder %v1227, 33
      %vm1233 = vcmp.lt.s32.totalorder %v1228, 33
      %v1234 = vsel %vm1229, 1, 0
      %v1235 = vsel %vm1230, 1, 0
      %v1236 = vsel %vm1231, 1, 0
      %v1237 = vsel %vm1232, 1, 0
      %v1238 = vsel %vm1233, 1, 0
      %vm1239 = vcmp.eq.s32.totalorder %v1234, 1
      %vm1240 = vcmp.eq.s32.totalorder %v1235, 1
      %vm1241 = vcmp.eq.s32.totalorder %v1236, 1
      %vm1242 = vcmp.eq.s32.totalorder %v1237, 1
      %vm1243 = vcmp.eq.s32.totalorder %v1238, 1
      %v1244 = vsel %vm1239, %v1218, 0.0
      %v1245 = vsel %vm1240, %v1219, 0.0
      %v1246 = vsel %vm1241, %v1220, 0.0
      %v1247 = vsel %vm1242, %v1221, 0.0
      %v1248 = vsel %vm1243, %v1222, 0.0
      %v1249 = vpack.c.bf16 %v1244, %v1244
      %v1250 = vpack.c.bf16 %v1245, %v1245
      %v1251 = vpack.c.bf16 %v1246, %v1246
      %v1252 = vpack.c.bf16 %v1247, %v1247
      %v1253 = vpack.c.bf16 %v1248, %v1248
      %1254 = vst [vmem:[%s420] sm:$0xf] %v1249
      %1255 = vst [vmem:[%s420 + $0x4] sm:$0xf] %v1250
      %1256 = vst [vmem:[%s420 + $0x8] sm:$0xf] %v1251
      %1257 = vst [vmem:[%s420 + $0xc] sm:$0xf] %v1252
      %1258 = vst [vmem:[%s420 + $0x10] sm:$0xf] %v1253
      %s1259 = smul.u32 5, %s25
      %p1260 = scmp.lt.s32.totalorder %s24, 1
      %s1261 = scalar_select %p1260, %s24, 1
      %p1262 = scmp.lt.s32.totalorder %s1259, 4
      %s1263 = scalar_select %p1262, %s1259, 4
      %s1264 = smul.addr %s1261, 5
      %s1265 = sadd.s32 %s1263, %s1264
      %s1266 = smul.addr %s1265, 4
      %s1267 = scalar_lea.vmem %s9, %s1266
      // Predicated region
      $region57: #{conv_encoder_forward.8} parent=55 // pred_check
        %p1268 = pneg %p262
      $region58: #{conv_encoder_forward.8} parent=55 // pred_check_branch
        %1270 = sbr.rel (%p1268) target = $region60
      $region59: #{conv_encoder_forward.8} parent=55 // pred_region
        %s1271 = smul.u32 5, %s25
      $region60: #{conv_encoder_forward.8} parent=55 // pred_fallthru
        _
    $region56: #{conv_encoder_forward.8} parent=5 // pred_fallthru
      _
    %p1272 = scmp.le.s32.totalorder 2, %s15
    // Predicated region
    $region61: #{conv_encoder_forward.8} parent=5 // pred_check
      %p1273 = pneg %p1272
    $region62: #{conv_encoder_forward.8} parent=5 // pred_check_branch
      %1275 = sbr.rel (%p1273) target = $region64
    $region63: #{conv_encoder_forward.8} parent=5 // pred_region
      %s1276 = ssub.s32 %s15, 2
      // Predicated region
      $region65: #{conv_encoder_forward.8} parent=63 // pred_check
        %p1277 = pneg %p268
      $region66: #{conv_encoder_forward.8} parent=63 // pred_check_branch
        %1279 = sbr.rel (%p1277) target = $region68
      $region67: #{conv_encoder_forward.8} parent=63 // pred_region
        %s1280 = smul.u32 5, %s27
        %p1281 = scmp.lt.s32.totalorder %s26, 1
        %s1282 = scalar_select %p1281, %s26, 1
        %p1283 = scmp.lt.s32.totalorder %s1280, 4
        %s1284 = scalar_select %p1283, %s1280, 4
        %s1285 = smul.addr %s1282, 5
        %s1286 = sadd.s32 %s1284, %s1285
        %s1287 = smul.addr %s1286, 4
        %s1288 = scalar_lea.vmem %s9, %s1287
      $region68: #{conv_encoder_forward.8} parent=63 // pred_fallthru
        _
    $region64: #{conv_encoder_forward.8} parent=5 // pred_fallthru
      _
  $region6: #{conv_encoder_forward.8} parent=0 // loop_footer
    %s19 = sadd.s32 1, %s15
  $region7: #{conv_encoder_forward.8} parent=0 // loop_footer_branch
    %14 = sbr.rel target = $region3
  $region8: #{conv_encoder_forward.8} parent=0 // loop_exit
    _

// kernel: conv_encoder_forward.9
$region0: #{conv_encoder_forward.9}
  #allocation0 [shape = 'u32[]', space=smem, size = 0x4, offset = 0x4, fixed_abs, tag = 'smem constant byte address 0x4 - core index']
  #allocation1 [shape = 'u32[72,128]{1,0:T(1,128)}', space=vmem, size = 0x9000, scoped, tag = 'internal scratch']
  %s0 = inlined_call_operand.vmem [shape: bf16[32,128], index: 0, kind: input, shape index: {}]
  %s1 = inlined_call_operand.vmem [shape: bf16[128,768], index: 1, kind: input, shape index: {}]
  %s2 = inlined_call_operand.vmem [shape: f32[1,768], index: 2, kind: input, shape index: {}]
  %s3 = inlined_call_operand.vmem [shape: f32[1,768], index: 3, kind: input, shape index: {}]
  %s4 = inlined_call_operand.hbm [shape: f32[32,768], index: 4, kind: output, shape index: {}]
  %s5 = sld [smem:[#allocation0]]
  $region26: #{conv_encoder_forward.9} parent=0
    _
  %s7 = ssub.s32 1, %s5
  %s8 = scalar_select 0, %s7, %s5
  $region1: #{conv_encoder_forward.9} parent=0
    #allocation2 [shape = 'u8[98304]{0}', space=vmem, size = 0x18000, scoped, tag = 'output window, operand 0, single buffered']
    #allocation3 [shape = 's32[1]{0}', space=sflag, size = 0x4, scoped, tag = 'scoped memory for conv_encoder_forward.9']
    %9 = vsyncpa [#allocation3], 0
    // Predicated region
    $region2: #{conv_encoder_forward.9} parent=1 // pred_check
      _
    $region3: #{conv_encoder_forward.9} parent=1 // pred_check_branch
      %11 = sbr.rel (0) target = $region5
    $region4: #{conv_encoder_forward.9} parent=1 // pred_region
      _
    $region5: #{conv_encoder_forward.9} parent=1 // pred_fallthru
      _
    // Predicated region
    $region6: #{conv_encoder_forward.9} parent=1 // pred_check
      _
    $region7: #{conv_encoder_forward.9} parent=1 // pred_check_branch
      %13 = sbr.rel (0) target = $region9
    $region8: #{conv_encoder_forward.9} parent=1 // pred_region
      _
    $region9: #{conv_encoder_forward.9} parent=1 // pred_fallthru
      _
    // Predicated region
    $region10: #{conv_encoder_forward.9} parent=1 // pred_check
      _
    $region11: #{conv_encoder_forward.9} parent=1 // pred_check_branch
      %15 = sbr.rel (0) target = $region13
    $region12: #{conv_encoder_forward.9} parent=1 // pred_region
      _
    $region13: #{conv_encoder_forward.9} parent=1 // pred_fallthru
      _
    // Predicated region
    $region14: #{conv_encoder_forward.9} parent=1 // pred_check
      _
    $region15: #{conv_encoder_forward.9} parent=1 // pred_check_branch
      %17 = sbr.rel (0) target = $region17
    $region16: #{conv_encoder_forward.9} parent=1 // pred_region
      _
    $region17: #{conv_encoder_forward.9} parent=1 // pred_fallthru
      _
    %v18 = vld [vmem:[%s0] sm:$0xf]
    %v19 = vld [vmem:[%s0 + $0x4] sm:$0xf]
    %v20 = vld [vmem:[%s0 + $0x8] sm:$0xf]
    %v21 = vld [vmem:[%s0 + $0xc] sm:$0xf]
    %v22 = vld [vmem:[%s1] sm:$0xff]
    %v23 = vld [vmem:[%s1 + $0x8] sm:$0xff]
    %v24 = vld [vmem:[%s1 + $0x10] sm:$0xff]
    %v25 = vld [vmem:[%s1 + $0x18] sm:$0xff]
    %v26 = vld [vmem:[%s1 + $0x20] sm:$0xff]
    %v27 = vld [vmem:[%s1 + $0x28] sm:$0xff]
    %v28 = vld [vmem:[%s1 + $0x30] sm:$0xff]
    %v29 = vld [vmem:[%s1 + $0x38] sm:$0xff]
    %v30 = vld [vmem:[%s1 + $0x40] sm:$0xff]
    %v31 = vld [vmem:[%s1 + $0x48] sm:$0xff]
    %v32 = vld [vmem:[%s1 + $0x50] sm:$0xff]
    %v33 = vld [vmem:[%s1 + $0x58] sm:$0xff]
    %v34 = vld [vmem:[%s1 + $0x60] sm:$0xff]
    %v35 = vld [vmem:[%s1 + $0x68] sm:$0xff]
    %v36 = vld [vmem:[%s1 + $0x70] sm:$0xff]
    %v37 = vld [vmem:[%s1 + $0x78] sm:$0xff]
    %v38 = vld [vmem:[%s1 + $0x80] sm:$0xff]
    %v39 = vld [vmem:[%s1 + $0x88] sm:$0xff]
    %v40 = vld [vmem:[%s1 + $0x90] sm:$0xff]
    %v41 = vld [vmem:[%s1 + $0x98] sm:$0xff]
    %v42 = vld [vmem:[%s1 + $0xa0] sm:$0xff]
    %v43 = vld [vmem:[%s1 + $0xa8] sm:$0xff]
    %v44 = vld [vmem:[%s1 + $0xb0] sm:$0xff]
    %v45 = vld [vmem:[%s1 + $0xb8] sm:$0xff]
    %v46 = vld [vmem:[%s1 + $0xc0] sm:$0xff]
    %v47 = vld [vmem:[%s1 + $0xc8] sm:$0xff]
    %v48 = vld [vmem:[%s1 + $0xd0] sm:$0xff]
    %v49 = vld [vmem:[%s1 + $0xd8] sm:$0xff]
    %v50 = vld [vmem:[%s1 + $0xe0] sm:$0xff]
    %v51 = vld [vmem:[%s1 + $0xe8] sm:$0xff]
    %v52 = vld [vmem:[%s1 + $0xf0] sm:$0xff]
    %v53 = vld [vmem:[%s1 + $0xf8] sm:$0xff]
    %v54 = vld [vmem:[%s1 + $0x100] sm:$0xff]
    %v55 = vld [vmem:[%s1 + $0x108] sm:$0xff]
    %v56 = vld [vmem:[%s1 + $0x110] sm:$0xff]
    %v57 = vld [vmem:[%s1 + $0x118] sm:$0xff]
    %v58 = vld [vmem:[%s1 + $0x120] sm:$0xff]
    %v59 = vld [vmem:[%s1 + $0x128] sm:$0xff]
    %v60 = vld [vmem:[%s1 + $0x130] sm:$0xff]
    %v61 = vld [vmem:[%s1 + $0x138] sm:$0xff]
    %v62 = vld [vmem:[%s1 + $0x140] sm:$0xff]
    %v63 = vld [vmem:[%s1 + $0x148] sm:$0xff]
    %v64 = vld [vmem:[%s1 + $0x150] sm:$0xff]
    %v65 = vld [vmem:[%s1 + $0x158] sm:$0xff]
    %v66 = vld [vmem:[%s1 + $0x160] sm:$0xff]
    %v67 = vld [vmem:[%s1 + $0x168] sm:$0xff]
    %v68 = vld [vmem:[%s1 + $0x170] sm:$0xff]
    %v69 = vld [vmem:[%s1 + $0x178] sm:$0xff]
    %v74 = vunpack.c.l.b16 %v18
    %v75 = vunpack.c.l.b16 %v19
    %v76 = vunpack.c.l.b16 %v20
    %v77 = vunpack.c.l.b16 %v21
    %v78 = vpack.c.b16 %v75, %v74
    %v79 = vpack.c.b16 %v77, %v76
    %v130 = vunpack.c.l.b16 %v22
    %v131 = vunpack.c.h.b16 %v22
    %v132 = vunpack.c.l.b16 %v23
    %v133 = vunpack.c.h.b16 %v23
    %v134 = vunpack.c.l.b16 %v24
    %v135 = vunpack.c.h.b16 %v24
    %v136 = vunpack.c.l.b16 %v25
    %v137 = vunpack.c.h.b16 %v25
    %v138 = vunpack.c.l.b16 %v26
    %v139 = vunpack.c.h.b16 %v26
    %v140 = vunpack.c.l.b16 %v27
    %v141 = vunpack.c.h.b16 %v27
    %v142 = vunpack.c.l.b16 %v28
    %v143 = vunpack.c.h.b16 %v28
    %v144 = vunpack.c.l.b16 %v29
    %v145 = vunpack.c.h.b16 %v29
    %v146 = vunpack.c.l.b16 %v30
    %v147 = vunpack.c.h.b16 %v30
    %v148 = vunpack.c.l.b16 %v31
    %v149 = vunpack.c.h.b16 %v31
    %v150 = vunpack.c.l.b16 %v32
    %v151 = vunpack.c.h.b16 %v32
    %v152 = vunpack.c.l.b16 %v33
    %v153 = vunpack.c.h.b16 %v33
    %v154 = vunpack.c.l.b16 %v34
    %v155 = vunpack.c.h.b16 %v34
    %v156 = vunpack.c.l.b16 %v35
    %v157 = vunpack.c.h.b16 %v35
    %v158 = vunpack.c.l.b16 %v36
    %v159 = vunpack.c.h.b16 %v36
    %v160 = vunpack.c.l.b16 %v37
    %v161 = vunpack.c.h.b16 %v37
    %v162 = vunpack.c.l.b16 %v38
    %v163 = vunpack.c.h.b16 %v38
    %v164 = vunpack.c.l.b16 %v39
    %v165 = vunpack.c.h.b16 %v39
    %v166 = vunpack.c.l.b16 %v40
    %v167 = vunpack.c.h.b16 %v40
    %v168 = vunpack.c.l.b16 %v41
    %v169 = vunpack.c.h.b16 %v41
    %v170 = vunpack.c.l.b16 %v42
    %v171 = vunpack.c.h.b16 %v42
    %v172 = vunpack.c.l.b16 %v43
    %v173 = vunpack.c.h.b16 %v43
    %v174 = vunpack.c.l.b16 %v44
    %v175 = vunpack.c.h.b16 %v44
    %v176 = vunpack.c.l.b16 %v45
    %v177 = vunpack.c.h.b16 %v45
    %v178 = vunpack.c.l.b16 %v46
    %v179 = vunpack.c.h.b16 %v46
    %v180 = vunpack.c.l.b16 %v47
    %v181 = vunpack.c.h.b16 %v47
    %v182 = vunpack.c.l.b16 %v48
    %v183 = vunpack.c.h.b16 %v48
    %v184 = vunpack.c.l.b16 %v49
    %v185 = vunpack.c.h.b16 %v49
    %v186 = vunpack.c.l.b16 %v50
    %v187 = vunpack.c.h.b16 %v50
    %v188 = vunpack.c.l.b16 %v51
    %v189 = vunpack.c.h.b16 %v51
    %v190 = vunpack.c.l.b16 %v52
    %v191 = vunpack.c.h.b16 %v52
    %v192 = vunpack.c.l.b16 %v53
    %v193 = vunpack.c.h.b16 %v53
    %v194 = vunpack.c.l.b16 %v54
    %v195 = vunpack.c.h.b16 %v54
    %v196 = vunpack.c.l.b16 %v55
    %v197 = vunpack.c.h.b16 %v55
    %v198 = vunpack.c.l.b16 %v56
    %v199 = vunpack.c.h.b16 %v56
    %v200 = vunpack.c.l.b16 %v57
    %v201 = vunpack.c.h.b16 %v57
    %v202 = vunpack.c.l.b16 %v58
    %v203 = vunpack.c.h.b16 %v58
    %v204 = vunpack.c.l.b16 %v59
    %v205 = vunpack.c.h.b16 %v59
    %v206 = vunpack.c.l.b16 %v60
    %v207 = vunpack.c.h.b16 %v60
    %v208 = vunpack.c.l.b16 %v61
    %v209 = vunpack.c.h.b16 %v61
    %v210 = vunpack.c.l.b16 %v62
    %v211 = vunpack.c.h.b16 %v62
    %v212 = vunpack.c.l.b16 %v63
    %v213 = vunpack.c.h.b16 %v63
    %v214 = vunpack.c.l.b16 %v64
    %v215 = vunpack.c.h.b16 %v64
    %v216 = vunpack.c.l.b16 %v65
    %v217 = vunpack.c.h.b16 %v65
    %v218 = vunpack.c.l.b16 %v66
    %v219 = vunpack.c.h.b16 %v66
    %v220 = vunpack.c.l.b16 %v67
    %v221 = vunpack.c.h.b16 %v67
    %v222 = vunpack.c.l.b16 %v68
    %v223 = vunpack.c.h.b16 %v68
    %v224 = vunpack.c.l.b16 %v69
    %v225 = vunpack.c.h.b16 %v69
    %v226 = vpack.c.b16 %v136, %v130
    %v227 = vpack.c.b16 %v137, %v131
    %v228 = vpack.c.b16 %v138, %v132
    %v229 = vpack.c.b16 %v139, %v133
    %v230 = vpack.c.b16 %v140, %v134
    %v231 = vpack.c.b16 %v141, %v135
    %v232 = vpack.c.b16 %v148, %v142
    %v233 = vpack.c.b16 %v149, %v143
    %v234 = vpack.c.b16 %v150, %v144
    %v235 = vpack.c.b16 %v151, %v145
    %v236 = vpack.c.b16 %v152, %v146
    %v237 = vpack.c.b16 %v153, %v147
    %v238 = vpack.c.b16 %v160, %v154
    %v239 = vpack.c.b16 %v161, %v155
    %v240 = vpack.c.b16 %v162, %v156
    %v241 = vpack.c.b16 %v163, %v157
    %v242 = vpack.c.b16 %v164, %v158
    %v243 = vpack.c.b16 %v165, %v159
    %v244 = vpack.c.b16 %v172, %v166
    %v245 = vpack.c.b16 %v173, %v167
    %v246 = vpack.c.b16 %v174, %v168
    %v247 = vpack.c.b16 %v175, %v169
    %v248 = vpack.c.b16 %v176, %v170
    %v249 = vpack.c.b16 %v177, %v171
    %v250 = vpack.c.b16 %v184, %v178
    %v251 = vpack.c.b16 %v185, %v179
    %v252 = vpack.c.b16 %v186, %v180
    %v253 = vpack.c.b16 %v187, %v181
    %v254 = vpack.c.b16 %v188, %v182
    %v255 = vpack.c.b16 %v189, %v183
    %v256 = vpack.c.b16 %v196, %v190
    %v257 = vpack.c.b16 %v197, %v191
    %v258 = vpack.c.b16 %v198, %v192
    %v259 = vpack.c.b16 %v199, %v193
    %v260 = vpack.c.b16 %v200, %v194
    %v261 = vpack.c.b16 %v201, %v195
    %v262 = vpack.c.b16 %v208, %v202
    %v263 = vpack.c.b16 %v209, %v203
    %v264 = vpack.c.b16 %v210, %v204
    %v265 = vpack.c.b16 %v211, %v205
    %v266 = vpack.c.b16 %v212, %v206
    %v267 = vpack.c.b16 %v213, %v207
    %v268 = vpack.c.b16 %v220, %v214
    %v269 = vpack.c.b16 %v221, %v215
    %v270 = vpack.c.b16 %v222, %v216
    %v271 = vpack.c.b16 %v223, %v217
    %v272 = vpack.c.b16 %v224, %v218
    %v273 = vpack.c.b16 %v225, %v219
    %322 = vmatpush.bf16.msra.mxu0 %v268
    %323 = vmatpush.bf16.msra.mxu0 %v262
    %324 = vmatpush.bf16.msra.mxu0 %v256
    %325 = vmatpush.bf16.msra.mxu0 %v250
    %326 = vmatpush.bf16.msra.mxu0 %v244
    %327 = vmatpush.bf16.msra.mxu0 %v238
    %328 = vmatpush.bf16.msra.mxu0 %v232
    %329 = vmatpush.bf16.msra.mxu0 %v226
    %330 = vmatmul.bf16.gmra.mxu0 %v78
    %v331 = vpop.f32.mrf.mxu0
    %v332 = vadd.f32 0.0, %v331
    %v333 = vpop.f32.mrf.mxu0
    %v334 = vadd.f32 0.0, %v333
    %335 = vmatmul.bf16.gmra.mxu0 %v79
    %v336 = vpop.f32.mrf.mxu0
    %v337 = vadd.f32 0.0, %v336
    %v338 = vpop.f32.mrf.mxu0
    %v339 = vadd.f32 0.0, %v338
    %340 = vdwg.mxu0
    %341 = vmatpush.bf16.msra.mxu0 %v269
    %342 = vmatpush.bf16.msra.mxu0 %v263
    %343 = vmatpush.bf16.msra.mxu0 %v257
    %344 = vmatpush.bf16.msra.mxu0 %v251
    %345 = vmatpush.bf16.msra.mxu0 %v245
    %346 = vmatpush.bf16.msra.mxu0 %v239
    %347 = vmatpush.bf16.msra.mxu0 %v233
    %348 = vmatpush.bf16.msra.mxu0 %v227
    %349 = vmatmul.bf16.gmra.mxu0 %v78
    %v350 = vpop.f32.mrf.mxu0
    %v351 = vadd.f32 0.0, %v350
    %v352 = vpop.f32.mrf.mxu0
    %v353 = vadd.f32 0.0, %v352
    %354 = vmatmul.bf16.gmra.mxu0 %v79
    %v355 = vpop.f32.mrf.mxu0
    %v356 = vadd.f32 0.0, %v355
    %v357 = vpop.f32.mrf.mxu0
    %v358 = vadd.f32 0.0, %v357
    %359 = vdwg.mxu0
    %360 = vmatpush.bf16.msra.mxu0 %v270
    %361 = vmatpush.bf16.msra.mxu0 %v264
    %362 = vmatpush.bf16.msra.mxu0 %v258
    %363 = vmatpush.bf16.msra.mxu0 %v252
    %364 = vmatpush.bf16.msra.mxu0 %v246
    %365 = vmatpush.bf16.msra.mxu0 %v240
    %366 = vmatpush.bf16.msra.mxu0 %v234
    %367 = vmatpush.bf16.msra.mxu0 %v228
    %368 = vmatmul.bf16.gmra.mxu0 %v78
    %v369 = vpop.f32.mrf.mxu0
    %v370 = vadd.f32 0.0, %v369
    %v371 = vpop.f32.mrf.mxu0
    %v372 = vadd.f32 0.0, %v371
    %373 = vmatmul.bf16.gmra.mxu0 %v79
    %v374 = vpop.f32.mrf.mxu0
    %v375 = vadd.f32 0.0, %v374
    %v376 = vpop.f32.mrf.mxu0
    %v377 = vadd.f32 0.0, %v376
    %378 = vdwg.mxu0
    %379 = vmatpush.bf16.msra.mxu0 %v271
    %380 = vmatpush.bf16.msra.mxu0 %v265
    %381 = vmatpush.bf16.msra.mxu0 %v259
    %382 = vmatpush.bf16.msra.mxu0 %v253
    %383 = vmatpush.bf16.msra.mxu0 %v247
    %384 = vmatpush.bf16.msra.mxu0 %v241
    %385 = vmatpush.bf16.msra.mxu0 %v235
    %386 = vmatpush.bf16.msra.mxu0 %v229
    %387 = vmatmul.bf16.gmra.mxu0 %v78
    %v388 = vpop.f32.mrf.mxu0
    %v389 = vadd.f32 0.0, %v388
    %v390 = vpop.f32.mrf.mxu0
    %v391 = vadd.f32 0.0, %v390
    %392 = vmatmul.bf16.gmra.mxu0 %v79
    %v393 = vpop.f32.mrf.mxu0
    %v394 = vadd.f32 0.0, %v393
    %v395 = vpop.f32.mrf.mxu0
    %v396 = vadd.f32 0.0, %v395
    %397 = vdwg.mxu0
    %398 = vmatpush.bf16.msra.mxu0 %v272
    %399 = vmatpush.bf16.msra.mxu0 %v266
    %400 = vmatpush.bf16.msra.mxu0 %v260
    %401 = vmatpush.bf16.msra.mxu0 %v254
    %402 = vmatpush.bf16.msra.mxu0 %v248
    %403 = vmatpush.bf16.msra.mxu0 %v242
    %404 = vmatpush.bf16.msra.mxu0 %v236
    %405 = vmatpush.bf16.msra.mxu0 %v230
    %406 = vmatmul.bf16.gmra.mxu0 %v78
    %v407 = vpop.f32.mrf.mxu0
    %v408 = vadd.f32 0.0, %v407
    %v409 = vpop.f32.mrf.mxu0
    %v410 = vadd.f32 0.0, %v409
    %411 = vmatmul.bf16.gmra.mxu0 %v79
    %v412 = vpop.f32.mrf.mxu0
    %v413 = vadd.f32 0.0, %v412
    %v414 = vpop.f32.mrf.mxu0
    %v415 = vadd.f32 0.0, %v414
    %416 = vdwg.mxu0
    %417 = vmatpush.bf16.msra.mxu0 %v273
    %418 = vmatpush.bf16.msra.mxu0 %v267
    %419 = vmatpush.bf16.msra.mxu0 %v261
    %420 = vmatpush.bf16.msra.mxu0 %v255
    %421 = vmatpush.bf16.msra.mxu0 %v249
    %422 = vmatpush.bf16.msra.mxu0 %v243
    %423 = vmatpush.bf16.msra.mxu0 %v237
    %424 = vmatpush.bf16.msra.mxu0 %v231
    %425 = vmatmul.bf16.gmra.mxu0 %v78
    %v426 = vpop.f32.mrf.mxu0
    %v427 = vadd.f32 0.0, %v426
    %v428 = vpop.f32.mrf.mxu0
    %v429 = vadd.f32 0.0, %v428
    %430 = vmatmul.bf16.gmra.mxu0 %v79
    %v431 = vpop.f32.mrf.mxu0
    %v432 = vadd.f32 0.0, %v431
    %v433 = vpop.f32.mrf.mxu0
    %v434 = vadd.f32 0.0, %v433
    %435 = vdwg.mxu0
    %v436 = vld [vmem:[%s2] sm:$0x3f]
    %v438 = vperm.slane %v436, 0
    %v439 = vperm.slane %v436, 1
    %v440 = vperm.slane %v436, 2
    %v441 = vperm.slane %v436, 3
    %v442 = vperm.slane %v436, 4
    %v443 = vperm.slane %v436, 5
    %v450 = vmul.f32 %v332, %v438
    %v451 = vmul.f32 %v351, %v439
    %v452 = vmul.f32 %v370, %v440
    %v453 = vmul.f32 %v389, %v441
    %v454 = vmul.f32 %v408, %v442
    %v455 = vmul.f32 %v427, %v443
    %v456 = vmul.f32 %v334, %v438
    %v457 = vmul.f32 %v353, %v439
    %v458 = vmul.f32 %v372, %v440
    %v459 = vmul.f32 %v391, %v441
    %v460 = vmul.f32 %v410, %v442
    %v461 = vmul.f32 %v429, %v443
    %v462 = vmul.f32 %v337, %v438
    %v463 = vmul.f32 %v356, %v439
    %v464 = vmul.f32 %v375, %v440
    %v465 = vmul.f32 %v394, %v441
    %v466 = vmul.f32 %v413, %v442
    %v467 = vmul.f32 %v432, %v443
    %v468 = vmul.f32 %v339, %v438
    %v469 = vmul.f32 %v358, %v439
    %v470 = vmul.f32 %v377, %v440
    %v471 = vmul.f32 %v396, %v441
    %v472 = vmul.f32 %v415, %v442
    %v473 = vmul.f32 %v434, %v443
    %v474 = vld [vmem:[%s3] sm:$0x3f]
    %v476 = vperm.slane %v474, 0
    %v477 = vperm.slane %v474, 1
    %v478 = vperm.slane %v474, 2
    %v479 = vperm.slane %v474, 3
    %v480 = vperm.slane %v474, 4
    %v481 = vperm.slane %v474, 5
    %v488 = vadd.f32 %v450, %v476
    %v489 = vadd.f32 %v451, %v477
    %v490 = vadd.f32 %v452, %v478
    %v491 = vadd.f32 %v453, %v479
    %v492 = vadd.f32 %v454, %v480
    %v493 = vadd.f32 %v455, %v481
    %v494 = vadd.f32 %v456, %v476
    %v495 = vadd.f32 %v457, %v477
    %v496 = vadd.f32 %v458, %v478
    %v497 = vadd.f32 %v459, %v479
    %v498 = vadd.f32 %v460, %v480
    %v499 = vadd.f32 %v461, %v481
    %v500 = vadd.f32 %v462, %v476
    %v501 = vadd.f32 %v463, %v477
    %v502 = vadd.f32 %v464, %v478
    %v503 = vadd.f32 %v465, %v479
    %v504 = vadd.f32 %v466, %v480
    %v505 = vadd.f32 %v467, %v481
    %v506 = vadd.f32 %v468, %v476
    %v507 = vadd.f32 %v469, %v477
    %v508 = vadd.f32 %v470, %v478
    %v509 = vadd.f32 %v471, %v479
    %v510 = vadd.f32 %v472, %v480
    %v511 = vadd.f32 %v473, %v481
    %512 = vst [vmem:[#allocation2] sm:$0xff] %v488
    %513 = vst [vmem:[#allocation2 + $0x8] sm:$0xff] %v489
    %514 = vst [vmem:[#allocation2 + $0x10] sm:$0xff] %v490
    %515 = vst [vmem:[#allocation2 + $0x18] sm:$0xff] %v491
    %516 = vst [vmem:[#allocation2 + $0x20] sm:$0xff] %v492
    %517 = vst [vmem:[#allocation2 + $0x28] sm:$0xff] %v493
    %518 = vst [vmem:[#allocation2 + $0x30] sm:$0xff] %v494
    %519 = vst [vmem:[#allocation2 + $0x38] sm:$0xff] %v495
    %520 = vst [vmem:[#allocation2 + $0x40] sm:$0xff] %v496
    %521 = vst [vmem:[#allocation2 + $0x48] sm:$0xff] %v497
    %522 = vst [vmem:[#allocation2 + $0x50] sm:$0xff] %v498
    %523 = vst [vmem:[#allocation2 + $0x58] sm:$0xff] %v499
    %524 = vst [vmem:[#allocation2 + $0x60] sm:$0xff] %v500
    %525 = vst [vmem:[#allocation2 + $0x68] sm:$0xff] %v501
    %526 = vst [vmem:[#allocation2 + $0x70] sm:$0xff] %v502
    %527 = vst [vmem:[#allocation2 + $0x78] sm:$0xff] %v503
    %528 = vst [vmem:[#allocation2 + $0x80] sm:$0xff] %v504
    %529 = vst [vmem:[#allocation2 + $0x88] sm:$0xff] %v505
    %530 = vst [vmem:[#allocation2 + $0x90] sm:$0xff] %v506
    %531 = vst [vmem:[#allocation2 + $0x98] sm:$0xff] %v507
    %532 = vst [vmem:[#allocation2 + $0xa0] sm:$0xff] %v508
    %533 = vst [vmem:[#allocation2 + $0xa8] sm:$0xff] %v509
    %534 = vst [vmem:[#allocation2 + $0xb0] sm:$0xff] %v510
    %535 = vst [vmem:[#allocation2 + $0xb8] sm:$0xff] %v511
    // Predicated region
    $region18: #{conv_encoder_forward.9} parent=1 // pred_check
      _
    $region19: #{conv_encoder_forward.9} parent=1 // pred_check_branch
      %537 = sbr.rel (0) target = $region21
    $region20: #{conv_encoder_forward.9} parent=1 // pred_region
      %539 = vsyncadd [#allocation3], 0
      %s540 = sshll.u32 [#allocation2], 4
      %s541 = int_to_ptr.vmem [resolvable:$true] %s540
      %s542 = sshll.u32 %s4, 4
      %s543 = int_to_ptr.hbm [resolvable:$true] %s542
      %548 = dma.vmem_to_hbm [thread:$0]  %s541, 3072, %s543, [#allocation3], 768, 768, 48
    $region21: #{conv_encoder_forward.9} parent=1 // pred_fallthru
      _
    // Predicated region
    $region22: #{conv_encoder_forward.9} parent=1 // pred_check
      _
    $region23: #{conv_encoder_forward.9} parent=1 // pred_check_branch
      %550 = sbr.rel (0) target = $region25
    $region24: #{conv_encoder_forward.9} parent=1 // pred_region
      %552 = dma.done [#allocation3], 3072
    $region25: #{conv_encoder_forward.9} parent=1 // pred_fallthru
      _
    %553 = vsyncpa [#allocation3], 1

</llo_original>
